<compile_context>
chip_gen: v7x
topology: tpu7x:2x2x1
jax: 0.10.0
libtpu: 0.0.40
codegen_flags: <defaults>
</compile_context>

<pallas_src>
import math
from functools import partial

import jax
import jax.numpy as jnp
import numpy as np
from jax.experimental import pallas as pl
from jax.experimental.pallas import tpu as pltpu


# ----------------------------------------------------------------------------
# Fused kernel (single invocation, no grid)
# ----------------------------------------------------------------------------
def _layer_norm(x, gamma, beta, eps=1e-5):
    mean = jnp.mean(x, axis=-1, keepdims=True)
    var = jnp.mean((x - mean) ** 2, axis=-1, keepdims=True)
    return (x - mean) * jax.lax.rsqrt(var + eps) * gamma + beta


def fused_transformer_kernel(
    x_ref, bias_ref, emb_w_ref, emb_b_ref, cls_tok_ref,
    wq_ref, wk_ref, wv_ref, bq_ref, bk_ref, bv_ref,
    wo_ref, bo_ref, g1_ref, b1_ref,
    wf1_ref, bf1_ref, wf2_ref, bf2_ref, g2_ref, b2_ref,
    clsw_ref, clsb_ref,
    out_ref,
    *, num_layers, num_heads, seq_pad, batch,
):
    R = x_ref.shape[0]                 # B * Tp rows (batch folded into M)
    D = emb_w_ref.shape[1]             # d_model
    hd = D // num_heads
    scale = 1.0 / math.sqrt(hd)
    Tp = seq_pad
    B = batch

    # ---------------- embedding + CLS placement (runs once) ------------------
    emb = jnp.dot(x_ref[...], emb_w_ref[...],
                  preferred_element_type=jnp.float32) + emb_b_ref[...]      # (R, D)
    row = jax.lax.broadcasted_iota(jnp.int32, (R, D), 0)
    is_cls = (row % Tp) == 0                                                # rows b*Tp
    h = jnp.where(is_cls, jnp.broadcast_to(cls_tok_ref[...], (R, D)), emb)

    # Per-head lane masks (computed once, hoisted before the layer loop).
    lane = jax.lax.broadcasted_iota(jnp.int32, (1, D), 1)
    head_masks = [
        ((lane >= hh * hd) & (lane < (hh + 1) * hd)).astype(jnp.float32)
        for hh in range(num_heads)
    ]

    # Additive attention bias: -1e30 on cross-batch columns and padded-key
    # columns (keys span the full, tile-aligned Tp rows).
    bias = bias_ref[...]                                                    # (R, R)
    nt = (((1,), (1,)), ((), ()))      # contract last dims: q @ k^T without a transpose

    # ---------------- statically unrolled encoder layers ---------------------
    for l in range(num_layers):
        x = h
        q = jnp.dot(x, wq_ref[l], preferred_element_type=jnp.float32) + bq_ref[l]
        k = jnp.dot(x, wk_ref[l], preferred_element_type=jnp.float32) + bk_ref[l]
        v = jnp.dot(x, wv_ref[l], preferred_element_type=jnp.float32) + bv_ref[l]
        q = q * scale

        attn = None
        for hh in range(num_heads):                      # static loop; H is tiny
            m = head_masks[hh]
            s = jax.lax.dot_general(q, k * m, nt,
                                    preferred_element_type=jnp.float32) + bias  # (R, R)
            s = s - jnp.max(s, axis=-1, keepdims=True)
            p = jnp.exp(s)
            p = p * pl.reciprocal(jnp.sum(p, axis=-1, keepdims=True), approx=True)
            o = jnp.dot(p, v * m, preferred_element_type=jnp.float32)          # (R, D)
            attn = o if attn is None else attn + o

        attn = jnp.dot(attn, wo_ref[l], preferred_element_type=jnp.float32) + bo_ref[l]
        y = _layer_norm(x + attn, g1_ref[l], b1_ref[l])                          # post-norm 1

        ff = jnp.dot(y, wf1_ref[l], preferred_element_type=jnp.float32) + bf1_ref[l]
        ff = jnp.maximum(ff, 0.0)
        ff = jnp.dot(ff, wf2_ref[l], preferred_element_type=jnp.float32) + bf2_ref[l]
        h = _layer_norm(y + ff, g2_ref[l], b2_ref[l])                            # post-norm 2

    # ---------------- classifier on the CLS rows ------------------------------
    cls_h = jnp.concatenate([h[b * Tp:b * Tp + 1, :] for b in range(B)], axis=0)  # (B, D)
    out = jnp.dot(cls_h, clsw_ref[...], preferred_element_type=jnp.float32) + clsb_ref[...]
    out_ref[...] = out.astype(out_ref.dtype)


# ----------------------------------------------------------------------------
# Wrapper
# ----------------------------------------------------------------------------
def transformer_forward(x, params, *, num_heads):
    """x: (B, spectrum_dim) float32 -> logits (B, num_classes)."""
    emb_w = params["emb_w"]                     # (D, input_dim), PyTorch layout
    D, input_dim = emb_w.shape
    B, spec = x.shape
    S = spec // input_dim
    x3 = x[:, :S * input_dim].reshape(B, S, input_dim).astype(jnp.float32)

    T = S + 1                                   # +1 for the CLS token
    Tp = ((T + 7) // 8) * 8                     # pad to a multiple of 8 sublanes
    R = B * Tp
    L = len(params["layers"])
    C = params["cls_w"].shape[0]
    F = params["layers"][0]["wf1"].shape[0]     # dim_feedforward = 2*D

    # Stage the input into a sublane-aligned (B*Tp, input_dim) slab.  Row b*Tp is
    # the CLS slot (overwritten in-kernel); rows b*Tp+1 .. b*Tp+S are the tokens.
    x_pad = jnp.zeros((B, Tp, input_dim), jnp.float32)
    x_pad = x_pad.at[:, 1:T, :].set(x3).reshape(R, input_dim)

    # Additive attention bias over the full padded key range: valid key columns
    # are same-batch and within the T real rows; everything else gets -1e30.
    ri = np.arange(R)[:, None]
    ci = np.arange(R)[None, :]
    valid = ((ri // Tp) == (ci // Tp)) & ((ci % Tp) < T)
    attn_bias = jnp.asarray(np.where(valid, 0.0, -1e30).astype(np.float32))   # (R, R)

    # Stack per-layer parameters; pre-transpose every weight to (in, out) once
    # and split the fused in_proj into Q/K/V so the kernel never lane-slices.
    stk = lambda name: jnp.stack([lp[name] for lp in params["layers"]])
    wqkv = stk("wqkv")                                    # (L, 3D, D)
    wq_t = jnp.transpose(wqkv[:, :D, :], (0, 2, 1))       # (L, D, D)
    wk_t = jnp.transpose(wqkv[:, D:2 * D, :], (0, 2, 1))
    wv_t = jnp.transpose(wqkv[:, 2 * D:, :], (0, 2, 1))
    bqkv = stk("bqkv")
    bq = bqkv[:, None, :D]                                # (L, 1, D)
    bk = bqkv[:, None, D:2 * D]
    bv = bqkv[:, None, 2 * D:]
    wo_t = jnp.transpose(stk("wo"), (0, 2, 1))            # (L, D, D)
    bo = stk("bo")[:, None, :]
    wf1_t = jnp.transpose(stk("wf1"), (0, 2, 1))          # (L, D, F)
    bf1 = stk("bf1")[:, None, :]
    wf2_t = jnp.transpose(stk("wf2"), (0, 2, 1))          # (L, F, D)
    bf2 = stk("bf2")[:, None, :]
    g1 = stk("ln1_g")[:, None, :]
    b1 = stk("ln1_b")[:, None, :]
    g2 = stk("ln2_g")[:, None, :]
    b2 = stk("ln2_b")[:, None, :]

    kern = partial(fused_transformer_kernel, num_layers=L, num_heads=num_heads,
                   seq_pad=Tp, batch=B)

    # Single un-gridded pallas_call: every operand is a whole-array VMEM block
    # (total < 0.2 MiB), the activation stays in vregs/VMEM for the whole pass.
    return pl.pallas_call(
        kern,
        out_shape=jax.ShapeDtypeStruct((B, C), jnp.float32),
    )(
        x_pad, attn_bias,
        params["emb_w"].T, params["emb_b"][None, :], params["cls_token"].reshape(1, D),
        wq_t, wk_t, wv_t, bq, bk, bv,
        wo_t, bo, g1, b1,
        wf1_t, bf1, wf2_t, bf2, g2, b2,
        params["cls_w"].T, params["cls_b"][None, :],
    )


# ----------------------------------------------------------------------------
# Pure-JAX reference (PyTorch semantics) for the self-check
# ----------------------------------------------------------------------------
def reference_forward(x, params, *, num_heads):
    emb_w = params["emb_w"]
    D, input_dim = emb_w.shape
    B, spec = x.shape
    S = spec // input_dim
    x3 = x[:, :S * input_dim].reshape(B, S, input_dim)
    x_emb = x3 @ emb_w.T + params["emb_b"]
    cls = jnp.broadcast_to(params["cls_token"].reshape(1, 1, D), (B, 1, D))
    h = jnp.concatenate([cls, x_emb], axis=1)
    T = S + 1
    hd = D // num_heads
    for p in params["layers"]:
        q = h @ p["wqkv"][:D].T + p["bqkv"][:D]
        k = h @ p["wqkv"][D:2 * D].T + p["bqkv"][D:2 * D]
        v = h @ p["wqkv"][2 * D:].T + p["bqkv"][2 * D:]
        q = q.reshape(B, T, num_heads, hd).transpose(0, 2, 1, 3)
        k = k.reshape(B, T, num_heads, hd).transpose(0, 2, 1, 3)
        v = v.reshape(B, T, num_heads, hd).transpose(0, 2, 1, 3)
        s = jnp.einsum("bhqd,bhkd->bhqk", q, k) / math.sqrt(hd)
        a = jnp.einsum("bhqk,bhkd->bhqd", jax.nn.softmax(s, axis=-1), v)
        a = a.transpose(0, 2, 1, 3).reshape(B, T, D) @ p["wo"].T + p["bo"]
        y = h + a
        mu = y.mean(-1, keepdims=True); var = ((y - mu) ** 2).mean(-1, keepdims=True)
        y = (y - mu) * jax.lax.rsqrt(var + 1e-5) * p["ln1_g"] + p["ln1_b"]
        f = jnp.maximum(y @ p["wf1"].T + p["bf1"], 0.0) @ p["wf2"].T + p["bf2"]
        z = y + f
        mu = z.mean(-1, keepdims=True); var = ((z - mu) ** 2).mean(-1, keepdims=True)
        h = (z - mu) * jax.lax.rsqrt(var + 1e-5) * p["ln2_g"] + p["ln2_b"]
    return h[:, 0, :] @ params["cls_w"].T + params["cls_b"]


# ----------------------------------------------------------------------------
# Deterministic parameter init
# ----------------------------------------------------------------------------
def init_params(key, input_dim, D, num_heads, num_layers, num_classes):
    ks = jax.random.split(key, 4 + num_layers)

    def nrm(k, shape, s=0.05):
        return jax.random.normal(k, shape, jnp.float32) * s

    params = {
        "emb_w": nrm(ks[0], (D, input_dim)),
        "emb_b": nrm(ks[1], (D,), 0.01),
        "cls_token": nrm(ks[2], (1, 1, D), 1.0),
        "cls_w": nrm(ks[3], (num_classes, D)),
        "cls_b": jnp.zeros((num_classes,), jnp.float32),
        "layers": [],
    }
    for l in range(num_layers):
        lk = jax.random.split(ks[4 + l], 8)
        params["layers"].append({
            "wqkv": nrm(lk[0], (3 * D, D)),
            "bqkv": nrm(lk[1], (3 * D,), 0.01),
            "wo": nrm(lk[2], (D, D)),
            "bo": nrm(lk[3], (D,), 0.01),
            "ln1_g": jnp.ones((D,), jnp.float32),
            "ln1_b": jnp.zeros((D,), jnp.float32),
            "wf1": nrm(lk[4], (2 * D, D)),
            "bf1": nrm(lk[5], (2 * D,), 0.01),
            "wf2": nrm(lk[6], (D, 2 * D)),
            "bf2": nrm(lk[7], (D,), 0.01),
            "ln2_g": jnp.ones((D,), jnp.float32),
            "ln2_b": jnp.zeros((D,), jnp.float32),
        })
    return params


# ----------------------------------------------------------------------------
if __name__ == "__main__":
    INPUT_DIM = 16      # spectrum chunk per token
    HIDDEN = 32         # d_model
    NUM_HEADS = 4
    NUM_LAYERS = 2
    NUM_CLASSES = 5
    B = 2
    SPECTRUM = 128      # -> seq_len = 8, T = 9 (with CLS), padded to Tp = 16

    key = jax.random.PRNGKey(0)
    pkey, xkey = jax.random.split(key)
    params = init_params(pkey, INPUT_DIM, HIDDEN, NUM_HEADS, NUM_LAYERS, NUM_CLASSES)
    x = jax.random.normal(xkey, (B, SPECTRUM), jnp.float32)

    fwd = jax.jit(partial(transformer_forward, num_heads=NUM_HEADS))
    out = jax.block_until_ready(fwd(x, params))
    assert out.shape == (B, NUM_CLASSES)

    ref = jax.block_until_ready(reference_forward(x, params, num_heads=NUM_HEADS))
    np.testing.assert_allclose(np.asarray(out), np.asarray(ref), rtol=2e-2, atol=2e-2)

    print("KERNEL_OK")
</pallas_src>

<mosaic_0001>
module attributes {stable_mosaic.version = 11 : i64} {
  func.func @fused_transformer_kernel(%arg0: memref<32x16xf32, #tpu.memory_space<vmem>>, %arg1: memref<32x32xf32, #tpu.memory_space<vmem>>, %arg2: memref<16x32xf32, #tpu.memory_space<vmem>>, %arg3: memref<1x32xf32, #tpu.memory_space<vmem>>, %arg4: memref<1x32xf32, #tpu.memory_space<vmem>>, %arg5: memref<2x32x32xf32, #tpu.memory_space<vmem>>, %arg6: memref<2x32x32xf32, #tpu.memory_space<vmem>>, %arg7: memref<2x32x32xf32, #tpu.memory_space<vmem>>, %arg8: memref<2x1x32xf32, #tpu.memory_space<vmem>>, %arg9: memref<2x1x32xf32, #tpu.memory_space<vmem>>, %arg10: memref<2x1x32xf32, #tpu.memory_space<vmem>>, %arg11: memref<2x32x32xf32, #tpu.memory_space<vmem>>, %arg12: memref<2x1x32xf32, #tpu.memory_space<vmem>>, %arg13: memref<2x1x32xf32, #tpu.memory_space<vmem>>, %arg14: memref<2x1x32xf32, #tpu.memory_space<vmem>>, %arg15: memref<2x32x64xf32, #tpu.memory_space<vmem>>, %arg16: memref<2x1x64xf32, #tpu.memory_space<vmem>>, %arg17: memref<2x64x32xf32, #tpu.memory_space<vmem>>, %arg18: memref<2x1x32xf32, #tpu.memory_space<vmem>>, %arg19: memref<2x1x32xf32, #tpu.memory_space<vmem>>, %arg20: memref<2x1x32xf32, #tpu.memory_space<vmem>>, %arg21: memref<32x5xf32, #tpu.memory_space<vmem>>, %arg22: memref<1x5xf32, #tpu.memory_space<vmem>>, %arg23: memref<2x5xf32, #tpu.memory_space<vmem>>) attributes {dimension_semantics = [], scalar_prefetch = 0 : i64, scratch_operands = 0 : i64, tpu.core_type = #tpu.core_type<tc>} {
    %c0 = arith.constant 0 : index
    %c0_0 = arith.constant 0 : index
    %0 = vector.load %arg0[%c0, %c0_0] : memref<32x16xf32, #tpu.memory_space<vmem>>, vector<32x16xf32>
    %c0_1 = arith.constant 0 : index
    %c0_2 = arith.constant 0 : index
    %1 = vector.load %arg2[%c0_1, %c0_2] : memref<16x32xf32, #tpu.memory_space<vmem>>, vector<16x32xf32>
    %cst = arith.constant dense<0.000000e+00> : vector<32x32xf32>
    %2 = tpu.matmul %0, %1, %cst {dimension_numbers = #tpu.dot_dimension_numbers<[1], [0], [0], [1], [0, 0, 1, 1], [], []>} : vector<32x16xf32>, vector<16x32xf32>, vector<32x32xf32> -> vector<32x32xf32>
    %c0_3 = arith.constant 0 : index
    %c0_4 = arith.constant 0 : index
    %3 = vector.load %arg3[%c0_3, %c0_4] : memref<1x32xf32, #tpu.memory_space<vmem>>, vector<1x32xf32>
    %4 = vector.broadcast %3 : vector<1x32xf32> to vector<32x32xf32>
    %5 = arith.addf %2, %4 : vector<32x32xf32>
    %6 = tpu.iota {dimensions = array<i32: 0>} : vector<32x32xi32>
    %c16_i32 = arith.constant 16 : i32
    %c0_i32 = arith.constant 0 : i32
    %7 = arith.cmpi eq, %c16_i32, %c0_i32 : i32
    %c1_i32 = arith.constant 1 : i32
    %8 = arith.select %7, %c1_i32, %c16_i32 : i32
    %9 = vector.broadcast %8 : i32 to vector<32x32xi32>
    %10 = arith.remsi %6, %9 : vector<32x32xi32>
    %c0_i32_5 = arith.constant 0 : i32
    %11 = vector.broadcast %c0_i32_5 : i32 to vector<32x32xi32>
    %12 = arith.cmpi ne, %10, %11 : vector<32x32xi32>
    %c0_i32_6 = arith.constant 0 : i32
    %13 = vector.broadcast %c0_i32_6 : i32 to vector<32x32xi32>
    %14 = arith.cmpi slt, %10, %13 : vector<32x32xi32>
    %c0_i32_7 = arith.constant 0 : i32
    %15 = arith.cmpi slt, %8, %c0_i32_7 : i32
    %16 = vector.broadcast %15 : i1 to vector<32x32xi1>
    %17 = vector.broadcast %16 : vector<32x32xi1> to vector<32x32xi1>
    %18 = arith.xori %14, %17 : vector<32x32xi1>
    %19 = arith.andi %18, %12 : vector<32x32xi1>
    %20 = vector.broadcast %8 : i32 to vector<32x32xi32>
    %21 = arith.addi %10, %20 : vector<32x32xi32>
    %22 = arith.select %19, %21, %10 : vector<32x32xi1>, vector<32x32xi32>
    %c0_i32_8 = arith.constant 0 : i32
    %23 = vector.broadcast %c0_i32_8 : i32 to vector<32x32xi32>
    %24 = arith.cmpi eq, %22, %23 : vector<32x32xi32>
    %c0_9 = arith.constant 0 : index
    %c0_10 = arith.constant 0 : index
    %25 = vector.load %arg4[%c0_9, %c0_10] : memref<1x32xf32, #tpu.memory_space<vmem>>, vector<1x32xf32>
    %26 = vector.shape_cast %25 : vector<1x32xf32> to vector<1x32xf32>
    %27 = vector.broadcast %26 : vector<1x32xf32> to vector<32x32xf32>
    %28 = arith.select %24, %27, %5 : vector<32x32xi1>, vector<32x32xf32>
    %29 = tpu.iota {dimensions = array<i32: 1>} : vector<1x32xi32>
    %c0_i32_11 = arith.constant 0 : i32
    %30 = vector.broadcast %c0_i32_11 : i32 to vector<1x32xi32>
    %31 = arith.cmpi sge, %29, %30 : vector<1x32xi32>
    %c8_i32 = arith.constant 8 : i32
    %32 = vector.broadcast %c8_i32 : i32 to vector<1x32xi32>
    %33 = arith.cmpi slt, %29, %32 : vector<1x32xi32>
    %34 = arith.andi %31, %33 : vector<1x32xi1>
    %35 = arith.extui %34 : vector<1x32xi1> to vector<1x32xi32>
    %36 = arith.sitofp %35 : vector<1x32xi32> to vector<1x32xf32>
    %c8_i32_12 = arith.constant 8 : i32
    %37 = vector.broadcast %c8_i32_12 : i32 to vector<1x32xi32>
    %38 = arith.cmpi sge, %29, %37 : vector<1x32xi32>
    %c16_i32_13 = arith.constant 16 : i32
    %39 = vector.broadcast %c16_i32_13 : i32 to vector<1x32xi32>
    %40 = arith.cmpi slt, %29, %39 : vector<1x32xi32>
    %41 = arith.andi %38, %40 : vector<1x32xi1>
    %42 = arith.extui %41 : vector<1x32xi1> to vector<1x32xi32>
    %43 = arith.sitofp %42 : vector<1x32xi32> to vector<1x32xf32>
    %c16_i32_14 = arith.constant 16 : i32
    %44 = vector.broadcast %c16_i32_14 : i32 to vector<1x32xi32>
    %45 = arith.cmpi sge, %29, %44 : vector<1x32xi32>
    %c24_i32 = arith.constant 24 : i32
    %46 = vector.broadcast %c24_i32 : i32 to vector<1x32xi32>
    %47 = arith.cmpi slt, %29, %46 : vector<1x32xi32>
    %48 = arith.andi %45, %47 : vector<1x32xi1>
    %49 = arith.extui %48 : vector<1x32xi1> to vector<1x32xi32>
    %50 = arith.sitofp %49 : vector<1x32xi32> to vector<1x32xf32>
    %c24_i32_15 = arith.constant 24 : i32
    %51 = vector.broadcast %c24_i32_15 : i32 to vector<1x32xi32>
    %52 = arith.cmpi sge, %29, %51 : vector<1x32xi32>
    %c32_i32 = arith.constant 32 : i32
    %53 = vector.broadcast %c32_i32 : i32 to vector<1x32xi32>
    %54 = arith.cmpi slt, %29, %53 : vector<1x32xi32>
    %55 = arith.andi %52, %54 : vector<1x32xi1>
    %56 = arith.extui %55 : vector<1x32xi1> to vector<1x32xi32>
    %57 = arith.sitofp %56 : vector<1x32xi32> to vector<1x32xf32>
    %c0_16 = arith.constant 0 : index
    %c0_17 = arith.constant 0 : index
    %58 = vector.load %arg1[%c0_16, %c0_17] : memref<32x32xf32, #tpu.memory_space<vmem>>, vector<32x32xf32>
    %c0_18 = arith.constant 0 : index
    %c0_19 = arith.constant 0 : index
    %c0_20 = arith.constant 0 : index
    %59 = vector.load %arg5[%c0_18, %c0_19, %c0_20] : memref<2x32x32xf32, #tpu.memory_space<vmem>>, vector<1x32x32xf32>
    %60 = vector.shape_cast %59 : vector<1x32x32xf32> to vector<32x32xf32>
    %cst_21 = arith.constant dense<0.000000e+00> : vector<32x32xf32>
    %61 = tpu.matmul %28, %60, %cst_21 {dimension_numbers = #tpu.dot_dimension_numbers<[1], [0], [0], [1], [0, 0, 1, 1], [], []>} : vector<32x32xf32>, vector<32x32xf32>, vector<32x32xf32> -> vector<32x32xf32>
    %c0_22 = arith.constant 0 : index
    %c0_23 = arith.constant 0 : index
    %c0_24 = arith.constant 0 : index
    %62 = vector.load %arg8[%c0_22, %c0_23, %c0_24] : memref<2x1x32xf32, #tpu.memory_space<vmem>>, vector<1x1x32xf32>
    %63 = vector.shape_cast %62 : vector<1x1x32xf32> to vector<1x32xf32>
    %64 = vector.broadcast %63 : vector<1x32xf32> to vector<32x32xf32>
    %65 = arith.addf %61, %64 : vector<32x32xf32>
    %c0_25 = arith.constant 0 : index
    %c0_26 = arith.constant 0 : index
    %c0_27 = arith.constant 0 : index
    %66 = vector.load %arg6[%c0_25, %c0_26, %c0_27] : memref<2x32x32xf32, #tpu.memory_space<vmem>>, vector<1x32x32xf32>
    %67 = vector.shape_cast %66 : vector<1x32x32xf32> to vector<32x32xf32>
    %cst_28 = arith.constant dense<0.000000e+00> : vector<32x32xf32>
    %68 = tpu.matmul %28, %67, %cst_28 {dimension_numbers = #tpu.dot_dimension_numbers<[1], [0], [0], [1], [0, 0, 1, 1], [], []>} : vector<32x32xf32>, vector<32x32xf32>, vector<32x32xf32> -> vector<32x32xf32>
    %c0_29 = arith.constant 0 : index
    %c0_30 = arith.constant 0 : index
    %c0_31 = arith.constant 0 : index
    %69 = vector.load %arg9[%c0_29, %c0_30, %c0_31] : memref<2x1x32xf32, #tpu.memory_space<vmem>>, vector<1x1x32xf32>
    %70 = vector.shape_cast %69 : vector<1x1x32xf32> to vector<1x32xf32>
    %71 = vector.broadcast %70 : vector<1x32xf32> to vector<32x32xf32>
    %72 = arith.addf %68, %71 : vector<32x32xf32>
    %c0_32 = arith.constant 0 : index
    %c0_33 = arith.constant 0 : index
    %c0_34 = arith.constant 0 : index
    %73 = vector.load %arg7[%c0_32, %c0_33, %c0_34] : memref<2x32x32xf32, #tpu.memory_space<vmem>>, vector<1x32x32xf32>
    %74 = vector.shape_cast %73 : vector<1x32x32xf32> to vector<32x32xf32>
    %cst_35 = arith.constant dense<0.000000e+00> : vector<32x32xf32>
    %75 = tpu.matmul %28, %74, %cst_35 {dimension_numbers = #tpu.dot_dimension_numbers<[1], [0], [0], [1], [0, 0, 1, 1], [], []>} : vector<32x32xf32>, vector<32x32xf32>, vector<32x32xf32> -> vector<32x32xf32>
    %c0_36 = arith.constant 0 : index
    %c0_37 = arith.constant 0 : index
    %c0_38 = arith.constant 0 : index
    %76 = vector.load %arg10[%c0_36, %c0_37, %c0_38] : memref<2x1x32xf32, #tpu.memory_space<vmem>>, vector<1x1x32xf32>
    %77 = vector.shape_cast %76 : vector<1x1x32xf32> to vector<1x32xf32>
    %78 = vector.broadcast %77 : vector<1x32xf32> to vector<32x32xf32>
    %79 = arith.addf %75, %78 : vector<32x32xf32>
    %cst_39 = arith.constant 0.353553385 : f32
    %80 = vector.broadcast %cst_39 : f32 to vector<32x32xf32>
    %81 = arith.mulf %65, %80 : vector<32x32xf32>
    %82 = vector.broadcast %36 : vector<1x32xf32> to vector<32x32xf32>
    %83 = arith.mulf %72, %82 : vector<32x32xf32>
    %cst_40 = arith.constant dense<0.000000e+00> : vector<32x32xf32>
    %84 = tpu.matmul %81, %83, %cst_40 {dimension_numbers = #tpu.dot_dimension_numbers<[1], [1], [0], [0], [0, 0, 1, 0], [], []>} : vector<32x32xf32>, vector<32x32xf32>, vector<32x32xf32> -> vector<32x32xf32>
    %85 = arith.addf %84, %58 : vector<32x32xf32>
    %cst_41 = arith.constant dense<0xFF800000> : vector<32xf32>
    %86 = vector.multi_reduction <maximumf>, %85, %cst_41 [1] : vector<32x32xf32> to vector<32xf32>
    %87 = vector.shape_cast %86 : vector<32xf32> to vector<32x1xf32>
    %88 = vector.broadcast %87 : vector<32x1xf32> to vector<32x32xf32>
    %89 = arith.subf %85, %88 : vector<32x32xf32>
    %90 = math.exp %89 : vector<32x32xf32>
    %cst_42 = arith.constant dense<0.000000e+00> : vector<32xf32>
    %91 = vector.multi_reduction <add>, %90, %cst_42 [1] : vector<32x32xf32> to vector<32xf32>
    %92 = vector.shape_cast %91 : vector<32xf32> to vector<32x1xf32>
    %93 = tpu.reciprocal %92 {approx = true} : vector<32x1xf32> -> vector<32x1xf32>
    %94 = vector.broadcast %93 : vector<32x1xf32> to vector<32x32xf32>
    %95 = arith.mulf %90, %94 : vector<32x32xf32>
    %96 = vector.broadcast %36 : vector<1x32xf32> to vector<32x32xf32>
    %97 = arith.mulf %79, %96 : vector<32x32xf32>
    %cst_43 = arith.constant dense<0.000000e+00> : vector<32x32xf32>
    %98 = tpu.matmul %95, %97, %cst_43 {dimension_numbers = #tpu.dot_dimension_numbers<[1], [0], [0], [1], [0, 0, 1, 1], [], []>} : vector<32x32xf32>, vector<32x32xf32>, vector<32x32xf32> -> vector<32x32xf32>
    %99 = vector.broadcast %43 : vector<1x32xf32> to vector<32x32xf32>
    %100 = arith.mulf %72, %99 : vector<32x32xf32>
    %cst_44 = arith.constant dense<0.000000e+00> : vector<32x32xf32>
    %101 = tpu.matmul %81, %100, %cst_44 {dimension_numbers = #tpu.dot_dimension_numbers<[1], [1], [0], [0], [0, 0, 1, 0], [], []>} : vector<32x32xf32>, vector<32x32xf32>, vector<32x32xf32> -> vector<32x32xf32>
    %102 = arith.addf %101, %58 : vector<32x32xf32>
    %cst_45 = arith.constant dense<0xFF800000> : vector<32xf32>
    %103 = vector.multi_reduction <maximumf>, %102, %cst_45 [1] : vector<32x32xf32> to vector<32xf32>
    %104 = vector.shape_cast %103 : vector<32xf32> to vector<32x1xf32>
    %105 = vector.broadcast %104 : vector<32x1xf32> to vector<32x32xf32>
    %106 = arith.subf %102, %105 : vector<32x32xf32>
    %107 = math.exp %106 : vector<32x32xf32>
    %cst_46 = arith.constant dense<0.000000e+00> : vector<32xf32>
    %108 = vector.multi_reduction <add>, %107, %cst_46 [1] : vector<32x32xf32> to vector<32xf32>
    %109 = vector.shape_cast %108 : vector<32xf32> to vector<32x1xf32>
    %110 = tpu.reciprocal %109 {approx = true} : vector<32x1xf32> -> vector<32x1xf32>
    %111 = vector.broadcast %110 : vector<32x1xf32> to vector<32x32xf32>
    %112 = arith.mulf %107, %111 : vector<32x32xf32>
    %113 = vector.broadcast %43 : vector<1x32xf32> to vector<32x32xf32>
    %114 = arith.mulf %79, %113 : vector<32x32xf32>
    %cst_47 = arith.constant dense<0.000000e+00> : vector<32x32xf32>
    %115 = tpu.matmul %112, %114, %cst_47 {dimension_numbers = #tpu.dot_dimension_numbers<[1], [0], [0], [1], [0, 0, 1, 1], [], []>} : vector<32x32xf32>, vector<32x32xf32>, vector<32x32xf32> -> vector<32x32xf32>
    %116 = arith.addf %98, %115 : vector<32x32xf32>
    %117 = vector.broadcast %50 : vector<1x32xf32> to vector<32x32xf32>
    %118 = arith.mulf %72, %117 : vector<32x32xf32>
    %cst_48 = arith.constant dense<0.000000e+00> : vector<32x32xf32>
    %119 = tpu.matmul %81, %118, %cst_48 {dimension_numbers = #tpu.dot_dimension_numbers<[1], [1], [0], [0], [0, 0, 1, 0], [], []>} : vector<32x32xf32>, vector<32x32xf32>, vector<32x32xf32> -> vector<32x32xf32>
    %120 = arith.addf %119, %58 : vector<32x32xf32>
    %cst_49 = arith.constant dense<0xFF800000> : vector<32xf32>
    %121 = vector.multi_reduction <maximumf>, %120, %cst_49 [1] : vector<32x32xf32> to vector<32xf32>
    %122 = vector.shape_cast %121 : vector<32xf32> to vector<32x1xf32>
    %123 = vector.broadcast %122 : vector<32x1xf32> to vector<32x32xf32>
    %124 = arith.subf %120, %123 : vector<32x32xf32>
    %125 = math.exp %124 : vector<32x32xf32>
    %cst_50 = arith.constant dense<0.000000e+00> : vector<32xf32>
    %126 = vector.multi_reduction <add>, %125, %cst_50 [1] : vector<32x32xf32> to vector<32xf32>
    %127 = vector.shape_cast %126 : vector<32xf32> to vector<32x1xf32>
    %128 = tpu.reciprocal %127 {approx = true} : vector<32x1xf32> -> vector<32x1xf32>
    %129 = vector.broadcast %128 : vector<32x1xf32> to vector<32x32xf32>
    %130 = arith.mulf %125, %129 : vector<32x32xf32>
    %131 = vector.broadcast %50 : vector<1x32xf32> to vector<32x32xf32>
    %132 = arith.mulf %79, %131 : vector<32x32xf32>
    %cst_51 = arith.constant dense<0.000000e+00> : vector<32x32xf32>
    %133 = tpu.matmul %130, %132, %cst_51 {dimension_numbers = #tpu.dot_dimension_numbers<[1], [0], [0], [1], [0, 0, 1, 1], [], []>} : vector<32x32xf32>, vector<32x32xf32>, vector<32x32xf32> -> vector<32x32xf32>
    %134 = arith.addf %116, %133 : vector<32x32xf32>
    %135 = vector.broadcast %57 : vector<1x32xf32> to vector<32x32xf32>
    %136 = arith.mulf %72, %135 : vector<32x32xf32>
    %cst_52 = arith.constant dense<0.000000e+00> : vector<32x32xf32>
    %137 = tpu.matmul %81, %136, %cst_52 {dimension_numbers = #tpu.dot_dimension_numbers<[1], [1], [0], [0], [0, 0, 1, 0], [], []>} : vector<32x32xf32>, vector<32x32xf32>, vector<32x32xf32> -> vector<32x32xf32>
    %138 = arith.addf %137, %58 : vector<32x32xf32>
    %cst_53 = arith.constant dense<0xFF800000> : vector<32xf32>
    %139 = vector.multi_reduction <maximumf>, %138, %cst_53 [1] : vector<32x32xf32> to vector<32xf32>
    %140 = vector.shape_cast %139 : vector<32xf32> to vector<32x1xf32>
    %141 = vector.broadcast %140 : vector<32x1xf32> to vector<32x32xf32>
    %142 = arith.subf %138, %141 : vector<32x32xf32>
    %143 = math.exp %142 : vector<32x32xf32>
    %cst_54 = arith.constant dense<0.000000e+00> : vector<32xf32>
    %144 = vector.multi_reduction <add>, %143, %cst_54 [1] : vector<32x32xf32> to vector<32xf32>
    %145 = vector.shape_cast %144 : vector<32xf32> to vector<32x1xf32>
    %146 = tpu.reciprocal %145 {approx = true} : vector<32x1xf32> -> vector<32x1xf32>
    %147 = vector.broadcast %146 : vector<32x1xf32> to vector<32x32xf32>
    %148 = arith.mulf %143, %147 : vector<32x32xf32>
    %149 = vector.broadcast %57 : vector<1x32xf32> to vector<32x32xf32>
    %150 = arith.mulf %79, %149 : vector<32x32xf32>
    %cst_55 = arith.constant dense<0.000000e+00> : vector<32x32xf32>
    %151 = tpu.matmul %148, %150, %cst_55 {dimension_numbers = #tpu.dot_dimension_numbers<[1], [0], [0], [1], [0, 0, 1, 1], [], []>} : vector<32x32xf32>, vector<32x32xf32>, vector<32x32xf32> -> vector<32x32xf32>
    %152 = arith.addf %134, %151 : vector<32x32xf32>
    %c0_56 = arith.constant 0 : index
    %c0_57 = arith.constant 0 : index
    %c0_58 = arith.constant 0 : index
    %153 = vector.load %arg11[%c0_56, %c0_57, %c0_58] : memref<2x32x32xf32, #tpu.memory_space<vmem>>, vector<1x32x32xf32>
    %154 = vector.shape_cast %153 : vector<1x32x32xf32> to vector<32x32xf32>
    %cst_59 = arith.constant dense<0.000000e+00> : vector<32x32xf32>
    %155 = tpu.matmul %152, %154, %cst_59 {dimension_numbers = #tpu.dot_dimension_numbers<[1], [0], [0], [1], [0, 0, 1, 1], [], []>} : vector<32x32xf32>, vector<32x32xf32>, vector<32x32xf32> -> vector<32x32xf32>
    %c0_60 = arith.constant 0 : index
    %c0_61 = arith.constant 0 : index
    %c0_62 = arith.constant 0 : index
    %156 = vector.load %arg12[%c0_60, %c0_61, %c0_62] : memref<2x1x32xf32, #tpu.memory_space<vmem>>, vector<1x1x32xf32>
    %157 = vector.shape_cast %156 : vector<1x1x32xf32> to vector<1x32xf32>
    %158 = vector.broadcast %157 : vector<1x32xf32> to vector<32x32xf32>
    %159 = arith.addf %155, %158 : vector<32x32xf32>
    %160 = arith.addf %28, %159 : vector<32x32xf32>
    %c0_63 = arith.constant 0 : index
    %c0_64 = arith.constant 0 : index
    %c0_65 = arith.constant 0 : index
    %161 = vector.load %arg13[%c0_63, %c0_64, %c0_65] : memref<2x1x32xf32, #tpu.memory_space<vmem>>, vector<1x1x32xf32>
    %162 = vector.shape_cast %161 : vector<1x1x32xf32> to vector<1x32xf32>
    %c0_66 = arith.constant 0 : index
    %c0_67 = arith.constant 0 : index
    %c0_68 = arith.constant 0 : index
    %163 = vector.load %arg14[%c0_66, %c0_67, %c0_68] : memref<2x1x32xf32, #tpu.memory_space<vmem>>, vector<1x1x32xf32>
    %164 = vector.shape_cast %163 : vector<1x1x32xf32> to vector<1x32xf32>
    %cst_69 = arith.constant dense<0.000000e+00> : vector<32xf32>
    %165 = vector.multi_reduction <add>, %160, %cst_69 [1] : vector<32x32xf32> to vector<32xf32>
    %166 = vector.shape_cast %165 : vector<32xf32> to vector<32x1xf32>
    %cst_70 = arith.constant 3.200000e+01 : f32
    %167 = vector.broadcast %cst_70 : f32 to vector<32x1xf32>
    %168 = arith.divf %166, %167 : vector<32x1xf32>
    %169 = vector.broadcast %168 : vector<32x1xf32> to vector<32x32xf32>
    %170 = arith.subf %160, %169 : vector<32x32xf32>
    %171 = arith.mulf %170, %170 : vector<32x32xf32>
    %cst_71 = arith.constant dense<0.000000e+00> : vector<32xf32>
    %172 = vector.multi_reduction <add>, %171, %cst_71 [1] : vector<32x32xf32> to vector<32xf32>
    %173 = vector.shape_cast %172 : vector<32xf32> to vector<32x1xf32>
    %cst_72 = arith.constant 3.200000e+01 : f32
    %174 = vector.broadcast %cst_72 : f32 to vector<32x1xf32>
    %175 = arith.divf %173, %174 : vector<32x1xf32>
    %176 = vector.broadcast %168 : vector<32x1xf32> to vector<32x32xf32>
    %177 = arith.subf %160, %176 : vector<32x32xf32>
    %cst_73 = arith.constant 9.99999974E-6 : f32
    %178 = vector.broadcast %cst_73 : f32 to vector<32x1xf32>
    %179 = arith.addf %175, %178 : vector<32x1xf32>
    %180 = math.rsqrt %179 : vector<32x1xf32>
    %181 = vector.broadcast %180 : vector<32x1xf32> to vector<32x32xf32>
    %182 = arith.mulf %177, %181 : vector<32x32xf32>
    %183 = vector.broadcast %162 : vector<1x32xf32> to vector<32x32xf32>
    %184 = arith.mulf %182, %183 : vector<32x32xf32>
    %185 = vector.broadcast %164 : vector<1x32xf32> to vector<32x32xf32>
    %186 = arith.addf %184, %185 : vector<32x32xf32>
    %c0_74 = arith.constant 0 : index
    %c0_75 = arith.constant 0 : index
    %c0_76 = arith.constant 0 : index
    %187 = vector.load %arg15[%c0_74, %c0_75, %c0_76] : memref<2x32x64xf32, #tpu.memory_space<vmem>>, vector<1x32x64xf32>
    %188 = vector.shape_cast %187 : vector<1x32x64xf32> to vector<32x64xf32>
    %cst_77 = arith.constant dense<0.000000e+00> : vector<32x64xf32>
    %189 = tpu.matmul %186, %188, %cst_77 {dimension_numbers = #tpu.dot_dimension_numbers<[1], [0], [0], [1], [0, 0, 1, 1], [], []>} : vector<32x32xf32>, vector<32x64xf32>, vector<32x64xf32> -> vector<32x64xf32>
    %c0_78 = arith.constant 0 : index
    %c0_79 = arith.constant 0 : index
    %c0_80 = arith.constant 0 : index
    %190 = vector.load %arg16[%c0_78, %c0_79, %c0_80] : memref<2x1x64xf32, #tpu.memory_space<vmem>>, vector<1x1x64xf32>
    %191 = vector.shape_cast %190 : vector<1x1x64xf32> to vector<1x64xf32>
    %192 = vector.broadcast %191 : vector<1x64xf32> to vector<32x64xf32>
    %193 = arith.addf %189, %192 : vector<32x64xf32>
    %cst_81 = arith.constant 0.000000e+00 : f32
    %194 = vector.broadcast %cst_81 : f32 to vector<32x64xf32>
    %195 = arith.maximumf %193, %194 : vector<32x64xf32>
    %c0_82 = arith.constant 0 : index
    %c0_83 = arith.constant 0 : index
    %c0_84 = arith.constant 0 : index
    %196 = vector.load %arg17[%c0_82, %c0_83, %c0_84] : memref<2x64x32xf32, #tpu.memory_space<vmem>>, vector<1x64x32xf32>
    %197 = vector.shape_cast %196 : vector<1x64x32xf32> to vector<64x32xf32>
    %cst_85 = arith.constant dense<0.000000e+00> : vector<32x32xf32>
    %198 = tpu.matmul %195, %197, %cst_85 {dimension_numbers = #tpu.dot_dimension_numbers<[1], [0], [0], [1], [0, 0, 1, 1], [], []>} : vector<32x64xf32>, vector<64x32xf32>, vector<32x32xf32> -> vector<32x32xf32>
    %c0_86 = arith.constant 0 : index
    %c0_87 = arith.constant 0 : index
    %c0_88 = arith.constant 0 : index
    %199 = vector.load %arg18[%c0_86, %c0_87, %c0_88] : memref<2x1x32xf32, #tpu.memory_space<vmem>>, vector<1x1x32xf32>
    %200 = vector.shape_cast %199 : vector<1x1x32xf32> to vector<1x32xf32>
    %201 = vector.broadcast %200 : vector<1x32xf32> to vector<32x32xf32>
    %202 = arith.addf %198, %201 : vector<32x32xf32>
    %203 = arith.addf %186, %202 : vector<32x32xf32>
    %c0_89 = arith.constant 0 : index
    %c0_90 = arith.constant 0 : index
    %c0_91 = arith.constant 0 : index
    %204 = vector.load %arg19[%c0_89, %c0_90, %c0_91] : memref<2x1x32xf32, #tpu.memory_space<vmem>>, vector<1x1x32xf32>
    %205 = vector.shape_cast %204 : vector<1x1x32xf32> to vector<1x32xf32>
    %c0_92 = arith.constant 0 : index
    %c0_93 = arith.constant 0 : index
    %c0_94 = arith.constant 0 : index
    %206 = vector.load %arg20[%c0_92, %c0_93, %c0_94] : memref<2x1x32xf32, #tpu.memory_space<vmem>>, vector<1x1x32xf32>
    %207 = vector.shape_cast %206 : vector<1x1x32xf32> to vector<1x32xf32>
    %cst_95 = arith.constant dense<0.000000e+00> : vector<32xf32>
    %208 = vector.multi_reduction <add>, %203, %cst_95 [1] : vector<32x32xf32> to vector<32xf32>
    %209 = vector.shape_cast %208 : vector<32xf32> to vector<32x1xf32>
    %cst_96 = arith.constant 3.200000e+01 : f32
    %210 = vector.broadcast %cst_96 : f32 to vector<32x1xf32>
    %211 = arith.divf %209, %210 : vector<32x1xf32>
    %212 = vector.broadcast %211 : vector<32x1xf32> to vector<32x32xf32>
    %213 = arith.subf %203, %212 : vector<32x32xf32>
    %214 = arith.mulf %213, %213 : vector<32x32xf32>
    %cst_97 = arith.constant dense<0.000000e+00> : vector<32xf32>
    %215 = vector.multi_reduction <add>, %214, %cst_97 [1] : vector<32x32xf32> to vector<32xf32>
    %216 = vector.shape_cast %215 : vector<32xf32> to vector<32x1xf32>
    %cst_98 = arith.constant 3.200000e+01 : f32
    %217 = vector.broadcast %cst_98 : f32 to vector<32x1xf32>
    %218 = arith.divf %216, %217 : vector<32x1xf32>
    %219 = vector.broadcast %211 : vector<32x1xf32> to vector<32x32xf32>
    %220 = arith.subf %203, %219 : vector<32x32xf32>
    %cst_99 = arith.constant 9.99999974E-6 : f32
    %221 = vector.broadcast %cst_99 : f32 to vector<32x1xf32>
    %222 = arith.addf %218, %221 : vector<32x1xf32>
    %223 = math.rsqrt %222 : vector<32x1xf32>
    %224 = vector.broadcast %223 : vector<32x1xf32> to vector<32x32xf32>
    %225 = arith.mulf %220, %224 : vector<32x32xf32>
    %226 = vector.broadcast %205 : vector<1x32xf32> to vector<32x32xf32>
    %227 = arith.mulf %225, %226 : vector<32x32xf32>
    %228 = vector.broadcast %207 : vector<1x32xf32> to vector<32x32xf32>
    %229 = arith.addf %227, %228 : vector<32x32xf32>
    %c1 = arith.constant 1 : index
    %c0_100 = arith.constant 0 : index
    %c0_101 = arith.constant 0 : index
    %230 = vector.load %arg5[%c1, %c0_100, %c0_101] : memref<2x32x32xf32, #tpu.memory_space<vmem>>, vector<1x32x32xf32>
    %231 = vector.shape_cast %230 : vector<1x32x32xf32> to vector<32x32xf32>
    %cst_102 = arith.constant dense<0.000000e+00> : vector<32x32xf32>
    %232 = tpu.matmul %229, %231, %cst_102 {dimension_numbers = #tpu.dot_dimension_numbers<[1], [0], [0], [1], [0, 0, 1, 1], [], []>} : vector<32x32xf32>, vector<32x32xf32>, vector<32x32xf32> -> vector<32x32xf32>
    %c1_103 = arith.constant 1 : index
    %c0_104 = arith.constant 0 : index
    %c0_105 = arith.constant 0 : index
    %233 = vector.load %arg8[%c1_103, %c0_104, %c0_105] : memref<2x1x32xf32, #tpu.memory_space<vmem>>, vector<1x1x32xf32>
    %234 = vector.shape_cast %233 : vector<1x1x32xf32> to vector<1x32xf32>
    %235 = vector.broadcast %234 : vector<1x32xf32> to vector<32x32xf32>
    %236 = arith.addf %232, %235 : vector<32x32xf32>
    %c1_106 = arith.constant 1 : index
    %c0_107 = arith.constant 0 : index
    %c0_108 = arith.constant 0 : index
    %237 = vector.load %arg6[%c1_106, %c0_107, %c0_108] : memref<2x32x32xf32, #tpu.memory_space<vmem>>, vector<1x32x32xf32>
    %238 = vector.shape_cast %237 : vector<1x32x32xf32> to vector<32x32xf32>
    %cst_109 = arith.constant dense<0.000000e+00> : vector<32x32xf32>
    %239 = tpu.matmul %229, %238, %cst_109 {dimension_numbers = #tpu.dot_dimension_numbers<[1], [0], [0], [1], [0, 0, 1, 1], [], []>} : vector<32x32xf32>, vector<32x32xf32>, vector<32x32xf32> -> vector<32x32xf32>
    %c1_110 = arith.constant 1 : index
    %c0_111 = arith.constant 0 : index
    %c0_112 = arith.constant 0 : index
    %240 = vector.load %arg9[%c1_110, %c0_111, %c0_112] : memref<2x1x32xf32, #tpu.memory_space<vmem>>, vector<1x1x32xf32>
    %241 = vector.shape_cast %240 : vector<1x1x32xf32> to vector<1x32xf32>
    %242 = vector.broadcast %241 : vector<1x32xf32> to vector<32x32xf32>
    %243 = arith.addf %239, %242 : vector<32x32xf32>
    %c1_113 = arith.constant 1 : index
    %c0_114 = arith.constant 0 : index
    %c0_115 = arith.constant 0 : index
    %244 = vector.load %arg7[%c1_113, %c0_114, %c0_115] : memref<2x32x32xf32, #tpu.memory_space<vmem>>, vector<1x32x32xf32>
    %245 = vector.shape_cast %244 : vector<1x32x32xf32> to vector<32x32xf32>
    %cst_116 = arith.constant dense<0.000000e+00> : vector<32x32xf32>
    %246 = tpu.matmul %229, %245, %cst_116 {dimension_numbers = #tpu.dot_dimension_numbers<[1], [0], [0], [1], [0, 0, 1, 1], [], []>} : vector<32x32xf32>, vector<32x32xf32>, vector<32x32xf32> -> vector<32x32xf32>
    %c1_117 = arith.constant 1 : index
    %c0_118 = arith.constant 0 : index
    %c0_119 = arith.constant 0 : index
    %247 = vector.load %arg10[%c1_117, %c0_118, %c0_119] : memref<2x1x32xf32, #tpu.memory_space<vmem>>, vector<1x1x32xf32>
    %248 = vector.shape_cast %247 : vector<1x1x32xf32> to vector<1x32xf32>
    %249 = vector.broadcast %248 : vector<1x32xf32> to vector<32x32xf32>
    %250 = arith.addf %246, %249 : vector<32x32xf32>
    %cst_120 = arith.constant 0.353553385 : f32
    %251 = vector.broadcast %cst_120 : f32 to vector<32x32xf32>
    %252 = arith.mulf %236, %251 : vector<32x32xf32>
    %253 = vector.broadcast %36 : vector<1x32xf32> to vector<32x32xf32>
    %254 = arith.mulf %243, %253 : vector<32x32xf32>
    %cst_121 = arith.constant dense<0.000000e+00> : vector<32x32xf32>
    %255 = tpu.matmul %252, %254, %cst_121 {dimension_numbers = #tpu.dot_dimension_numbers<[1], [1], [0], [0], [0, 0, 1, 0], [], []>} : vector<32x32xf32>, vector<32x32xf32>, vector<32x32xf32> -> vector<32x32xf32>
    %256 = arith.addf %255, %58 : vector<32x32xf32>
    %cst_122 = arith.constant dense<0xFF800000> : vector<32xf32>
    %257 = vector.multi_reduction <maximumf>, %256, %cst_122 [1] : vector<32x32xf32> to vector<32xf32>
    %258 = vector.shape_cast %257 : vector<32xf32> to vector<32x1xf32>
    %259 = vector.broadcast %258 : vector<32x1xf32> to vector<32x32xf32>
    %260 = arith.subf %256, %259 : vector<32x32xf32>
    %261 = math.exp %260 : vector<32x32xf32>
    %cst_123 = arith.constant dense<0.000000e+00> : vector<32xf32>
    %262 = vector.multi_reduction <add>, %261, %cst_123 [1] : vector<32x32xf32> to vector<32xf32>
    %263 = vector.shape_cast %262 : vector<32xf32> to vector<32x1xf32>
    %264 = tpu.reciprocal %263 {approx = true} : vector<32x1xf32> -> vector<32x1xf32>
    %265 = vector.broadcast %264 : vector<32x1xf32> to vector<32x32xf32>
    %266 = arith.mulf %261, %265 : vector<32x32xf32>
    %267 = vector.broadcast %36 : vector<1x32xf32> to vector<32x32xf32>
    %268 = arith.mulf %250, %267 : vector<32x32xf32>
    %cst_124 = arith.constant dense<0.000000e+00> : vector<32x32xf32>
    %269 = tpu.matmul %266, %268, %cst_124 {dimension_numbers = #tpu.dot_dimension_numbers<[1], [0], [0], [1], [0, 0, 1, 1], [], []>} : vector<32x32xf32>, vector<32x32xf32>, vector<32x32xf32> -> vector<32x32xf32>
    %270 = vector.broadcast %43 : vector<1x32xf32> to vector<32x32xf32>
    %271 = arith.mulf %243, %270 : vector<32x32xf32>
    %cst_125 = arith.constant dense<0.000000e+00> : vector<32x32xf32>
    %272 = tpu.matmul %252, %271, %cst_125 {dimension_numbers = #tpu.dot_dimension_numbers<[1], [1], [0], [0], [0, 0, 1, 0], [], []>} : vector<32x32xf32>, vector<32x32xf32>, vector<32x32xf32> -> vector<32x32xf32>
    %273 = arith.addf %272, %58 : vector<32x32xf32>
    %cst_126 = arith.constant dense<0xFF800000> : vector<32xf32>
    %274 = vector.multi_reduction <maximumf>, %273, %cst_126 [1] : vector<32x32xf32> to vector<32xf32>
    %275 = vector.shape_cast %274 : vector<32xf32> to vector<32x1xf32>
    %276 = vector.broadcast %275 : vector<32x1xf32> to vector<32x32xf32>
    %277 = arith.subf %273, %276 : vector<32x32xf32>
    %278 = math.exp %277 : vector<32x32xf32>
    %cst_127 = arith.constant dense<0.000000e+00> : vector<32xf32>
    %279 = vector.multi_reduction <add>, %278, %cst_127 [1] : vector<32x32xf32> to vector<32xf32>
    %280 = vector.shape_cast %279 : vector<32xf32> to vector<32x1xf32>
    %281 = tpu.reciprocal %280 {approx = true} : vector<32x1xf32> -> vector<32x1xf32>
    %282 = vector.broadcast %281 : vector<32x1xf32> to vector<32x32xf32>
    %283 = arith.mulf %278, %282 : vector<32x32xf32>
    %284 = vector.broadcast %43 : vector<1x32xf32> to vector<32x32xf32>
    %285 = arith.mulf %250, %284 : vector<32x32xf32>
    %cst_128 = arith.constant dense<0.000000e+00> : vector<32x32xf32>
    %286 = tpu.matmul %283, %285, %cst_128 {dimension_numbers = #tpu.dot_dimension_numbers<[1], [0], [0], [1], [0, 0, 1, 1], [], []>} : vector<32x32xf32>, vector<32x32xf32>, vector<32x32xf32> -> vector<32x32xf32>
    %287 = arith.addf %269, %286 : vector<32x32xf32>
    %288 = vector.broadcast %50 : vector<1x32xf32> to vector<32x32xf32>
    %289 = arith.mulf %243, %288 : vector<32x32xf32>
    %cst_129 = arith.constant dense<0.000000e+00> : vector<32x32xf32>
    %290 = tpu.matmul %252, %289, %cst_129 {dimension_numbers = #tpu.dot_dimension_numbers<[1], [1], [0], [0], [0, 0, 1, 0], [], []>} : vector<32x32xf32>, vector<32x32xf32>, vector<32x32xf32> -> vector<32x32xf32>
    %291 = arith.addf %290, %58 : vector<32x32xf32>
    %cst_130 = arith.constant dense<0xFF800000> : vector<32xf32>
    %292 = vector.multi_reduction <maximumf>, %291, %cst_130 [1] : vector<32x32xf32> to vector<32xf32>
    %293 = vector.shape_cast %292 : vector<32xf32> to vector<32x1xf32>
    %294 = vector.broadcast %293 : vector<32x1xf32> to vector<32x32xf32>
    %295 = arith.subf %291, %294 : vector<32x32xf32>
    %296 = math.exp %295 : vector<32x32xf32>
    %cst_131 = arith.constant dense<0.000000e+00> : vector<32xf32>
    %297 = vector.multi_reduction <add>, %296, %cst_131 [1] : vector<32x32xf32> to vector<32xf32>
    %298 = vector.shape_cast %297 : vector<32xf32> to vector<32x1xf32>
    %299 = tpu.reciprocal %298 {approx = true} : vector<32x1xf32> -> vector<32x1xf32>
    %300 = vector.broadcast %299 : vector<32x1xf32> to vector<32x32xf32>
    %301 = arith.mulf %296, %300 : vector<32x32xf32>
    %302 = vector.broadcast %50 : vector<1x32xf32> to vector<32x32xf32>
    %303 = arith.mulf %250, %302 : vector<32x32xf32>
    %cst_132 = arith.constant dense<0.000000e+00> : vector<32x32xf32>
    %304 = tpu.matmul %301, %303, %cst_132 {dimension_numbers = #tpu.dot_dimension_numbers<[1], [0], [0], [1], [0, 0, 1, 1], [], []>} : vector<32x32xf32>, vector<32x32xf32>, vector<32x32xf32> -> vector<32x32xf32>
    %305 = arith.addf %287, %304 : vector<32x32xf32>
    %306 = vector.broadcast %57 : vector<1x32xf32> to vector<32x32xf32>
    %307 = arith.mulf %243, %306 : vector<32x32xf32>
    %cst_133 = arith.constant dense<0.000000e+00> : vector<32x32xf32>
    %308 = tpu.matmul %252, %307, %cst_133 {dimension_numbers = #tpu.dot_dimension_numbers<[1], [1], [0], [0], [0, 0, 1, 0], [], []>} : vector<32x32xf32>, vector<32x32xf32>, vector<32x32xf32> -> vector<32x32xf32>
    %309 = arith.addf %308, %58 : vector<32x32xf32>
    %cst_134 = arith.constant dense<0xFF800000> : vector<32xf32>
    %310 = vector.multi_reduction <maximumf>, %309, %cst_134 [1] : vector<32x32xf32> to vector<32xf32>
    %311 = vector.shape_cast %310 : vector<32xf32> to vector<32x1xf32>
    %312 = vector.broadcast %311 : vector<32x1xf32> to vector<32x32xf32>
    %313 = arith.subf %309, %312 : vector<32x32xf32>
    %314 = math.exp %313 : vector<32x32xf32>
    %cst_135 = arith.constant dense<0.000000e+00> : vector<32xf32>
    %315 = vector.multi_reduction <add>, %314, %cst_135 [1] : vector<32x32xf32> to vector<32xf32>
    %316 = vector.shape_cast %315 : vector<32xf32> to vector<32x1xf32>
    %317 = tpu.reciprocal %316 {approx = true} : vector<32x1xf32> -> vector<32x1xf32>
    %318 = vector.broadcast %317 : vector<32x1xf32> to vector<32x32xf32>
    %319 = arith.mulf %314, %318 : vector<32x32xf32>
    %320 = vector.broadcast %57 : vector<1x32xf32> to vector<32x32xf32>
    %321 = arith.mulf %250, %320 : vector<32x32xf32>
    %cst_136 = arith.constant dense<0.000000e+00> : vector<32x32xf32>
    %322 = tpu.matmul %319, %321, %cst_136 {dimension_numbers = #tpu.dot_dimension_numbers<[1], [0], [0], [1], [0, 0, 1, 1], [], []>} : vector<32x32xf32>, vector<32x32xf32>, vector<32x32xf32> -> vector<32x32xf32>
    %323 = arith.addf %305, %322 : vector<32x32xf32>
    %c1_137 = arith.constant 1 : index
    %c0_138 = arith.constant 0 : index
    %c0_139 = arith.constant 0 : index
    %324 = vector.load %arg11[%c1_137, %c0_138, %c0_139] : memref<2x32x32xf32, #tpu.memory_space<vmem>>, vector<1x32x32xf32>
    %325 = vector.shape_cast %324 : vector<1x32x32xf32> to vector<32x32xf32>
    %cst_140 = arith.constant dense<0.000000e+00> : vector<32x32xf32>
    %326 = tpu.matmul %323, %325, %cst_140 {dimension_numbers = #tpu.dot_dimension_numbers<[1], [0], [0], [1], [0, 0, 1, 1], [], []>} : vector<32x32xf32>, vector<32x32xf32>, vector<32x32xf32> -> vector<32x32xf32>
    %c1_141 = arith.constant 1 : index
    %c0_142 = arith.constant 0 : index
    %c0_143 = arith.constant 0 : index
    %327 = vector.load %arg12[%c1_141, %c0_142, %c0_143] : memref<2x1x32xf32, #tpu.memory_space<vmem>>, vector<1x1x32xf32>
    %328 = vector.shape_cast %327 : vector<1x1x32xf32> to vector<1x32xf32>
    %329 = vector.broadcast %328 : vector<1x32xf32> to vector<32x32xf32>
    %330 = arith.addf %326, %329 : vector<32x32xf32>
    %331 = arith.addf %229, %330 : vector<32x32xf32>
    %c1_144 = arith.constant 1 : index
    %c0_145 = arith.constant 0 : index
    %c0_146 = arith.constant 0 : index
    %332 = vector.load %arg13[%c1_144, %c0_145, %c0_146] : memref<2x1x32xf32, #tpu.memory_space<vmem>>, vector<1x1x32xf32>
    %333 = vector.shape_cast %332 : vector<1x1x32xf32> to vector<1x32xf32>
    %c1_147 = arith.constant 1 : index
    %c0_148 = arith.constant 0 : index
    %c0_149 = arith.constant 0 : index
    %334 = vector.load %arg14[%c1_147, %c0_148, %c0_149] : memref<2x1x32xf32, #tpu.memory_space<vmem>>, vector<1x1x32xf32>
    %335 = vector.shape_cast %334 : vector<1x1x32xf32> to vector<1x32xf32>
    %cst_150 = arith.constant dense<0.000000e+00> : vector<32xf32>
    %336 = vector.multi_reduction <add>, %331, %cst_150 [1] : vector<32x32xf32> to vector<32xf32>
    %337 = vector.shape_cast %336 : vector<32xf32> to vector<32x1xf32>
    %cst_151 = arith.constant 3.200000e+01 : f32
    %338 = vector.broadcast %cst_151 : f32 to vector<32x1xf32>
    %339 = arith.divf %337, %338 : vector<32x1xf32>
    %340 = vector.broadcast %339 : vector<32x1xf32> to vector<32x32xf32>
    %341 = arith.subf %331, %340 : vector<32x32xf32>
    %342 = arith.mulf %341, %341 : vector<32x32xf32>
    %cst_152 = arith.constant dense<0.000000e+00> : vector<32xf32>
    %343 = vector.multi_reduction <add>, %342, %cst_152 [1] : vector<32x32xf32> to vector<32xf32>
    %344 = vector.shape_cast %343 : vector<32xf32> to vector<32x1xf32>
    %cst_153 = arith.constant 3.200000e+01 : f32
    %345 = vector.broadcast %cst_153 : f32 to vector<32x1xf32>
    %346 = arith.divf %344, %345 : vector<32x1xf32>
    %347 = vector.broadcast %339 : vector<32x1xf32> to vector<32x32xf32>
    %348 = arith.subf %331, %347 : vector<32x32xf32>
    %cst_154 = arith.constant 9.99999974E-6 : f32
    %349 = vector.broadcast %cst_154 : f32 to vector<32x1xf32>
    %350 = arith.addf %346, %349 : vector<32x1xf32>
    %351 = math.rsqrt %350 : vector<32x1xf32>
    %352 = vector.broadcast %351 : vector<32x1xf32> to vector<32x32xf32>
    %353 = arith.mulf %348, %352 : vector<32x32xf32>
    %354 = vector.broadcast %333 : vector<1x32xf32> to vector<32x32xf32>
    %355 = arith.mulf %353, %354 : vector<32x32xf32>
    %356 = vector.broadcast %335 : vector<1x32xf32> to vector<32x32xf32>
    %357 = arith.addf %355, %356 : vector<32x32xf32>
    %c1_155 = arith.constant 1 : index
    %c0_156 = arith.constant 0 : index
    %c0_157 = arith.constant 0 : index
    %358 = vector.load %arg15[%c1_155, %c0_156, %c0_157] : memref<2x32x64xf32, #tpu.memory_space<vmem>>, vector<1x32x64xf32>
    %359 = vector.shape_cast %358 : vector<1x32x64xf32> to vector<32x64xf32>
    %cst_158 = arith.constant dense<0.000000e+00> : vector<32x64xf32>
    %360 = tpu.matmul %357, %359, %cst_158 {dimension_numbers = #tpu.dot_dimension_numbers<[1], [0], [0], [1], [0, 0, 1, 1], [], []>} : vector<32x32xf32>, vector<32x64xf32>, vector<32x64xf32> -> vector<32x64xf32>
    %c1_159 = arith.constant 1 : index
    %c0_160 = arith.constant 0 : index
    %c0_161 = arith.constant 0 : index
    %361 = vector.load %arg16[%c1_159, %c0_160, %c0_161] : memref<2x1x64xf32, #tpu.memory_space<vmem>>, vector<1x1x64xf32>
    %362 = vector.shape_cast %361 : vector<1x1x64xf32> to vector<1x64xf32>
    %363 = vector.broadcast %362 : vector<1x64xf32> to vector<32x64xf32>
    %364 = arith.addf %360, %363 : vector<32x64xf32>
    %cst_162 = arith.constant 0.000000e+00 : f32
    %365 = vector.broadcast %cst_162 : f32 to vector<32x64xf32>
    %366 = arith.maximumf %364, %365 : vector<32x64xf32>
    %c1_163 = arith.constant 1 : index
    %c0_164 = arith.constant 0 : index
    %c0_165 = arith.constant 0 : index
    %367 = vector.load %arg17[%c1_163, %c0_164, %c0_165] : memref<2x64x32xf32, #tpu.memory_space<vmem>>, vector<1x64x32xf32>
    %368 = vector.shape_cast %367 : vector<1x64x32xf32> to vector<64x32xf32>
    %cst_166 = arith.constant dense<0.000000e+00> : vector<32x32xf32>
    %369 = tpu.matmul %366, %368, %cst_166 {dimension_numbers = #tpu.dot_dimension_numbers<[1], [0], [0], [1], [0, 0, 1, 1], [], []>} : vector<32x64xf32>, vector<64x32xf32>, vector<32x32xf32> -> vector<32x32xf32>
    %c1_167 = arith.constant 1 : index
    %c0_168 = arith.constant 0 : index
    %c0_169 = arith.constant 0 : index
    %370 = vector.load %arg18[%c1_167, %c0_168, %c0_169] : memref<2x1x32xf32, #tpu.memory_space<vmem>>, vector<1x1x32xf32>
    %371 = vector.shape_cast %370 : vector<1x1x32xf32> to vector<1x32xf32>
    %372 = vector.broadcast %371 : vector<1x32xf32> to vector<32x32xf32>
    %373 = arith.addf %369, %372 : vector<32x32xf32>
    %374 = arith.addf %357, %373 : vector<32x32xf32>
    %c1_170 = arith.constant 1 : index
    %c0_171 = arith.constant 0 : index
    %c0_172 = arith.constant 0 : index
    %375 = vector.load %arg19[%c1_170, %c0_171, %c0_172] : memref<2x1x32xf32, #tpu.memory_space<vmem>>, vector<1x1x32xf32>
    %376 = vector.shape_cast %375 : vector<1x1x32xf32> to vector<1x32xf32>
    %c1_173 = arith.constant 1 : index
    %c0_174 = arith.constant 0 : index
    %c0_175 = arith.constant 0 : index
    %377 = vector.load %arg20[%c1_173, %c0_174, %c0_175] : memref<2x1x32xf32, #tpu.memory_space<vmem>>, vector<1x1x32xf32>
    %378 = vector.shape_cast %377 : vector<1x1x32xf32> to vector<1x32xf32>
    %cst_176 = arith.constant dense<0.000000e+00> : vector<32xf32>
    %379 = vector.multi_reduction <add>, %374, %cst_176 [1] : vector<32x32xf32> to vector<32xf32>
    %380 = vector.shape_cast %379 : vector<32xf32> to vector<32x1xf32>
    %cst_177 = arith.constant 3.200000e+01 : f32
    %381 = vector.broadcast %cst_177 : f32 to vector<32x1xf32>
    %382 = arith.divf %380, %381 : vector<32x1xf32>
    %383 = vector.broadcast %382 : vector<32x1xf32> to vector<32x32xf32>
    %384 = arith.subf %374, %383 : vector<32x32xf32>
    %385 = arith.mulf %384, %384 : vector<32x32xf32>
    %cst_178 = arith.constant dense<0.000000e+00> : vector<32xf32>
    %386 = vector.multi_reduction <add>, %385, %cst_178 [1] : vector<32x32xf32> to vector<32xf32>
    %387 = vector.shape_cast %386 : vector<32xf32> to vector<32x1xf32>
    %cst_179 = arith.constant 3.200000e+01 : f32
    %388 = vector.broadcast %cst_179 : f32 to vector<32x1xf32>
    %389 = arith.divf %387, %388 : vector<32x1xf32>
    %390 = vector.broadcast %382 : vector<32x1xf32> to vector<32x32xf32>
    %391 = arith.subf %374, %390 : vector<32x32xf32>
    %cst_180 = arith.constant 9.99999974E-6 : f32
    %392 = vector.broadcast %cst_180 : f32 to vector<32x1xf32>
    %393 = arith.addf %389, %392 : vector<32x1xf32>
    %394 = math.rsqrt %393 : vector<32x1xf32>
    %395 = vector.broadcast %394 : vector<32x1xf32> to vector<32x32xf32>
    %396 = arith.mulf %391, %395 : vector<32x32xf32>
    %397 = vector.broadcast %376 : vector<1x32xf32> to vector<32x32xf32>
    %398 = arith.mulf %396, %397 : vector<32x32xf32>
    %399 = vector.broadcast %378 : vector<1x32xf32> to vector<32x32xf32>
    %400 = arith.addf %398, %399 : vector<32x32xf32>
    %401 = vector.extract_strided_slice %400 {offsets = [0, 0], sizes = [1, 32], strides = [1, 1]} : vector<32x32xf32> to vector<1x32xf32>
    %402 = vector.extract_strided_slice %400 {offsets = [16, 0], sizes = [1, 32], strides = [1, 1]} : vector<32x32xf32> to vector<1x32xf32>
    %403 = tpu.concatenate %401, %402 in 0 : vector<1x32xf32>, vector<1x32xf32> -> vector<2x32xf32>
    %c0_181 = arith.constant 0 : index
    %c0_182 = arith.constant 0 : index
    %404 = vector.load %arg21[%c0_181, %c0_182] : memref<32x5xf32, #tpu.memory_space<vmem>>, vector<32x5xf32>
    %cst_183 = arith.constant dense<0.000000e+00> : vector<2x5xf32>
    %405 = tpu.matmul %403, %404, %cst_183 {dimension_numbers = #tpu.dot_dimension_numbers<[1], [0], [0], [1], [0, 0, 1, 1], [], []>} : vector<2x32xf32>, vector<32x5xf32>, vector<2x5xf32> -> vector<2x5xf32>
    %c0_184 = arith.constant 0 : index
    %c0_185 = arith.constant 0 : index
    %406 = vector.load %arg22[%c0_184, %c0_185] : memref<1x5xf32, #tpu.memory_space<vmem>>, vector<1x5xf32>
    %407 = vector.broadcast %406 : vector<1x5xf32> to vector<2x5xf32>
    %408 = arith.addf %405, %407 : vector<2x5xf32>
    %c0_186 = arith.constant 0 : index
    %c0_187 = arith.constant 0 : index
    %409 = vector.load %arg23[%c0_186, %c0_187] : memref<2x5xf32, #tpu.memory_space<vmem>>, vector<2x5xf32>
    tpu.vector_store %arg23[%c0_186, %c0_187], %408 {strides = array<i32>} : memref<2x5xf32, #tpu.memory_space<vmem>>, vector<2x5xf32>,
    return
  }
}

</mosaic_0001>

<llo_original>
// kernel: transformer_forward.1
$region0: #{transformer_forward.1}
  #allocation0 [shape = 'u32[]', space=smem, size = 0x4, offset = 0x4, fixed_abs, tag = 'smem constant byte address 0x4 - core index']
  #allocation1 [shape = 'u32[144,128]{1,0:T(1,128)}', space=vmem, size = 0x12000, scoped, tag = 'internal scratch']
  %s0 = inlined_call_operand.vmem [shape: f32[32,16], index: 0, kind: input, shape index: {}]
  %s1 = inlined_call_operand.vmem [shape: f32[32,32], index: 1, kind: input, shape index: {}]
  %s2 = inlined_call_operand.vmem [shape: f32[16,32], index: 2, kind: input, shape index: {}]
  %s3 = inlined_call_operand.vmem [shape: f32[1,32], index: 3, kind: input, shape index: {}]
  %s4 = inlined_call_operand.vmem [shape: f32[1,32], index: 4, kind: input, shape index: {}]
  %s5 = inlined_call_operand.vmem [shape: f32[2,32,32], index: 5, kind: input, shape index: {}]
  %s6 = inlined_call_operand.vmem [shape: f32[2,32,32], index: 6, kind: input, shape index: {}]
  %s7 = inlined_call_operand.vmem [shape: f32[2,32,32], index: 7, kind: input, shape index: {}]
  %s8 = inlined_call_operand.vmem [shape: f32[2,1,32], index: 8, kind: input, shape index: {}]
  %s9 = inlined_call_operand.vmem [shape: f32[2,1,32], index: 9, kind: input, shape index: {}]
  %s10 = inlined_call_operand.vmem [shape: f32[2,1,32], index: 10, kind: input, shape index: {}]
  %s11 = inlined_call_operand.vmem [shape: f32[2,32,32], index: 11, kind: input, shape index: {}]
  %s12 = inlined_call_operand.vmem [shape: f32[2,1,32], index: 12, kind: input, shape index: {}]
  %s13 = inlined_call_operand.vmem [shape: f32[2,1,32], index: 13, kind: input, shape index: {}]
  %s14 = inlined_call_operand.vmem [shape: f32[2,1,32], index: 14, kind: input, shape index: {}]
  %s15 = inlined_call_operand.vmem [shape: f32[2,32,64], index: 15, kind: input, shape index: {}]
  %s16 = inlined_call_operand.vmem [shape: f32[2,1,64], index: 16, kind: input, shape index: {}]
  %s17 = inlined_call_operand.vmem [shape: f32[2,64,32], index: 17, kind: input, shape index: {}]
  %s18 = inlined_call_operand.vmem [shape: f32[2,1,32], index: 18, kind: input, shape index: {}]
  %s19 = inlined_call_operand.vmem [shape: f32[2,1,32], index: 19, kind: input, shape index: {}]
  %s20 = inlined_call_operand.vmem [shape: f32[2,1,32], index: 20, kind: input, shape index: {}]
  %s21 = inlined_call_operand.vmem [shape: f32[32,5], index: 21, kind: input, shape index: {}]
  %s22 = inlined_call_operand.vmem [shape: f32[1,5], index: 22, kind: input, shape index: {}]
  %s23 = inlined_call_operand.hbm [shape: f32[2,5], index: 23, kind: output, shape index: {}]
  %s24 = sld [smem:[#allocation0]]
  $region102: #{transformer_forward.1} parent=0
    _
  %s26 = ssub.s32 1, %s24
  %s27 = scalar_select 0, %s26, %s24
  $region1: #{transformer_forward.1} parent=0
    #allocation2 [shape = 'u8[1024]{0}', space=vmem, size = 0x400, scoped, tag = 'output window, operand 0, single buffered']
    #allocation3 [shape = 's32[1]{0}', space=sflag, size = 0x4, scoped, tag = 'scoped memory for transformer_forward.1']
    %28 = vsyncpa [#allocation3], 0
    // Predicated region
    $region2: #{transformer_forward.1} parent=1 // pred_check
      _
    $region3: #{transformer_forward.1} parent=1 // pred_check_branch
      %30 = sbr.rel (0) target = $region5
    $region4: #{transformer_forward.1} parent=1 // pred_region
      _
    $region5: #{transformer_forward.1} parent=1 // pred_fallthru
      _
    // Predicated region
    $region6: #{transformer_forward.1} parent=1 // pred_check
      _
    $region7: #{transformer_forward.1} parent=1 // pred_check_branch
      %32 = sbr.rel (0) target = $region9
    $region8: #{transformer_forward.1} parent=1 // pred_region
      _
    $region9: #{transformer_forward.1} parent=1 // pred_fallthru
      _
    // Predicated region
    $region10: #{transformer_forward.1} parent=1 // pred_check
      _
    $region11: #{transformer_forward.1} parent=1 // pred_check_branch
      %34 = sbr.rel (0) target = $region13
    $region12: #{transformer_forward.1} parent=1 // pred_region
      _
    $region13: #{transformer_forward.1} parent=1 // pred_fallthru
      _
    // Predicated region
    $region14: #{transformer_forward.1} parent=1 // pred_check
      _
    $region15: #{transformer_forward.1} parent=1 // pred_check_branch
      %36 = sbr.rel (0) target = $region17
    $region16: #{transformer_forward.1} parent=1 // pred_region
      _
    $region17: #{transformer_forward.1} parent=1 // pred_fallthru
      _
    // Predicated region
    $region18: #{transformer_forward.1} parent=1 // pred_check
      _
    $region19: #{transformer_forward.1} parent=1 // pred_check_branch
      %38 = sbr.rel (0) target = $region21
    $region20: #{transformer_forward.1} parent=1 // pred_region
      _
    $region21: #{transformer_forward.1} parent=1 // pred_fallthru
      _
    // Predicated region
    $region22: #{transformer_forward.1} parent=1 // pred_check
      _
    $region23: #{transformer_forward.1} parent=1 // pred_check_branch
      %40 = sbr.rel (0) target = $region25
    $region24: #{transformer_forward.1} parent=1 // pred_region
      _
    $region25: #{transformer_forward.1} parent=1 // pred_fallthru
      _
    // Predicated region
    $region26: #{transformer_forward.1} parent=1 // pred_check
      _
    $region27: #{transformer_forward.1} parent=1 // pred_check_branch
      %42 = sbr.rel (0) target = $region29
    $region28: #{transformer_forward.1} parent=1 // pred_region
      _
    $region29: #{transformer_forward.1} parent=1 // pred_fallthru
      _
    // Predicated region
    $region30: #{transformer_forward.1} parent=1 // pred_check
      _
    $region31: #{transformer_forward.1} parent=1 // pred_check_branch
      %44 = sbr.rel (0) target = $region33
    $region32: #{transformer_forward.1} parent=1 // pred_region
      _
    $region33: #{transformer_forward.1} parent=1 // pred_fallthru
      _
    // Predicated region
    $region34: #{transformer_forward.1} parent=1 // pred_check
      _
    $region35: #{transformer_forward.1} parent=1 // pred_check_branch
      %46 = sbr.rel (0) target = $region37
    $region36: #{transformer_forward.1} parent=1 // pred_region
      _
    $region37: #{transformer_forward.1} parent=1 // pred_fallthru
      _
    // Predicated region
    $region38: #{transformer_forward.1} parent=1 // pred_check
      _
    $region39: #{transformer_forward.1} parent=1 // pred_check_branch
      %48 = sbr.rel (0) target = $region41
    $region40: #{transformer_forward.1} parent=1 // pred_region
      _
    $region41: #{transformer_forward.1} parent=1 // pred_fallthru
      _
    // Predicated region
    $region42: #{transformer_forward.1} parent=1 // pred_check
      _
    $region43: #{transformer_forward.1} parent=1 // pred_check_branch
      %50 = sbr.rel (0) target = $region45
    $region44: #{transformer_forward.1} parent=1 // pred_region
      _
    $region45: #{transformer_forward.1} parent=1 // pred_fallthru
      _
    // Predicated region
    $region46: #{transformer_forward.1} parent=1 // pred_check
      _
    $region47: #{transformer_forward.1} parent=1 // pred_check_branch
      %52 = sbr.rel (0) target = $region49
    $region48: #{transformer_forward.1} parent=1 // pred_region
      _
    $region49: #{transformer_forward.1} parent=1 // pred_fallthru
      _
    // Predicated region
    $region50: #{transformer_forward.1} parent=1 // pred_check
      _
    $region51: #{transformer_forward.1} parent=1 // pred_check_branch
      %54 = sbr.rel (0) target = $region53
    $region52: #{transformer_forward.1} parent=1 // pred_region
      _
    $region53: #{transformer_forward.1} parent=1 // pred_fallthru
      _
    // Predicated region
    $region54: #{transformer_forward.1} parent=1 // pred_check
      _
    $region55: #{transformer_forward.1} parent=1 // pred_check_branch
      %56 = sbr.rel (0) target = $region57
    $region56: #{transformer_forward.1} parent=1 // pred_region
      _
    $region57: #{transformer_forward.1} parent=1 // pred_fallthru
      _
    // Predicated region
    $region58: #{transformer_forward.1} parent=1 // pred_check
      _
    $region59: #{transformer_forward.1} parent=1 // pred_check_branch
      %58 = sbr.rel (0) target = $region61
    $region60: #{transformer_forward.1} parent=1 // pred_region
      _
    $region61: #{transformer_forward.1} parent=1 // pred_fallthru
      _
    // Predicated region
    $region62: #{transformer_forward.1} parent=1 // pred_check
      _
    $region63: #{transformer_forward.1} parent=1 // pred_check_branch
      %60 = sbr.rel (0) target = $region65
    $region64: #{transformer_forward.1} parent=1 // pred_region
      _
    $region65: #{transformer_forward.1} parent=1 // pred_fallthru
      _
    // Predicated region
    $region66: #{transformer_forward.1} parent=1 // pred_check
      _
    $region67: #{transformer_forward.1} parent=1 // pred_check_branch
      %62 = sbr.rel (0) target = $region69
    $region68: #{transformer_forward.1} parent=1 // pred_region
      _
    $region69: #{transformer_forward.1} parent=1 // pred_fallthru
      _
    // Predicated region
    $region70: #{transformer_forward.1} parent=1 // pred_check
      _
    $region71: #{transformer_forward.1} parent=1 // pred_check_branch
      %64 = sbr.rel (0) target = $region73
    $region72: #{transformer_forward.1} parent=1 // pred_region
      _
    $region73: #{transformer_forward.1} parent=1 // pred_fallthru
      _
    // Predicated region
    $region74: #{transformer_forward.1} parent=1 // pred_check
      _
    $region75: #{transformer_forward.1} parent=1 // pred_check_branch
      %66 = sbr.rel (0) target = $region77
    $region76: #{transformer_forward.1} parent=1 // pred_region
      _
    $region77: #{transformer_forward.1} parent=1 // pred_fallthru
      _
    // Predicated region
    $region78: #{transformer_forward.1} parent=1 // pred_check
      _
    $region79: #{transformer_forward.1} parent=1 // pred_check_branch
      %68 = sbr.rel (0) target = $region81
    $region80: #{transformer_forward.1} parent=1 // pred_region
      _
    $region81: #{transformer_forward.1} parent=1 // pred_fallthru
      _
    // Predicated region
    $region82: #{transformer_forward.1} parent=1 // pred_check
      _
    $region83: #{transformer_forward.1} parent=1 // pred_check_branch
      %70 = sbr.rel (0) target = $region85
    $region84: #{transformer_forward.1} parent=1 // pred_region
      _
    $region85: #{transformer_forward.1} parent=1 // pred_fallthru
      _
    // Predicated region
    $region86: #{transformer_forward.1} parent=1 // pred_check
      _
    $region87: #{transformer_forward.1} parent=1 // pred_check_branch
      %72 = sbr.rel (0) target = $region89
    $region88: #{transformer_forward.1} parent=1 // pred_region
      _
    $region89: #{transformer_forward.1} parent=1 // pred_fallthru
      _
    // Predicated region
    $region90: #{transformer_forward.1} parent=1 // pred_check
      _
    $region91: #{transformer_forward.1} parent=1 // pred_check_branch
      %74 = sbr.rel (0) target = $region93
    $region92: #{transformer_forward.1} parent=1 // pred_region
      _
    $region93: #{transformer_forward.1} parent=1 // pred_fallthru
      _
    %v75 = vld [vmem:[%s0] sm:$0xff]
    %v76 = vld [vmem:[%s0 + $0x8] sm:$0xff]
    %v77 = vld [vmem:[%s0 + $0x10] sm:$0xff]
    %v78 = vld [vmem:[%s0 + $0x18] sm:$0xff]
    %v79 = vld [vmem:[%s2] sm:$0xff]
    %v80 = vld [vmem:[%s2 + $0x8] sm:$0xff]
    %v81 = vld [vmem:[%s3] sm:$0x1]
    %v83 = vlaneseq
    %v84 = vshrl.u32 %v83, 7
    %v85 = vsub.s32 0, %v84
    %v86 = vrot.slane %v81, %v85
    %vm88 = vcmask 130048
    %v90 = vsel %vm88, %v75, 0
    %v93 = vsel %vm88, %v76, 0
    %v96 = vsel %vm88, %v77, 0
    %v99 = vsel %vm88, %v78, 0
    %101 = vmatprep.subr.mxu0 0.0
    %102 = vmatpush1.msra.mxu0 %v79
    %103 = vmatprep.subr.mxu0 0.0
    %104 = vmatpush1.msra.mxu0 %v80
    %105 = vmatprep.subr.mxu0 0.0
    %106 = vmatpush1.msra.mxu0 0.0
    %107 = vmatprep.subr.mxu0 0.0
    %108 = vmatpush1.msra.mxu0 0.0
    %109 = vmatprep.subr.mxu0 0.0
    %110 = vmatpush1.msra.mxu0 0.0
    %111 = vmatprep.subr.mxu0 0.0
    %112 = vmatpush1.msra.mxu0 0.0
    %113 = vmatprep.subr.mxu0 0.0
    %114 = vmatpush1.msra.mxu0 0.0
    %115 = vmatprep.subr.mxu0 0.0
    %116 = vmatpush1.msra.mxu0 0.0
    %117 = vmatprep.subr.mxu0 0.0
    %118 = vmatpush1.msra.mxu0 0.0
    %119 = vmatprep.subr.mxu0 0.0
    %120 = vmatpush1.msra.mxu0 0.0
    %121 = vmatprep.subr.mxu0 0.0
    %122 = vmatpush1.msra.mxu0 0.0
    %123 = vmatprep.subr.mxu0 0.0
    %124 = vmatpush1.msra.mxu0 0.0
    %125 = vmatprep.subr.mxu0 0.0
    %126 = vmatpush1.msra.mxu0 0.0
    %127 = vmatprep.subr.mxu0 0.0
    %128 = vmatpush1.msra.mxu0 0.0
    %129 = vmatprep.subr.mxu0 0.0
    %130 = vmatpush1.msra.mxu0 0.0
    %131 = vmatprep.subr.mxu0 0.0
    %132 = vmatpush1.msra.mxu0 0.0
    %133 = vmatprep.subr.mxu0 0.0
    %134 = vmatpush1.msra.mxu0 0.0
    %135 = vmatprep.subr.mxu0 0.0
    %136 = vmatpush1.msra.mxu0 0.0
    %137 = vmatprep.subr.mxu0 0.0
    %138 = vmatpush1.msra.mxu0 0.0
    %139 = vmatprep.subr.mxu0 0.0
    %140 = vmatpush1.msra.mxu0 0.0
    %141 = vmatprep.subr.mxu0 0.0
    %142 = vmatpush1.msra.mxu0 0.0
    %143 = vmatprep.subr.mxu0 0.0
    %144 = vmatpush1.msra.mxu0 0.0
    %145 = vmatprep.subr.mxu0 0.0
    %146 = vmatpush1.msra.mxu0 0.0
    %147 = vmatprep.subr.mxu0 0.0
    %148 = vmatpush1.msra.mxu0 0.0
    %149 = vmatprep.subr.mxu0 0.0
    %150 = vmatpush1.msra.mxu0 0.0
    %151 = vmatprep.subr.mxu0 0.0
    %152 = vmatpush1.msra.mxu0 0.0
    %153 = vmatprep.subr.mxu0 0.0
    %154 = vmatpush1.msra.mxu0 0.0
    %155 = vmatprep.subr.mxu0 0.0
    %156 = vmatpush1.msra.mxu0 0.0
    %157 = vmatprep.subr.mxu0 0.0
    %158 = vmatpush1.msra.mxu0 0.0
    %159 = vmatprep.subr.mxu0 0.0
    %160 = vmatpush1.msra.mxu0 0.0
    %161 = vmatprep.subr.mxu0 0.0
    %162 = vmatpush1.msra.mxu0 0.0
    %163 = vmatprep.subr.mxu0 0.0
    %164 = vmatpush1.msra.mxu0 0.0
    %165 = vmatprep.mubr.f32.mxu0 0.0
    %166 = vmatmul.mubr.f32.gmra.mrb[0].mxu0 %v90
    %v167 = vpop.f32.mrb[0].mxu0
    %v168 = vadd.f32 %v86, %v167
    %v169 = vpop.f32.mrb[0].mxu0
    %170 = vmatprep.mubr.f32.mxu0 0.0
    %171 = vmatmul.mubr.f32.gmra.mrb[0].mxu0 %v93
    %v172 = vpop.f32.mrb[0].mxu0
    %v173 = vadd.f32 %v86, %v172
    %v174 = vpop.f32.mrb[0].mxu0
    %175 = vmatprep.mubr.f32.mxu0 0.0
    %176 = vmatmul.mubr.f32.gmra.mrb[0].mxu0 %v96
    %v177 = vpop.f32.mrb[0].mxu0
    %v178 = vadd.f32 %v86, %v177
    %v179 = vpop.f32.mrb[0].mxu0
    %180 = vmatprep.mubr.f32.mxu0 0.0
    %181 = vmatmul.mubr.f32.gmra.mrb[0].mxu0 %v99
    %v182 = vpop.f32.mrb[0].mxu0
    %v183 = vadd.f32 %v86, %v182
    %v184 = vpop.f32.mrb[0].mxu0
    %185 = vdwg.mxu0
    %v186 = vlaneseq
    %v187 = vshrl.u32 %v186, 7
    %v188 = vadd.s32 %v187, 8
    %v189 = vadd.s32 %v187, 16
    %v190 = vadd.s32 %v187, 24
    %vm191 = vcmp.lt.s32.totalorder %v187, 0
    %v192 = vsub.s32 0, %v187
    %v193 = vsel %vm191, %v192, %v187
    %v194 = vshrl.u32 %v193, 4
    %v195 = vand.u32 %v193, 15
    %v196 = vsub.s32 0, %v195
    %v197 = vsel %vm191, %v196, %v195
    %vm198 = vcmp.lt.s32.totalorder %v188, 0
    %v199 = vsub.s32 0, %v188
    %v200 = vsel %vm198, %v199, %v188
    %v201 = vshrl.u32 %v200, 4
    %v202 = vand.u32 %v200, 15
    %v203 = vsub.s32 0, %v202
    %v204 = vsel %vm198, %v203, %v202
    %vm205 = vcmp.lt.s32.totalorder %v189, 0
    %v206 = vsub.s32 0, %v189
    %v207 = vsel %vm205, %v206, %v189
    %v208 = vshrl.u32 %v207, 4
    %v209 = vand.u32 %v207, 15
    %v210 = vsub.s32 0, %v209
    %v211 = vsel %vm205, %v210, %v209
    %vm212 = vcmp.lt.s32.totalorder %v190, 0
    %v213 = vsub.s32 0, %v190
    %v214 = vsel %vm212, %v213, %v190
    %v215 = vshrl.u32 %v214, 4
    %v216 = vand.u32 %v214, 15
    %v217 = vsub.s32 0, %v216
    %v218 = vsel %vm212, %v217, %v216
    %vm219 = vcmp.ne.s32.totalorder %v197, 0
    %vm220 = vcmp.ne.s32.totalorder %v204, 0
    %vm221 = vcmp.ne.s32.totalorder %v211, 0
    %vm222 = vcmp.ne.s32.totalorder %v218, 0
    %vm223 = vcmp.lt.s32.totalorder %v197, 0
    %vm224 = vcmp.lt.s32.totalorder %v204, 0
    %vm225 = vcmp.lt.s32.totalorder %v211, 0
    %vm226 = vcmp.lt.s32.totalorder %v218, 0
    %vm227 = vmand %vm223, %vm219
    %vm228 = vmand %vm224, %vm220
    %vm229 = vmand %vm225, %vm221
    %vm230 = vmand %vm226, %vm222
    %v231 = vadd.s32 %v197, 16
    %v232 = vadd.s32 %v204, 16
    %v233 = vadd.s32 %v211, 16
    %v234 = vadd.s32 %v218, 16
    %v235 = vsel %vm227, %v231, %v197
    %v236 = vsel %vm228, %v232, %v204
    %v237 = vsel %vm229, %v233, %v211
    %v238 = vsel %vm230, %v234, %v218
    %vm239 = vcmp.eq.s32.totalorder %v235, 0
    %vm240 = vcmp.eq.s32.totalorder %v236, 0
    %vm241 = vcmp.eq.s32.totalorder %v237, 0
    %vm242 = vcmp.eq.s32.totalorder %v238, 0
    %v243 = vld [vmem:[%s4] sm:$0x1]
    %v245 = vlaneseq
    %v246 = vshrl.u32 %v245, 7
    %v247 = vsub.s32 0, %v246
    %v248 = vrot.slane %v243, %v247
    %v250 = vsel %vm239, %v248, %v168
    %v251 = vsel %vm240, %v248, %v173
    %v252 = vsel %vm241, %v248, %v178
    %v253 = vsel %vm242, %v248, %v183
    %v254 = vlaneseq
    %v255 = vand.u32 %v254, 127
    %vm256 = vcmp.ge.s32.totalorder %v255, 0
    %vm257 = vcmp.lt.s32.totalorder %v255, 8
    %vm258 = vmand %vm256, %vm257
    %v259 = vsel %vm258, 1, 0
    %v260 = vcvt.s32.f32 %v259
    %vm261 = vcmp.ge.s32.totalorder %v255, 8
    %vm262 = vcmp.lt.s32.totalorder %v255, 16
    %vm263 = vmand %vm261, %vm262
    %v264 = vsel %vm263, 1, 0
    %v265 = vcvt.s32.f32 %v264
    %vm266 = vcmp.ge.s32.totalorder %v255, 16
    %vm267 = vcmp.lt.s32.totalorder %v255, 24
    %vm268 = vmand %vm266, %vm267
    %v269 = vsel %vm268, 1, 0
    %v270 = vcvt.s32.f32 %v269
    %vm271 = vcmp.ge.s32.totalorder %v255, 24
    %vm272 = vcmp.lt.s32.totalorder %v255, 32
    %vm273 = vmand %vm271, %vm272
    %v274 = vsel %vm273, 1, 0
    %v275 = vcvt.s32.f32 %v274
    %v276 = vld [vmem:[%s1] sm:$0xff]
    %v277 = vld [vmem:[%s1 + $0x8] sm:$0xff]
    %v278 = vld [vmem:[%s1 + $0x10] sm:$0xff]
    %v279 = vld [vmem:[%s1 + $0x18] sm:$0xff]
    %v280 = vld [vmem:[%s5] sm:$0xff]
    %v281 = vld [vmem:[%s5 + $0x8] sm:$0xff]
    %v282 = vld [vmem:[%s5 + $0x10] sm:$0xff]
    %v283 = vld [vmem:[%s5 + $0x18] sm:$0xff]
    %v284 = vld [vmem:[%s8] sm:$0x1]
    %v286 = vlaneseq
    %v287 = vshrl.u32 %v286, 7
    %v288 = vsub.s32 0, %v287
    %v289 = vrot.slane %v284, %v288
    %vm291 = vcmask 261120
    %v293 = vsel %vm291, %v250, 0
    %v296 = vsel %vm291, %v251, 0
    %v299 = vsel %vm291, %v252, 0
    %v302 = vsel %vm291, %v253, 0
    %304 = vmatprep.subr.mxu0 0.0
    %305 = vmatpush1.msra.mxu0 %v280
    %306 = vmatprep.subr.mxu0 0.0
    %307 = vmatpush1.msra.mxu0 %v281
    %308 = vmatprep.subr.mxu0 0.0
    %309 = vmatpush1.msra.mxu0 %v282
    %310 = vmatprep.subr.mxu0 0.0
    %311 = vmatpush1.msra.mxu0 %v283
    %312 = vmatprep.subr.mxu0 0.0
    %313 = vmatpush1.msra.mxu0 0.0
    %314 = vmatprep.subr.mxu0 0.0
    %315 = vmatpush1.msra.mxu0 0.0
    %316 = vmatprep.subr.mxu0 0.0
    %317 = vmatpush1.msra.mxu0 0.0
    %318 = vmatprep.subr.mxu0 0.0
    %319 = vmatpush1.msra.mxu0 0.0
    %320 = vmatprep.subr.mxu0 0.0
    %321 = vmatpush1.msra.mxu0 0.0
    %322 = vmatprep.subr.mxu0 0.0
    %323 = vmatpush1.msra.mxu0 0.0
    %324 = vmatprep.subr.mxu0 0.0
    %325 = vmatpush1.msra.mxu0 0.0
    %326 = vmatprep.subr.mxu0 0.0
    %327 = vmatpush1.msra.mxu0 0.0
    %328 = vmatprep.subr.mxu0 0.0
    %329 = vmatpush1.msra.mxu0 0.0
    %330 = vmatprep.subr.mxu0 0.0
    %331 = vmatpush1.msra.mxu0 0.0
    %332 = vmatprep.subr.mxu0 0.0
    %333 = vmatpush1.msra.mxu0 0.0
    %334 = vmatprep.subr.mxu0 0.0
    %335 = vmatpush1.msra.mxu0 0.0
    %336 = vmatprep.subr.mxu0 0.0
    %337 = vmatpush1.msra.mxu0 0.0
    %338 = vmatprep.subr.mxu0 0.0
    %339 = vmatpush1.msra.mxu0 0.0
    %340 = vmatprep.subr.mxu0 0.0
    %341 = vmatpush1.msra.mxu0 0.0
    %342 = vmatprep.subr.mxu0 0.0
    %343 = vmatpush1.msra.mxu0 0.0
    %344 = vmatprep.subr.mxu0 0.0
    %345 = vmatpush1.msra.mxu0 0.0
    %346 = vmatprep.subr.mxu0 0.0
    %347 = vmatpush1.msra.mxu0 0.0
    %348 = vmatprep.subr.mxu0 0.0
    %349 = vmatpush1.msra.mxu0 0.0
    %350 = vmatprep.subr.mxu0 0.0
    %351 = vmatpush1.msra.mxu0 0.0
    %352 = vmatprep.subr.mxu0 0.0
    %353 = vmatpush1.msra.mxu0 0.0
    %354 = vmatprep.subr.mxu0 0.0
    %355 = vmatpush1.msra.mxu0 0.0
    %356 = vmatprep.subr.mxu0 0.0
    %357 = vmatpush1.msra.mxu0 0.0
    %358 = vmatprep.subr.mxu0 0.0
    %359 = vmatpush1.msra.mxu0 0.0
    %360 = vmatprep.subr.mxu0 0.0
    %361 = vmatpush1.msra.mxu0 0.0
    %362 = vmatprep.subr.mxu0 0.0
    %363 = vmatpush1.msra.mxu0 0.0
    %364 = vmatprep.subr.mxu0 0.0
    %365 = vmatpush1.msra.mxu0 0.0
    %366 = vmatprep.subr.mxu0 0.0
    %367 = vmatpush1.msra.mxu0 0.0
    %368 = vmatprep.mubr.f32.mxu0 0.0
    %369 = vmatmul.mubr.f32.gmra.mrb[0].mxu0 %v293
    %v370 = vpop.f32.mrb[0].mxu0
    %v371 = vadd.f32 %v289, %v370
    %v372 = vpop.f32.mrb[0].mxu0
    %373 = vmatprep.mubr.f32.mxu0 0.0
    %374 = vmatmul.mubr.f32.gmra.mrb[0].mxu0 %v296
    %v375 = vpop.f32.mrb[0].mxu0
    %v376 = vadd.f32 %v289, %v375
    %v377 = vpop.f32.mrb[0].mxu0
    %378 = vmatprep.mubr.f32.mxu0 0.0
    %379 = vmatmul.mubr.f32.gmra.mrb[0].mxu0 %v299
    %v380 = vpop.f32.mrb[0].mxu0
    %v381 = vadd.f32 %v289, %v380
    %v382 = vpop.f32.mrb[0].mxu0
    %383 = vmatprep.mubr.f32.mxu0 0.0
    %384 = vmatmul.mubr.f32.gmra.mrb[0].mxu0 %v302
    %v385 = vpop.f32.mrb[0].mxu0
    %v386 = vadd.f32 %v289, %v385
    %v387 = vpop.f32.mrb[0].mxu0
    %388 = vdwg.mxu0
    %v389 = vld [vmem:[%s6] sm:$0xff]
    %v390 = vld [vmem:[%s6 + $0x8] sm:$0xff]
    %v391 = vld [vmem:[%s6 + $0x10] sm:$0xff]
    %v392 = vld [vmem:[%s6 + $0x18] sm:$0xff]
    %v393 = vld [vmem:[%s9] sm:$0x1]
    %v395 = vlaneseq
    %v396 = vshrl.u32 %v395, 7
    %v397 = vsub.s32 0, %v396
    %v398 = vrot.slane %v393, %v397
    %400 = vmatprep.subr.mxu0 0.0
    %401 = vmatpush1.msra.mxu0 %v389
    %402 = vmatprep.subr.mxu0 0.0
    %403 = vmatpush1.msra.mxu0 %v390
    %404 = vmatprep.subr.mxu0 0.0
    %405 = vmatpush1.msra.mxu0 %v391
    %406 = vmatprep.subr.mxu0 0.0
    %407 = vmatpush1.msra.mxu0 %v392
    %408 = vmatprep.subr.mxu0 0.0
    %409 = vmatpush1.msra.mxu0 0.0
    %410 = vmatprep.subr.mxu0 0.0
    %411 = vmatpush1.msra.mxu0 0.0
    %412 = vmatprep.subr.mxu0 0.0
    %413 = vmatpush1.msra.mxu0 0.0
    %414 = vmatprep.subr.mxu0 0.0
    %415 = vmatpush1.msra.mxu0 0.0
    %416 = vmatprep.subr.mxu0 0.0
    %417 = vmatpush1.msra.mxu0 0.0
    %418 = vmatprep.subr.mxu0 0.0
    %419 = vmatpush1.msra.mxu0 0.0
    %420 = vmatprep.subr.mxu0 0.0
    %421 = vmatpush1.msra.mxu0 0.0
    %422 = vmatprep.subr.mxu0 0.0
    %423 = vmatpush1.msra.mxu0 0.0
    %424 = vmatprep.subr.mxu0 0.0
    %425 = vmatpush1.msra.mxu0 0.0
    %426 = vmatprep.subr.mxu0 0.0
    %427 = vmatpush1.msra.mxu0 0.0
    %428 = vmatprep.subr.mxu0 0.0
    %429 = vmatpush1.msra.mxu0 0.0
    %430 = vmatprep.subr.mxu0 0.0
    %431 = vmatpush1.msra.mxu0 0.0
    %432 = vmatprep.subr.mxu0 0.0
    %433 = vmatpush1.msra.mxu0 0.0
    %434 = vmatprep.subr.mxu0 0.0
    %435 = vmatpush1.msra.mxu0 0.0
    %436 = vmatprep.subr.mxu0 0.0
    %437 = vmatpush1.msra.mxu0 0.0
    %438 = vmatprep.subr.mxu0 0.0
    %439 = vmatpush1.msra.mxu0 0.0
    %440 = vmatprep.subr.mxu0 0.0
    %441 = vmatpush1.msra.mxu0 0.0
    %442 = vmatprep.subr.mxu0 0.0
    %443 = vmatpush1.msra.mxu0 0.0
    %444 = vmatprep.subr.mxu0 0.0
    %445 = vmatpush1.msra.mxu0 0.0
    %446 = vmatprep.subr.mxu0 0.0
    %447 = vmatpush1.msra.mxu0 0.0
    %448 = vmatprep.subr.mxu0 0.0
    %449 = vmatpush1.msra.mxu0 0.0
    %450 = vmatprep.subr.mxu0 0.0
    %451 = vmatpush1.msra.mxu0 0.0
    %452 = vmatprep.subr.mxu0 0.0
    %453 = vmatpush1.msra.mxu0 0.0
    %454 = vmatprep.subr.mxu0 0.0
    %455 = vmatpush1.msra.mxu0 0.0
    %456 = vmatprep.subr.mxu0 0.0
    %457 = vmatpush1.msra.mxu0 0.0
    %458 = vmatprep.subr.mxu0 0.0
    %459 = vmatpush1.msra.mxu0 0.0
    %460 = vmatprep.subr.mxu0 0.0
    %461 = vmatpush1.msra.mxu0 0.0
    %462 = vmatprep.subr.mxu0 0.0
    %463 = vmatpush1.msra.mxu0 0.0
    %464 = vmatprep.mubr.f32.mxu0 0.0
    %465 = vmatmul.mubr.f32.gmra.mrb[0].mxu0 %v293
    %v466 = vpop.f32.mrb[0].mxu0
    %v467 = vadd.f32 %v398, %v466
    %v468 = vpop.f32.mrb[0].mxu0
    %469 = vmatprep.mubr.f32.mxu0 0.0
    %470 = vmatmul.mubr.f32.gmra.mrb[0].mxu0 %v296
    %v471 = vpop.f32.mrb[0].mxu0
    %v472 = vadd.f32 %v398, %v471
    %v473 = vpop.f32.mrb[0].mxu0
    %474 = vmatprep.mubr.f32.mxu0 0.0
    %475 = vmatmul.mubr.f32.gmra.mrb[0].mxu0 %v299
    %v476 = vpop.f32.mrb[0].mxu0
    %v477 = vadd.f32 %v398, %v476
    %v478 = vpop.f32.mrb[0].mxu0
    %479 = vmatprep.mubr.f32.mxu0 0.0
    %480 = vmatmul.mubr.f32.gmra.mrb[0].mxu0 %v302
    %v481 = vpop.f32.mrb[0].mxu0
    %v482 = vadd.f32 %v398, %v481
    %v483 = vpop.f32.mrb[0].mxu0
    %484 = vdwg.mxu0
    %v485 = vld [vmem:[%s7] sm:$0xff]
    %v486 = vld [vmem:[%s7 + $0x8] sm:$0xff]
    %v487 = vld [vmem:[%s7 + $0x10] sm:$0xff]
    %v488 = vld [vmem:[%s7 + $0x18] sm:$0xff]
    %v489 = vld [vmem:[%s10] sm:$0x1]
    %v491 = vlaneseq
    %v492 = vshrl.u32 %v491, 7
    %v493 = vsub.s32 0, %v492
    %v494 = vrot.slane %v489, %v493
    %496 = vmatprep.subr.mxu0 0.0
    %497 = vmatpush1.msra.mxu0 %v485
    %498 = vmatprep.subr.mxu0 0.0
    %499 = vmatpush1.msra.mxu0 %v486
    %500 = vmatprep.subr.mxu0 0.0
    %501 = vmatpush1.msra.mxu0 %v487
    %502 = vmatprep.subr.mxu0 0.0
    %503 = vmatpush1.msra.mxu0 %v488
    %504 = vmatprep.subr.mxu0 0.0
    %505 = vmatpush1.msra.mxu0 0.0
    %506 = vmatprep.subr.mxu0 0.0
    %507 = vmatpush1.msra.mxu0 0.0
    %508 = vmatprep.subr.mxu0 0.0
    %509 = vmatpush1.msra.mxu0 0.0
    %510 = vmatprep.subr.mxu0 0.0
    %511 = vmatpush1.msra.mxu0 0.0
    %512 = vmatprep.subr.mxu0 0.0
    %513 = vmatpush1.msra.mxu0 0.0
    %514 = vmatprep.subr.mxu0 0.0
    %515 = vmatpush1.msra.mxu0 0.0
    %516 = vmatprep.subr.mxu0 0.0
    %517 = vmatpush1.msra.mxu0 0.0
    %518 = vmatprep.subr.mxu0 0.0
    %519 = vmatpush1.msra.mxu0 0.0
    %520 = vmatprep.subr.mxu0 0.0
    %521 = vmatpush1.msra.mxu0 0.0
    %522 = vmatprep.subr.mxu0 0.0
    %523 = vmatpush1.msra.mxu0 0.0
    %524 = vmatprep.subr.mxu0 0.0
    %525 = vmatpush1.msra.mxu0 0.0
    %526 = vmatprep.subr.mxu0 0.0
    %527 = vmatpush1.msra.mxu0 0.0
    %528 = vmatprep.subr.mxu0 0.0
    %529 = vmatpush1.msra.mxu0 0.0
    %530 = vmatprep.subr.mxu0 0.0
    %531 = vmatpush1.msra.mxu0 0.0
    %532 = vmatprep.subr.mxu0 0.0
    %533 = vmatpush1.msra.mxu0 0.0
    %534 = vmatprep.subr.mxu0 0.0
    %535 = vmatpush1.msra.mxu0 0.0
    %536 = vmatprep.subr.mxu0 0.0
    %537 = vmatpush1.msra.mxu0 0.0
    %538 = vmatprep.subr.mxu0 0.0
    %539 = vmatpush1.msra.mxu0 0.0
    %540 = vmatprep.subr.mxu0 0.0
    %541 = vmatpush1.msra.mxu0 0.0
    %542 = vmatprep.subr.mxu0 0.0
    %543 = vmatpush1.msra.mxu0 0.0
    %544 = vmatprep.subr.mxu0 0.0
    %545 = vmatpush1.msra.mxu0 0.0
    %546 = vmatprep.subr.mxu0 0.0
    %547 = vmatpush1.msra.mxu0 0.0
    %548 = vmatprep.subr.mxu0 0.0
    %549 = vmatpush1.msra.mxu0 0.0
    %550 = vmatprep.subr.mxu0 0.0
    %551 = vmatpush1.msra.mxu0 0.0
    %552 = vmatprep.subr.mxu0 0.0
    %553 = vmatpush1.msra.mxu0 0.0
    %554 = vmatprep.subr.mxu0 0.0
    %555 = vmatpush1.msra.mxu0 0.0
    %556 = vmatprep.subr.mxu0 0.0
    %557 = vmatpush1.msra.mxu0 0.0
    %558 = vmatprep.subr.mxu0 0.0
    %559 = vmatpush1.msra.mxu0 0.0
    %560 = vmatprep.mubr.f32.mxu0 0.0
    %561 = vmatmul.mubr.f32.gmra.mrb[0].mxu0 %v293
    %v562 = vpop.f32.mrb[0].mxu0
    %v563 = vadd.f32 %v494, %v562
    %v564 = vpop.f32.mrb[0].mxu0
    %565 = vmatprep.mubr.f32.mxu0 0.0
    %566 = vmatmul.mubr.f32.gmra.mrb[0].mxu0 %v296
    %v567 = vpop.f32.mrb[0].mxu0
    %v568 = vadd.f32 %v494, %v567
    %v569 = vpop.f32.mrb[0].mxu0
    %570 = vmatprep.mubr.f32.mxu0 0.0
    %571 = vmatmul.mubr.f32.gmra.mrb[0].mxu0 %v299
    %v572 = vpop.f32.mrb[0].mxu0
    %v573 = vadd.f32 %v494, %v572
    %v574 = vpop.f32.mrb[0].mxu0
    %575 = vmatprep.mubr.f32.mxu0 0.0
    %576 = vmatmul.mubr.f32.gmra.mrb[0].mxu0 %v302
    %v577 = vpop.f32.mrb[0].mxu0
    %v578 = vadd.f32 %v494, %v577
    %v579 = vpop.f32.mrb[0].mxu0
    %580 = vdwg.mxu0
    %v581 = vmul.f32 %v371, 0.35355338
    %v582 = vmul.f32 %v376, 0.35355338
    %v583 = vmul.f32 %v381, 0.35355338
    %v584 = vmul.f32 %v386, 0.35355338
    %v585 = vmul.f32 %v467, %v260
    %v586 = vmul.f32 %v472, %v260
    %v587 = vmul.f32 %v477, %v260
    %v588 = vmul.f32 %v482, %v260
    %v590 = vsel %vm291, %v581, 0
    %v593 = vsel %vm291, %v582, 0
    %v596 = vsel %vm291, %v583, 0
    %v599 = vsel %vm291, %v584, 0
    %v602 = vsel %vm291, %v585, 0
    %v605 = vsel %vm291, %v586, 0
    %v608 = vsel %vm291, %v587, 0
    %v611 = vsel %vm291, %v588, 0
    %613 = vmatprep.subr.mxu0 0.0
    %614 = vmatpush1.xpose.msra.mxu0 %v602
    %615 = vmatprep.subr.mxu0 0.0
    %616 = vmatpush1.xpose.msra.mxu0 %v605
    %617 = vmatprep.subr.mxu0 0.0
    %618 = vmatpush1.xpose.msra.mxu0 %v608
    %619 = vmatprep.subr.mxu0 0.0
    %620 = vmatpush1.xpose.msra.mxu0 %v611
    %621 = vmatprep.subr.mxu0 0.0
    %622 = vmatpush1.xpose.msra.mxu0 0.0
    %623 = vmatprep.subr.mxu0 0.0
    %624 = vmatpush1.xpose.msra.mxu0 0.0
    %625 = vmatprep.subr.mxu0 0.0
    %626 = vmatpush1.xpose.msra.mxu0 0.0
    %627 = vmatprep.subr.mxu0 0.0
    %628 = vmatpush1.xpose.msra.mxu0 0.0
    %629 = vmatprep.subr.mxu0 0.0
    %630 = vmatpush1.xpose.msra.mxu0 0.0
    %631 = vmatprep.subr.mxu0 0.0
    %632 = vmatpush1.xpose.msra.mxu0 0.0
    %633 = vmatprep.subr.mxu0 0.0
    %634 = vmatpush1.xpose.msra.mxu0 0.0
    %635 = vmatprep.subr.mxu0 0.0
    %636 = vmatpush1.xpose.msra.mxu0 0.0
    %637 = vmatprep.subr.mxu0 0.0
    %638 = vmatpush1.xpose.msra.mxu0 0.0
    %639 = vmatprep.subr.mxu0 0.0
    %640 = vmatpush1.xpose.msra.mxu0 0.0
    %641 = vmatprep.subr.mxu0 0.0
    %642 = vmatpush1.xpose.msra.mxu0 0.0
    %643 = vmatprep.subr.mxu0 0.0
    %644 = vmatpush1.xpose.msra.mxu0 0.0
    %645 = vmatprep.subr.mxu0 0.0
    %646 = vmatpush1.xpose.msra.mxu0 0.0
    %647 = vmatprep.subr.mxu0 0.0
    %648 = vmatpush1.xpose.msra.mxu0 0.0
    %649 = vmatprep.subr.mxu0 0.0
    %650 = vmatpush1.xpose.msra.mxu0 0.0
    %651 = vmatprep.subr.mxu0 0.0
    %652 = vmatpush1.xpose.msra.mxu0 0.0
    %653 = vmatprep.subr.mxu0 0.0
    %654 = vmatpush1.xpose.msra.mxu0 0.0
    %655 = vmatprep.subr.mxu0 0.0
    %656 = vmatpush1.xpose.msra.mxu0 0.0
    %657 = vmatprep.subr.mxu0 0.0
    %658 = vmatpush1.xpose.msra.mxu0 0.0
    %659 = vmatprep.subr.mxu0 0.0
    %660 = vmatpush1.xpose.msra.mxu0 0.0
    %661 = vmatprep.subr.mxu0 0.0
    %662 = vmatpush1.xpose.msra.mxu0 0.0
    %663 = vmatprep.subr.mxu0 0.0
    %664 = vmatpush1.xpose.msra.mxu0 0.0
    %665 = vmatprep.subr.mxu0 0.0
    %666 = vmatpush1.xpose.msra.mxu0 0.0
    %667 = vmatprep.subr.mxu0 0.0
    %668 = vmatpush1.xpose.msra.mxu0 0.0
    %669 = vmatprep.subr.mxu0 0.0
    %670 = vmatpush1.xpose.msra.mxu0 0.0
    %671 = vmatprep.subr.mxu0 0.0
    %672 = vmatpush1.xpose.msra.mxu0 0.0
    %673 = vmatprep.subr.mxu0 0.0
    %674 = vmatpush1.xpose.msra.mxu0 0.0
    %675 = vmatprep.subr.mxu0 0.0
    %676 = vmatpush1.xpose.msra.mxu0 0.0
    %677 = vmatprep.mubr.f32.mxu0 0.0
    %678 = vmatmul.mubr.f32.gmra.mrb[0].mxu0 %v590
    %v679 = vpop.f32.mrb[0].mxu0
    %v680 = vadd.f32 %v276, %v679
    %v681 = vpop.f32.mrb[0].mxu0
    %682 = vmatprep.mubr.f32.mxu0 0.0
    %683 = vmatmul.mubr.f32.gmra.mrb[0].mxu0 %v593
    %v684 = vpop.f32.mrb[0].mxu0
    %v685 = vadd.f32 %v277, %v684
    %v686 = vpop.f32.mrb[0].mxu0
    %687 = vmatprep.mubr.f32.mxu0 0.0
    %688 = vmatmul.mubr.f32.gmra.mrb[0].mxu0 %v596
    %v689 = vpop.f32.mrb[0].mxu0
    %v690 = vadd.f32 %v278, %v689
    %v691 = vpop.f32.mrb[0].mxu0
    %692 = vmatprep.mubr.f32.mxu0 0.0
    %693 = vmatmul.mubr.f32.gmra.mrb[0].mxu0 %v599
    %v694 = vpop.f32.mrb[0].mxu0
    %v695 = vadd.f32 %v279, %v694
    %v696 = vpop.f32.mrb[0].mxu0
    %697 = vdwg.mxu0
    %v698 = vsel %vm291, %v680, -inf
    %699 = vmax.xlane.f32.xlu0 %v698
    %v700 = vpop.xlane.xlu0 %699
    %v701 = vsel %vm291, %v685, -inf
    %702 = vmax.xlane.f32.xlu0 %v701
    %v703 = vpop.xlane.xlu0 %702
    %v704 = vsel %vm291, %v690, -inf
    %705 = vmax.xlane.f32.xlu0 %v704
    %v706 = vpop.xlane.xlu0 %705
    %v707 = vsel %vm291, %v695, -inf
    %708 = vmax.xlane.f32.xlu0 %v707
    %v709 = vpop.xlane.xlu0 %708
    %v710 = vsub.f32 %v680, %v700
    %v711 = vsub.f32 %v685, %v703
    %v712 = vsub.f32 %v690, %v706
    %v713 = vsub.f32 %v695, %v709
    %v714 = vmul.f32 %v710, 1.442695
    %v715 = vpow.pop %v714
    %v716 = vmul.f32 %v711, 1.442695
    %v717 = vpow.pop %v716
    %v718 = vmul.f32 %v712, 1.442695
    %v719 = vpow.pop %v718
    %v720 = vmul.f32 %v713, 1.442695
    %v721 = vpow.pop %v720
    %v722 = vsel %vm291, %v715, 0.0
    %723 = vadd.xlane.f32.xlu0 %v722
    %v724 = vpop.xlane.xlu0 %723
    %v725 = vsel %vm291, %v717, 0.0
    %726 = vadd.xlane.f32.xlu0 %v725
    %v727 = vpop.xlane.xlu0 %726
    %v728 = vsel %vm291, %v719, 0.0
    %729 = vadd.xlane.f32.xlu0 %v728
    %v730 = vpop.xlane.xlu0 %729
    %v731 = vsel %vm291, %v721, 0.0
    %732 = vadd.xlane.f32.xlu0 %v731
    %v733 = vpop.xlane.xlu0 %732
    %v734 = vrcp.pop %v724
    %v735 = vrcp.pop %v727
    %v736 = vrcp.pop %v730
    %v737 = vrcp.pop %v733
    %v738 = vmul.f32 %v715, %v734
    %v739 = vmul.f32 %v717, %v735
    %v740 = vmul.f32 %v719, %v736
    %v741 = vmul.f32 %v721, %v737
    %v742 = vmul.f32 %v563, %v260
    %v743 = vmul.f32 %v568, %v260
    %v744 = vmul.f32 %v573, %v260
    %v745 = vmul.f32 %v578, %v260
    %v746 = vmul.f32 %v467, %v265
    %v747 = vmul.f32 %v472, %v265
    %v748 = vmul.f32 %v477, %v265
    %v749 = vmul.f32 %v482, %v265
    %v751 = vsel %vm291, %v746, 0
    %v754 = vsel %vm291, %v747, 0
    %v757 = vsel %vm291, %v748, 0
    %v760 = vsel %vm291, %v749, 0
    %762 = vmatprep.subr.mxu0 0.0
    %763 = vmatpush1.xpose.msra.mxu0 %v751
    %764 = vmatprep.subr.mxu0 0.0
    %765 = vmatpush1.xpose.msra.mxu0 %v754
    %766 = vmatprep.subr.mxu0 0.0
    %767 = vmatpush1.xpose.msra.mxu0 %v757
    %768 = vmatprep.subr.mxu0 0.0
    %769 = vmatpush1.xpose.msra.mxu0 %v760
    %770 = vmatprep.subr.mxu0 0.0
    %771 = vmatpush1.xpose.msra.mxu0 0.0
    %772 = vmatprep.subr.mxu0 0.0
    %773 = vmatpush1.xpose.msra.mxu0 0.0
    %774 = vmatprep.subr.mxu0 0.0
    %775 = vmatpush1.xpose.msra.mxu0 0.0
    %776 = vmatprep.subr.mxu0 0.0
    %777 = vmatpush1.xpose.msra.mxu0 0.0
    %778 = vmatprep.subr.mxu0 0.0
    %779 = vmatpush1.xpose.msra.mxu0 0.0
    %780 = vmatprep.subr.mxu0 0.0
    %781 = vmatpush1.xpose.msra.mxu0 0.0
    %782 = vmatprep.subr.mxu0 0.0
    %783 = vmatpush1.xpose.msra.mxu0 0.0
    %784 = vmatprep.subr.mxu0 0.0
    %785 = vmatpush1.xpose.msra.mxu0 0.0
    %786 = vmatprep.subr.mxu0 0.0
    %787 = vmatpush1.xpose.msra.mxu0 0.0
    %788 = vmatprep.subr.mxu0 0.0
    %789 = vmatpush1.xpose.msra.mxu0 0.0
    %790 = vmatprep.subr.mxu0 0.0
    %791 = vmatpush1.xpose.msra.mxu0 0.0
    %792 = vmatprep.subr.mxu0 0.0
    %793 = vmatpush1.xpose.msra.mxu0 0.0
    %794 = vmatprep.subr.mxu0 0.0
    %795 = vmatpush1.xpose.msra.mxu0 0.0
    %796 = vmatprep.subr.mxu0 0.0
    %797 = vmatpush1.xpose.msra.mxu0 0.0
    %798 = vmatprep.subr.mxu0 0.0
    %799 = vmatpush1.xpose.msra.mxu0 0.0
    %800 = vmatprep.subr.mxu0 0.0
    %801 = vmatpush1.xpose.msra.mxu0 0.0
    %802 = vmatprep.subr.mxu0 0.0
    %803 = vmatpush1.xpose.msra.mxu0 0.0
    %804 = vmatprep.subr.mxu0 0.0
    %805 = vmatpush1.xpose.msra.mxu0 0.0
    %806 = vmatprep.subr.mxu0 0.0
    %807 = vmatpush1.xpose.msra.mxu0 0.0
    %808 = vmatprep.subr.mxu0 0.0
    %809 = vmatpush1.xpose.msra.mxu0 0.0
    %810 = vmatprep.subr.mxu0 0.0
    %811 = vmatpush1.xpose.msra.mxu0 0.0
    %812 = vmatprep.subr.mxu0 0.0
    %813 = vmatpush1.xpose.msra.mxu0 0.0
    %814 = vmatprep.subr.mxu0 0.0
    %815 = vmatpush1.xpose.msra.mxu0 0.0
    %816 = vmatprep.subr.mxu0 0.0
    %817 = vmatpush1.xpose.msra.mxu0 0.0
    %818 = vmatprep.subr.mxu0 0.0
    %819 = vmatpush1.xpose.msra.mxu0 0.0
    %820 = vmatprep.subr.mxu0 0.0
    %821 = vmatpush1.xpose.msra.mxu0 0.0
    %822 = vmatprep.subr.mxu0 0.0
    %823 = vmatpush1.xpose.msra.mxu0 0.0
    %824 = vmatprep.subr.mxu0 0.0
    %825 = vmatpush1.xpose.msra.mxu0 0.0
    %826 = vmatprep.mubr.f32.mxu0 0.0
    %827 = vmatmul.mubr.f32.gmra.mrb[0].mxu0 %v590
    %v828 = vpop.f32.mrb[0].mxu0
    %v829 = vadd.f32 %v276, %v828
    %v830 = vpop.f32.mrb[0].mxu0
    %831 = vmatprep.mubr.f32.mxu0 0.0
    %832 = vmatmul.mubr.f32.gmra.mrb[0].mxu0 %v593
    %v833 = vpop.f32.mrb[0].mxu0
    %v834 = vadd.f32 %v277, %v833
    %v835 = vpop.f32.mrb[0].mxu0
    %836 = vmatprep.mubr.f32.mxu0 0.0
    %837 = vmatmul.mubr.f32.gmra.mrb[0].mxu0 %v596
    %v838 = vpop.f32.mrb[0].mxu0
    %v839 = vadd.f32 %v278, %v838
    %v840 = vpop.f32.mrb[0].mxu0
    %841 = vmatprep.mubr.f32.mxu0 0.0
    %842 = vmatmul.mubr.f32.gmra.mrb[0].mxu0 %v599
    %v843 = vpop.f32.mrb[0].mxu0
    %v844 = vadd.f32 %v279, %v843
    %v845 = vpop.f32.mrb[0].mxu0
    %846 = vdwg.mxu0
    %v847 = vsel %vm291, %v829, -inf
    %848 = vmax.xlane.f32.xlu0 %v847
    %v849 = vpop.xlane.xlu0 %848
    %v850 = vsel %vm291, %v834, -inf
    %851 = vmax.xlane.f32.xlu0 %v850
    %v852 = vpop.xlane.xlu0 %851
    %v853 = vsel %vm291, %v839, -inf
    %854 = vmax.xlane.f32.xlu0 %v853
    %v855 = vpop.xlane.xlu0 %854
    %v856 = vsel %vm291, %v844, -inf
    %857 = vmax.xlane.f32.xlu0 %v856
    %v858 = vpop.xlane.xlu0 %857
    %v859 = vsub.f32 %v829, %v849
    %v860 = vsub.f32 %v834, %v852
    %v861 = vsub.f32 %v839, %v855
    %v862 = vsub.f32 %v844, %v858
    %v863 = vmul.f32 %v859, 1.442695
    %v864 = vpow.pop %v863
    %v865 = vmul.f32 %v860, 1.442695
    %v866 = vpow.pop %v865
    %v867 = vmul.f32 %v861, 1.442695
    %v868 = vpow.pop %v867
    %v869 = vmul.f32 %v862, 1.442695
    %v870 = vpow.pop %v869
    %v871 = vsel %vm291, %v864, 0.0
    %872 = vadd.xlane.f32.xlu0 %v871
    %v873 = vpop.xlane.xlu0 %872
    %v874 = vsel %vm291, %v866, 0.0
    %875 = vadd.xlane.f32.xlu0 %v874
    %v876 = vpop.xlane.xlu0 %875
    %v877 = vsel %vm291, %v868, 0.0
    %878 = vadd.xlane.f32.xlu0 %v877
    %v879 = vpop.xlane.xlu0 %878
    %v880 = vsel %vm291, %v870, 0.0
    %881 = vadd.xlane.f32.xlu0 %v880
    %v882 = vpop.xlane.xlu0 %881
    %v883 = vrcp.pop %v873
    %v884 = vrcp.pop %v876
    %v885 = vrcp.pop %v879
    %v886 = vrcp.pop %v882
    %v887 = vmul.f32 %v864, %v883
    %v888 = vmul.f32 %v866, %v884
    %v889 = vmul.f32 %v868, %v885
    %v890 = vmul.f32 %v870, %v886
    %v891 = vmul.f32 %v563, %v265
    %v892 = vmul.f32 %v568, %v265
    %v893 = vmul.f32 %v573, %v265
    %v894 = vmul.f32 %v578, %v265
    %v896 = vsel %vm291, %v887, 0
    %v899 = vsel %vm291, %v888, 0
    %v902 = vsel %vm291, %v889, 0
    %v905 = vsel %vm291, %v890, 0
    %907 = vmatprep.subr.mxu0 0.0
    %908 = vmatpush1.msra.mxu0 %v891
    %909 = vmatprep.subr.mxu0 0.0
    %910 = vmatpush1.msra.mxu0 %v892
    %911 = vmatprep.subr.mxu0 0.0
    %912 = vmatpush1.msra.mxu0 %v893
    %913 = vmatprep.subr.mxu0 0.0
    %914 = vmatpush1.msra.mxu0 %v894
    %915 = vmatprep.subr.mxu0 0.0
    %916 = vmatpush1.msra.mxu0 0.0
    %917 = vmatprep.subr.mxu0 0.0
    %918 = vmatpush1.msra.mxu0 0.0
    %919 = vmatprep.subr.mxu0 0.0
    %920 = vmatpush1.msra.mxu0 0.0
    %921 = vmatprep.subr.mxu0 0.0
    %922 = vmatpush1.msra.mxu0 0.0
    %923 = vmatprep.subr.mxu0 0.0
    %924 = vmatpush1.msra.mxu0 0.0
    %925 = vmatprep.subr.mxu0 0.0
    %926 = vmatpush1.msra.mxu0 0.0
    %927 = vmatprep.subr.mxu0 0.0
    %928 = vmatpush1.msra.mxu0 0.0
    %929 = vmatprep.subr.mxu0 0.0
    %930 = vmatpush1.msra.mxu0 0.0
    %931 = vmatprep.subr.mxu0 0.0
    %932 = vmatpush1.msra.mxu0 0.0
    %933 = vmatprep.subr.mxu0 0.0
    %934 = vmatpush1.msra.mxu0 0.0
    %935 = vmatprep.subr.mxu0 0.0
    %936 = vmatpush1.msra.mxu0 0.0
    %937 = vmatprep.subr.mxu0 0.0
    %938 = vmatpush1.msra.mxu0 0.0
    %939 = vmatprep.subr.mxu0 0.0
    %940 = vmatpush1.msra.mxu0 0.0
    %941 = vmatprep.subr.mxu0 0.0
    %942 = vmatpush1.msra.mxu0 0.0
    %943 = vmatprep.subr.mxu0 0.0
    %944 = vmatpush1.msra.mxu0 0.0
    %945 = vmatprep.subr.mxu0 0.0
    %946 = vmatpush1.msra.mxu0 0.0
    %947 = vmatprep.subr.mxu0 0.0
    %948 = vmatpush1.msra.mxu0 0.0
    %949 = vmatprep.subr.mxu0 0.0
    %950 = vmatpush1.msra.mxu0 0.0
    %951 = vmatprep.subr.mxu0 0.0
    %952 = vmatpush1.msra.mxu0 0.0
    %953 = vmatprep.subr.mxu0 0.0
    %954 = vmatpush1.msra.mxu0 0.0
    %955 = vmatprep.subr.mxu0 0.0
    %956 = vmatpush1.msra.mxu0 0.0
    %957 = vmatprep.subr.mxu0 0.0
    %958 = vmatpush1.msra.mxu0 0.0
    %959 = vmatprep.subr.mxu0 0.0
    %960 = vmatpush1.msra.mxu0 0.0
    %961 = vmatprep.subr.mxu0 0.0
    %962 = vmatpush1.msra.mxu0 0.0
    %963 = vmatprep.subr.mxu0 0.0
    %964 = vmatpush1.msra.mxu0 0.0
    %965 = vmatprep.subr.mxu0 0.0
    %966 = vmatpush1.msra.mxu0 0.0
    %967 = vmatprep.subr.mxu0 0.0
    %968 = vmatpush1.msra.mxu0 0.0
    %969 = vmatprep.subr.mxu0 0.0
    %970 = vmatpush1.msra.mxu0 0.0
    %971 = vmatprep.mubr.f32.mxu0 0.0
    %972 = vmatmul.mubr.f32.gmra.mrb[0].mxu0 %v896
    %v973 = vpop.f32.mrb[0].mxu0
    %v974 = vadd.f32 0.0, %v973
    %v975 = vpop.f32.mrb[0].mxu0
    %976 = vmatprep.mubr.f32.mxu0 0.0
    %977 = vmatmul.mubr.f32.gmra.mrb[0].mxu0 %v899
    %v978 = vpop.f32.mrb[0].mxu0
    %v979 = vadd.f32 0.0, %v978
    %v980 = vpop.f32.mrb[0].mxu0
    %981 = vmatprep.mubr.f32.mxu0 0.0
    %982 = vmatmul.mubr.f32.gmra.mrb[0].mxu0 %v902
    %v983 = vpop.f32.mrb[0].mxu0
    %v984 = vadd.f32 0.0, %v983
    %v985 = vpop.f32.mrb[0].mxu0
    %986 = vmatprep.mubr.f32.mxu0 0.0
    %987 = vmatmul.mubr.f32.gmra.mrb[0].mxu0 %v905
    %v988 = vpop.f32.mrb[0].mxu0
    %v989 = vadd.f32 0.0, %v988
    %v990 = vpop.f32.mrb[0].mxu0
    %991 = vdwg.mxu0
    %v993 = vsel %vm291, %v738, 0
    %v996 = vsel %vm291, %v739, 0
    %v999 = vsel %vm291, %v740, 0
    %v1002 = vsel %vm291, %v741, 0
    %1004 = vmatprep.subr.mxu0 0.0
    %1005 = vmatpush1.msra.mxu0 %v742
    %1006 = vmatprep.subr.mxu0 0.0
    %1007 = vmatpush1.msra.mxu0 %v743
    %1008 = vmatprep.subr.mxu0 0.0
    %1009 = vmatpush1.msra.mxu0 %v744
    %1010 = vmatprep.subr.mxu0 0.0
    %1011 = vmatpush1.msra.mxu0 %v745
    %1012 = vmatprep.subr.mxu0 0.0
    %1013 = vmatpush1.msra.mxu0 0.0
    %1014 = vmatprep.subr.mxu0 0.0
    %1015 = vmatpush1.msra.mxu0 0.0
    %1016 = vmatprep.subr.mxu0 0.0
    %1017 = vmatpush1.msra.mxu0 0.0
    %1018 = vmatprep.subr.mxu0 0.0
    %1019 = vmatpush1.msra.mxu0 0.0
    %1020 = vmatprep.subr.mxu0 0.0
    %1021 = vmatpush1.msra.mxu0 0.0
    %1022 = vmatprep.subr.mxu0 0.0
    %1023 = vmatpush1.msra.mxu0 0.0
    %1024 = vmatprep.subr.mxu0 0.0
    %1025 = vmatpush1.msra.mxu0 0.0
    %1026 = vmatprep.subr.mxu0 0.0
    %1027 = vmatpush1.msra.mxu0 0.0
    %1028 = vmatprep.subr.mxu0 0.0
    %1029 = vmatpush1.msra.mxu0 0.0
    %1030 = vmatprep.subr.mxu0 0.0
    %1031 = vmatpush1.msra.mxu0 0.0
    %1032 = vmatprep.subr.mxu0 0.0
    %1033 = vmatpush1.msra.mxu0 0.0
    %1034 = vmatprep.subr.mxu0 0.0
    %1035 = vmatpush1.msra.mxu0 0.0
    %1036 = vmatprep.subr.mxu0 0.0
    %1037 = vmatpush1.msra.mxu0 0.0
    %1038 = vmatprep.subr.mxu0 0.0
    %1039 = vmatpush1.msra.mxu0 0.0
    %1040 = vmatprep.subr.mxu0 0.0
    %1041 = vmatpush1.msra.mxu0 0.0
    %1042 = vmatprep.subr.mxu0 0.0
    %1043 = vmatpush1.msra.mxu0 0.0
    %1044 = vmatprep.subr.mxu0 0.0
    %1045 = vmatpush1.msra.mxu0 0.0
    %1046 = vmatprep.subr.mxu0 0.0
    %1047 = vmatpush1.msra.mxu0 0.0
    %1048 = vmatprep.subr.mxu0 0.0
    %1049 = vmatpush1.msra.mxu0 0.0
    %1050 = vmatprep.subr.mxu0 0.0
    %1051 = vmatpush1.msra.mxu0 0.0
    %1052 = vmatprep.subr.mxu0 0.0
    %1053 = vmatpush1.msra.mxu0 0.0
    %1054 = vmatprep.subr.mxu0 0.0
    %1055 = vmatpush1.msra.mxu0 0.0
    %1056 = vmatprep.subr.mxu0 0.0
    %1057 = vmatpush1.msra.mxu0 0.0
    %1058 = vmatprep.subr.mxu0 0.0
    %1059 = vmatpush1.msra.mxu0 0.0
    %1060 = vmatprep.subr.mxu0 0.0
    %1061 = vmatpush1.msra.mxu0 0.0
    %1062 = vmatprep.subr.mxu0 0.0
    %1063 = vmatpush1.msra.mxu0 0.0
    %1064 = vmatprep.subr.mxu0 0.0
    %1065 = vmatpush1.msra.mxu0 0.0
    %1066 = vmatprep.subr.mxu0 0.0
    %1067 = vmatpush1.msra.mxu0 0.0
    %1068 = vmatprep.mubr.f32.mxu0 0.0
    %1069 = vmatmul.mubr.f32.gmra.mrb[0].mxu0 %v993
    %v1070 = vpop.f32.mrb[0].mxu0
    %v1071 = vadd.f32 %v974, %v1070
    %v1072 = vpop.f32.mrb[0].mxu0
    %1073 = vmatprep.mubr.f32.mxu0 0.0
    %1074 = vmatmul.mubr.f32.gmra.mrb[0].mxu0 %v996
    %v1075 = vpop.f32.mrb[0].mxu0
    %v1076 = vadd.f32 %v979, %v1075
    %v1077 = vpop.f32.mrb[0].mxu0
    %1078 = vmatprep.mubr.f32.mxu0 0.0
    %1079 = vmatmul.mubr.f32.gmra.mrb[0].mxu0 %v999
    %v1080 = vpop.f32.mrb[0].mxu0
    %v1081 = vadd.f32 %v984, %v1080
    %v1082 = vpop.f32.mrb[0].mxu0
    %1083 = vmatprep.mubr.f32.mxu0 0.0
    %1084 = vmatmul.mubr.f32.gmra.mrb[0].mxu0 %v1002
    %v1085 = vpop.f32.mrb[0].mxu0
    %v1086 = vadd.f32 %v989, %v1085
    %v1087 = vpop.f32.mrb[0].mxu0
    %1088 = vdwg.mxu0
    %v1089 = vmul.f32 %v467, %v270
    %v1090 = vmul.f32 %v472, %v270
    %v1091 = vmul.f32 %v477, %v270
    %v1092 = vmul.f32 %v482, %v270
    %v1094 = vsel %vm291, %v1089, 0
    %v1097 = vsel %vm291, %v1090, 0
    %v1100 = vsel %vm291, %v1091, 0
    %v1103 = vsel %vm291, %v1092, 0
    %1105 = vmatprep.subr.mxu0 0.0
    %1106 = vmatpush1.xpose.msra.mxu0 %v1094
    %1107 = vmatprep.subr.mxu0 0.0
    %1108 = vmatpush1.xpose.msra.mxu0 %v1097
    %1109 = vmatprep.subr.mxu0 0.0
    %1110 = vmatpush1.xpose.msra.mxu0 %v1100
    %1111 = vmatprep.subr.mxu0 0.0
    %1112 = vmatpush1.xpose.msra.mxu0 %v1103
    %1113 = vmatprep.subr.mxu0 0.0
    %1114 = vmatpush1.xpose.msra.mxu0 0.0
    %1115 = vmatprep.subr.mxu0 0.0
    %1116 = vmatpush1.xpose.msra.mxu0 0.0
    %1117 = vmatprep.subr.mxu0 0.0
    %1118 = vmatpush1.xpose.msra.mxu0 0.0
    %1119 = vmatprep.subr.mxu0 0.0
    %1120 = vmatpush1.xpose.msra.mxu0 0.0
    %1121 = vmatprep.subr.mxu0 0.0
    %1122 = vmatpush1.xpose.msra.mxu0 0.0
    %1123 = vmatprep.subr.mxu0 0.0
    %1124 = vmatpush1.xpose.msra.mxu0 0.0
    %1125 = vmatprep.subr.mxu0 0.0
    %1126 = vmatpush1.xpose.msra.mxu0 0.0
    %1127 = vmatprep.subr.mxu0 0.0
    %1128 = vmatpush1.xpose.msra.mxu0 0.0
    %1129 = vmatprep.subr.mxu0 0.0
    %1130 = vmatpush1.xpose.msra.mxu0 0.0
    %1131 = vmatprep.subr.mxu0 0.0
    %1132 = vmatpush1.xpose.msra.mxu0 0.0
    %1133 = vmatprep.subr.mxu0 0.0
    %1134 = vmatpush1.xpose.msra.mxu0 0.0
    %1135 = vmatprep.subr.mxu0 0.0
    %1136 = vmatpush1.xpose.msra.mxu0 0.0
    %1137 = vmatprep.subr.mxu0 0.0
    %1138 = vmatpush1.xpose.msra.mxu0 0.0
    %1139 = vmatprep.subr.mxu0 0.0
    %1140 = vmatpush1.xpose.msra.mxu0 0.0
    %1141 = vmatprep.subr.mxu0 0.0
    %1142 = vmatpush1.xpose.msra.mxu0 0.0
    %1143 = vmatprep.subr.mxu0 0.0
    %1144 = vmatpush1.xpose.msra.mxu0 0.0
    %1145 = vmatprep.subr.mxu0 0.0
    %1146 = vmatpush1.xpose.msra.mxu0 0.0
    %1147 = vmatprep.subr.mxu0 0.0
    %1148 = vmatpush1.xpose.msra.mxu0 0.0
    %1149 = vmatprep.subr.mxu0 0.0
    %1150 = vmatpush1.xpose.msra.mxu0 0.0
    %1151 = vmatprep.subr.mxu0 0.0
    %1152 = vmatpush1.xpose.msra.mxu0 0.0
    %1153 = vmatprep.subr.mxu0 0.0
    %1154 = vmatpush1.xpose.msra.mxu0 0.0
    %1155 = vmatprep.subr.mxu0 0.0
    %1156 = vmatpush1.xpose.msra.mxu0 0.0
    %1157 = vmatprep.subr.mxu0 0.0
    %1158 = vmatpush1.xpose.msra.mxu0 0.0
    %1159 = vmatprep.subr.mxu0 0.0
    %1160 = vmatpush1.xpose.msra.mxu0 0.0
    %1161 = vmatprep.subr.mxu0 0.0
    %1162 = vmatpush1.xpose.msra.mxu0 0.0
    %1163 = vmatprep.subr.mxu0 0.0
    %1164 = vmatpush1.xpose.msra.mxu0 0.0
    %1165 = vmatprep.subr.mxu0 0.0
    %1166 = vmatpush1.xpose.msra.mxu0 0.0
    %1167 = vmatprep.subr.mxu0 0.0
    %1168 = vmatpush1.xpose.msra.mxu0 0.0
    %1169 = vmatprep.mubr.f32.mxu0 0.0
    %1170 = vmatmul.mubr.f32.gmra.mrb[0].mxu0 %v590
    %v1171 = vpop.f32.mrb[0].mxu0
    %v1172 = vadd.f32 %v276, %v1171
    %v1173 = vpop.f32.mrb[0].mxu0
    %1174 = vmatprep.mubr.f32.mxu0 0.0
    %1175 = vmatmul.mubr.f32.gmra.mrb[0].mxu0 %v593
    %v1176 = vpop.f32.mrb[0].mxu0
    %v1177 = vadd.f32 %v277, %v1176
    %v1178 = vpop.f32.mrb[0].mxu0
    %1179 = vmatprep.mubr.f32.mxu0 0.0
    %1180 = vmatmul.mubr.f32.gmra.mrb[0].mxu0 %v596
    %v1181 = vpop.f32.mrb[0].mxu0
    %v1182 = vadd.f32 %v278, %v1181
    %v1183 = vpop.f32.mrb[0].mxu0
    %1184 = vmatprep.mubr.f32.mxu0 0.0
    %1185 = vmatmul.mubr.f32.gmra.mrb[0].mxu0 %v599
    %v1186 = vpop.f32.mrb[0].mxu0
    %v1187 = vadd.f32 %v279, %v1186
    %v1188 = vpop.f32.mrb[0].mxu0
    %1189 = vdwg.mxu0
    %v1190 = vsel %vm291, %v1172, -inf
    %1191 = vmax.xlane.f32.xlu0 %v1190
    %v1192 = vpop.xlane.xlu0 %1191
    %v1193 = vsel %vm291, %v1177, -inf
    %1194 = vmax.xlane.f32.xlu0 %v1193
    %v1195 = vpop.xlane.xlu0 %1194
    %v1196 = vsel %vm291, %v1182, -inf
    %1197 = vmax.xlane.f32.xlu0 %v1196
    %v1198 = vpop.xlane.xlu0 %1197
    %v1199 = vsel %vm291, %v1187, -inf
    %1200 = vmax.xlane.f32.xlu0 %v1199
    %v1201 = vpop.xlane.xlu0 %1200
    %v1202 = vsub.f32 %v1172, %v1192
    %v1203 = vsub.f32 %v1177, %v1195
    %v1204 = vsub.f32 %v1182, %v1198
    %v1205 = vsub.f32 %v1187, %v1201
    %v1206 = vmul.f32 %v1202, 1.442695
    %v1207 = vpow.pop %v1206
    %v1208 = vmul.f32 %v1203, 1.442695
    %v1209 = vpow.pop %v1208
    %v1210 = vmul.f32 %v1204, 1.442695
    %v1211 = vpow.pop %v1210
    %v1212 = vmul.f32 %v1205, 1.442695
    %v1213 = vpow.pop %v1212
    %v1214 = vsel %vm291, %v1207, 0.0
    %1215 = vadd.xlane.f32.xlu0 %v1214
    %v1216 = vpop.xlane.xlu0 %1215
    %v1217 = vsel %vm291, %v1209, 0.0
    %1218 = vadd.xlane.f32.xlu0 %v1217
    %v1219 = vpop.xlane.xlu0 %1218
    %v1220 = vsel %vm291, %v1211, 0.0
    %1221 = vadd.xlane.f32.xlu0 %v1220
    %v1222 = vpop.xlane.xlu0 %1221
    %v1223 = vsel %vm291, %v1213, 0.0
    %1224 = vadd.xlane.f32.xlu0 %v1223
    %v1225 = vpop.xlane.xlu0 %1224
    %v1226 = vrcp.pop %v1216
    %v1227 = vrcp.pop %v1219
    %v1228 = vrcp.pop %v1222
    %v1229 = vrcp.pop %v1225
    %v1230 = vmul.f32 %v1207, %v1226
    %v1231 = vmul.f32 %v1209, %v1227
    %v1232 = vmul.f32 %v1211, %v1228
    %v1233 = vmul.f32 %v1213, %v1229
    %v1234 = vmul.f32 %v563, %v270
    %v1235 = vmul.f32 %v568, %v270
    %v1236 = vmul.f32 %v573, %v270
    %v1237 = vmul.f32 %v578, %v270
    %v1239 = vsel %vm291, %v1230, 0
    %v1242 = vsel %vm291, %v1231, 0
    %v1245 = vsel %vm291, %v1232, 0
    %v1248 = vsel %vm291, %v1233, 0
    %1250 = vmatprep.subr.mxu0 0.0
    %1251 = vmatpush1.msra.mxu0 %v1234
    %1252 = vmatprep.subr.mxu0 0.0
    %1253 = vmatpush1.msra.mxu0 %v1235
    %1254 = vmatprep.subr.mxu0 0.0
    %1255 = vmatpush1.msra.mxu0 %v1236
    %1256 = vmatprep.subr.mxu0 0.0
    %1257 = vmatpush1.msra.mxu0 %v1237
    %1258 = vmatprep.subr.mxu0 0.0
    %1259 = vmatpush1.msra.mxu0 0.0
    %1260 = vmatprep.subr.mxu0 0.0
    %1261 = vmatpush1.msra.mxu0 0.0
    %1262 = vmatprep.subr.mxu0 0.0
    %1263 = vmatpush1.msra.mxu0 0.0
    %1264 = vmatprep.subr.mxu0 0.0
    %1265 = vmatpush1.msra.mxu0 0.0
    %1266 = vmatprep.subr.mxu0 0.0
    %1267 = vmatpush1.msra.mxu0 0.0
    %1268 = vmatprep.subr.mxu0 0.0
    %1269 = vmatpush1.msra.mxu0 0.0
    %1270 = vmatprep.subr.mxu0 0.0
    %1271 = vmatpush1.msra.mxu0 0.0
    %1272 = vmatprep.subr.mxu0 0.0
    %1273 = vmatpush1.msra.mxu0 0.0
    %1274 = vmatprep.subr.mxu0 0.0
    %1275 = vmatpush1.msra.mxu0 0.0
    %1276 = vmatprep.subr.mxu0 0.0
    %1277 = vmatpush1.msra.mxu0 0.0
    %1278 = vmatprep.subr.mxu0 0.0
    %1279 = vmatpush1.msra.mxu0 0.0
    %1280 = vmatprep.subr.mxu0 0.0
    %1281 = vmatpush1.msra.mxu0 0.0
    %1282 = vmatprep.subr.mxu0 0.0
    %1283 = vmatpush1.msra.mxu0 0.0
    %1284 = vmatprep.subr.mxu0 0.0
    %1285 = vmatpush1.msra.mxu0 0.0
    %1286 = vmatprep.subr.mxu0 0.0
    %1287 = vmatpush1.msra.mxu0 0.0
    %1288 = vmatprep.subr.mxu0 0.0
    %1289 = vmatpush1.msra.mxu0 0.0
    %1290 = vmatprep.subr.mxu0 0.0
    %1291 = vmatpush1.msra.mxu0 0.0
    %1292 = vmatprep.subr.mxu0 0.0
    %1293 = vmatpush1.msra.mxu0 0.0
    %1294 = vmatprep.subr.mxu0 0.0
    %1295 = vmatpush1.msra.mxu0 0.0
    %1296 = vmatprep.subr.mxu0 0.0
    %1297 = vmatpush1.msra.mxu0 0.0
    %1298 = vmatprep.subr.mxu0 0.0
    %1299 = vmatpush1.msra.mxu0 0.0
    %1300 = vmatprep.subr.mxu0 0.0
    %1301 = vmatpush1.msra.mxu0 0.0
    %1302 = vmatprep.subr.mxu0 0.0
    %1303 = vmatpush1.msra.mxu0 0.0
    %1304 = vmatprep.subr.mxu0 0.0
    %1305 = vmatpush1.msra.mxu0 0.0
    %1306 = vmatprep.subr.mxu0 0.0
    %1307 = vmatpush1.msra.mxu0 0.0
    %1308 = vmatprep.subr.mxu0 0.0
    %1309 = vmatpush1.msra.mxu0 0.0
    %1310 = vmatprep.subr.mxu0 0.0
    %1311 = vmatpush1.msra.mxu0 0.0
    %1312 = vmatprep.subr.mxu0 0.0
    %1313 = vmatpush1.msra.mxu0 0.0
    %1314 = vmatprep.mubr.f32.mxu0 0.0
    %1315 = vmatmul.mubr.f32.gmra.mrb[0].mxu0 %v1239
    %v1316 = vpop.f32.mrb[0].mxu0
    %v1317 = vadd.f32 0.0, %v1316
    %v1318 = vpop.f32.mrb[0].mxu0
    %1319 = vmatprep.mubr.f32.mxu0 0.0
    %1320 = vmatmul.mubr.f32.gmra.mrb[0].mxu0 %v1242
    %v1321 = vpop.f32.mrb[0].mxu0
    %v1322 = vadd.f32 0.0, %v1321
    %v1323 = vpop.f32.mrb[0].mxu0
    %1324 = vmatprep.mubr.f32.mxu0 0.0
    %1325 = vmatmul.mubr.f32.gmra.mrb[0].mxu0 %v1245
    %v1326 = vpop.f32.mrb[0].mxu0
    %v1327 = vadd.f32 0.0, %v1326
    %v1328 = vpop.f32.mrb[0].mxu0
    %1329 = vmatprep.mubr.f32.mxu0 0.0
    %1330 = vmatmul.mubr.f32.gmra.mrb[0].mxu0 %v1248
    %v1331 = vpop.f32.mrb[0].mxu0
    %v1332 = vadd.f32 0.0, %v1331
    %v1333 = vpop.f32.mrb[0].mxu0
    %1334 = vdwg.mxu0
    %v1335 = vadd.f32 %v1071, %v1317
    %v1336 = vadd.f32 %v1076, %v1322
    %v1337 = vadd.f32 %v1081, %v1327
    %v1338 = vadd.f32 %v1086, %v1332
    %v1339 = vmul.f32 %v467, %v275
    %v1340 = vmul.f32 %v472, %v275
    %v1341 = vmul.f32 %v477, %v275
    %v1342 = vmul.f32 %v482, %v275
    %v1344 = vsel %vm291, %v1339, 0
    %v1347 = vsel %vm291, %v1340, 0
    %v1350 = vsel %vm291, %v1341, 0
    %v1353 = vsel %vm291, %v1342, 0
    %1355 = vmatprep.subr.mxu0 0.0
    %1356 = vmatpush1.xpose.msra.mxu0 %v1344
    %1357 = vmatprep.subr.mxu0 0.0
    %1358 = vmatpush1.xpose.msra.mxu0 %v1347
    %1359 = vmatprep.subr.mxu0 0.0
    %1360 = vmatpush1.xpose.msra.mxu0 %v1350
    %1361 = vmatprep.subr.mxu0 0.0
    %1362 = vmatpush1.xpose.msra.mxu0 %v1353
    %1363 = vmatprep.subr.mxu0 0.0
    %1364 = vmatpush1.xpose.msra.mxu0 0.0
    %1365 = vmatprep.subr.mxu0 0.0
    %1366 = vmatpush1.xpose.msra.mxu0 0.0
    %1367 = vmatprep.subr.mxu0 0.0
    %1368 = vmatpush1.xpose.msra.mxu0 0.0
    %1369 = vmatprep.subr.mxu0 0.0
    %1370 = vmatpush1.xpose.msra.mxu0 0.0
    %1371 = vmatprep.subr.mxu0 0.0
    %1372 = vmatpush1.xpose.msra.mxu0 0.0
    %1373 = vmatprep.subr.mxu0 0.0
    %1374 = vmatpush1.xpose.msra.mxu0 0.0
    %1375 = vmatprep.subr.mxu0 0.0
    %1376 = vmatpush1.xpose.msra.mxu0 0.0
    %1377 = vmatprep.subr.mxu0 0.0
    %1378 = vmatpush1.xpose.msra.mxu0 0.0
    %1379 = vmatprep.subr.mxu0 0.0
    %1380 = vmatpush1.xpose.msra.mxu0 0.0
    %1381 = vmatprep.subr.mxu0 0.0
    %1382 = vmatpush1.xpose.msra.mxu0 0.0
    %1383 = vmatprep.subr.mxu0 0.0
    %1384 = vmatpush1.xpose.msra.mxu0 0.0
    %1385 = vmatprep.subr.mxu0 0.0
    %1386 = vmatpush1.xpose.msra.mxu0 0.0
    %1387 = vmatprep.subr.mxu0 0.0
    %1388 = vmatpush1.xpose.msra.mxu0 0.0
    %1389 = vmatprep.subr.mxu0 0.0
    %1390 = vmatpush1.xpose.msra.mxu0 0.0
    %1391 = vmatprep.subr.mxu0 0.0
    %1392 = vmatpush1.xpose.msra.mxu0 0.0
    %1393 = vmatprep.subr.mxu0 0.0
    %1394 = vmatpush1.xpose.msra.mxu0 0.0
    %1395 = vmatprep.subr.mxu0 0.0
    %1396 = vmatpush1.xpose.msra.mxu0 0.0
    %1397 = vmatprep.subr.mxu0 0.0
    %1398 = vmatpush1.xpose.msra.mxu0 0.0
    %1399 = vmatprep.subr.mxu0 0.0
    %1400 = vmatpush1.xpose.msra.mxu0 0.0
    %1401 = vmatprep.subr.mxu0 0.0
    %1402 = vmatpush1.xpose.msra.mxu0 0.0
    %1403 = vmatprep.subr.mxu0 0.0
    %1404 = vmatpush1.xpose.msra.mxu0 0.0
    %1405 = vmatprep.subr.mxu0 0.0
    %1406 = vmatpush1.xpose.msra.mxu0 0.0
    %1407 = vmatprep.subr.mxu0 0.0
    %1408 = vmatpush1.xpose.msra.mxu0 0.0
    %1409 = vmatprep.subr.mxu0 0.0
    %1410 = vmatpush1.xpose.msra.mxu0 0.0
    %1411 = vmatprep.subr.mxu0 0.0
    %1412 = vmatpush1.xpose.msra.mxu0 0.0
    %1413 = vmatprep.subr.mxu0 0.0
    %1414 = vmatpush1.xpose.msra.mxu0 0.0
    %1415 = vmatprep.subr.mxu0 0.0
    %1416 = vmatpush1.xpose.msra.mxu0 0.0
    %1417 = vmatprep.subr.mxu0 0.0
    %1418 = vmatpush1.xpose.msra.mxu0 0.0
    %1419 = vmatprep.mubr.f32.mxu0 0.0
    %1420 = vmatmul.mubr.f32.gmra.mrb[0].mxu0 %v590
    %v1421 = vpop.f32.mrb[0].mxu0
    %v1422 = vadd.f32 %v276, %v1421
    %v1423 = vpop.f32.mrb[0].mxu0
    %1424 = vmatprep.mubr.f32.mxu0 0.0
    %1425 = vmatmul.mubr.f32.gmra.mrb[0].mxu0 %v593
    %v1426 = vpop.f32.mrb[0].mxu0
    %v1427 = vadd.f32 %v277, %v1426
    %v1428 = vpop.f32.mrb[0].mxu0
    %1429 = vmatprep.mubr.f32.mxu0 0.0
    %1430 = vmatmul.mubr.f32.gmra.mrb[0].mxu0 %v596
    %v1431 = vpop.f32.mrb[0].mxu0
    %v1432 = vadd.f32 %v278, %v1431
    %v1433 = vpop.f32.mrb[0].mxu0
    %1434 = vmatprep.mubr.f32.mxu0 0.0
    %1435 = vmatmul.mubr.f32.gmra.mrb[0].mxu0 %v599
    %v1436 = vpop.f32.mrb[0].mxu0
    %v1437 = vadd.f32 %v279, %v1436
    %v1438 = vpop.f32.mrb[0].mxu0
    %1439 = vdwg.mxu0
    %v1440 = vsel %vm291, %v1422, -inf
    %1441 = vmax.xlane.f32.xlu0 %v1440
    %v1442 = vpop.xlane.xlu0 %1441
    %v1443 = vsel %vm291, %v1427, -inf
    %1444 = vmax.xlane.f32.xlu0 %v1443
    %v1445 = vpop.xlane.xlu0 %1444
    %v1446 = vsel %vm291, %v1432, -inf
    %1447 = vmax.xlane.f32.xlu0 %v1446
    %v1448 = vpop.xlane.xlu0 %1447
    %v1449 = vsel %vm291, %v1437, -inf
    %1450 = vmax.xlane.f32.xlu0 %v1449
    %v1451 = vpop.xlane.xlu0 %1450
    %v1452 = vsub.f32 %v1422, %v1442
    %v1453 = vsub.f32 %v1427, %v1445
    %v1454 = vsub.f32 %v1432, %v1448
    %v1455 = vsub.f32 %v1437, %v1451
    %v1456 = vmul.f32 %v1452, 1.442695
    %v1457 = vpow.pop %v1456
    %v1458 = vmul.f32 %v1453, 1.442695
    %v1459 = vpow.pop %v1458
    %v1460 = vmul.f32 %v1454, 1.442695
    %v1461 = vpow.pop %v1460
    %v1462 = vmul.f32 %v1455, 1.442695
    %v1463 = vpow.pop %v1462
    %v1464 = vsel %vm291, %v1457, 0.0
    %1465 = vadd.xlane.f32.xlu0 %v1464
    %v1466 = vpop.xlane.xlu0 %1465
    %v1467 = vsel %vm291, %v1459, 0.0
    %1468 = vadd.xlane.f32.xlu0 %v1467
    %v1469 = vpop.xlane.xlu0 %1468
    %v1470 = vsel %vm291, %v1461, 0.0
    %1471 = vadd.xlane.f32.xlu0 %v1470
    %v1472 = vpop.xlane.xlu0 %1471
    %v1473 = vsel %vm291, %v1463, 0.0
    %1474 = vadd.xlane.f32.xlu0 %v1473
    %v1475 = vpop.xlane.xlu0 %1474
    %v1476 = vrcp.pop %v1466
    %v1477 = vrcp.pop %v1469
    %v1478 = vrcp.pop %v1472
    %v1479 = vrcp.pop %v1475
    %v1480 = vmul.f32 %v1457, %v1476
    %v1481 = vmul.f32 %v1459, %v1477
    %v1482 = vmul.f32 %v1461, %v1478
    %v1483 = vmul.f32 %v1463, %v1479
    %v1484 = vmul.f32 %v563, %v275
    %v1485 = vmul.f32 %v568, %v275
    %v1486 = vmul.f32 %v573, %v275
    %v1487 = vmul.f32 %v578, %v275
    %v1489 = vsel %vm291, %v1480, 0
    %v1492 = vsel %vm291, %v1481, 0
    %v1495 = vsel %vm291, %v1482, 0
    %v1498 = vsel %vm291, %v1483, 0
    %1500 = vmatprep.subr.mxu0 0.0
    %1501 = vmatpush1.msra.mxu0 %v1484
    %1502 = vmatprep.subr.mxu0 0.0
    %1503 = vmatpush1.msra.mxu0 %v1485
    %1504 = vmatprep.subr.mxu0 0.0
    %1505 = vmatpush1.msra.mxu0 %v1486
    %1506 = vmatprep.subr.mxu0 0.0
    %1507 = vmatpush1.msra.mxu0 %v1487
    %1508 = vmatprep.subr.mxu0 0.0
    %1509 = vmatpush1.msra.mxu0 0.0
    %1510 = vmatprep.subr.mxu0 0.0
    %1511 = vmatpush1.msra.mxu0 0.0
    %1512 = vmatprep.subr.mxu0 0.0
    %1513 = vmatpush1.msra.mxu0 0.0
    %1514 = vmatprep.subr.mxu0 0.0
    %1515 = vmatpush1.msra.mxu0 0.0
    %1516 = vmatprep.subr.mxu0 0.0
    %1517 = vmatpush1.msra.mxu0 0.0
    %1518 = vmatprep.subr.mxu0 0.0
    %1519 = vmatpush1.msra.mxu0 0.0
    %1520 = vmatprep.subr.mxu0 0.0
    %1521 = vmatpush1.msra.mxu0 0.0
    %1522 = vmatprep.subr.mxu0 0.0
    %1523 = vmatpush1.msra.mxu0 0.0
    %1524 = vmatprep.subr.mxu0 0.0
    %1525 = vmatpush1.msra.mxu0 0.0
    %1526 = vmatprep.subr.mxu0 0.0
    %1527 = vmatpush1.msra.mxu0 0.0
    %1528 = vmatprep.subr.mxu0 0.0
    %1529 = vmatpush1.msra.mxu0 0.0
    %1530 = vmatprep.subr.mxu0 0.0
    %1531 = vmatpush1.msra.mxu0 0.0
    %1532 = vmatprep.subr.mxu0 0.0
    %1533 = vmatpush1.msra.mxu0 0.0
    %1534 = vmatprep.subr.mxu0 0.0
    %1535 = vmatpush1.msra.mxu0 0.0
    %1536 = vmatprep.subr.mxu0 0.0
    %1537 = vmatpush1.msra.mxu0 0.0
    %1538 = vmatprep.subr.mxu0 0.0
    %1539 = vmatpush1.msra.mxu0 0.0
    %1540 = vmatprep.subr.mxu0 0.0
    %1541 = vmatpush1.msra.mxu0 0.0
    %1542 = vmatprep.subr.mxu0 0.0
    %1543 = vmatpush1.msra.mxu0 0.0
    %1544 = vmatprep.subr.mxu0 0.0
    %1545 = vmatpush1.msra.mxu0 0.0
    %1546 = vmatprep.subr.mxu0 0.0
    %1547 = vmatpush1.msra.mxu0 0.0
    %1548 = vmatprep.subr.mxu0 0.0
    %1549 = vmatpush1.msra.mxu0 0.0
    %1550 = vmatprep.subr.mxu0 0.0
    %1551 = vmatpush1.msra.mxu0 0.0
    %1552 = vmatprep.subr.mxu0 0.0
    %1553 = vmatpush1.msra.mxu0 0.0
    %1554 = vmatprep.subr.mxu0 0.0
    %1555 = vmatpush1.msra.mxu0 0.0
    %1556 = vmatprep.subr.mxu0 0.0
    %1557 = vmatpush1.msra.mxu0 0.0
    %1558 = vmatprep.subr.mxu0 0.0
    %1559 = vmatpush1.msra.mxu0 0.0
    %1560 = vmatprep.subr.mxu0 0.0
    %1561 = vmatpush1.msra.mxu0 0.0
    %1562 = vmatprep.subr.mxu0 0.0
    %1563 = vmatpush1.msra.mxu0 0.0
    %1564 = vmatprep.mubr.f32.mxu0 0.0
    %1565 = vmatmul.mubr.f32.gmra.mrb[0].mxu0 %v1489
    %v1566 = vpop.f32.mrb[0].mxu0
    %v1567 = vadd.f32 0.0, %v1566
    %v1568 = vpop.f32.mrb[0].mxu0
    %1569 = vmatprep.mubr.f32.mxu0 0.0
    %1570 = vmatmul.mubr.f32.gmra.mrb[0].mxu0 %v1492
    %v1571 = vpop.f32.mrb[0].mxu0
    %v1572 = vadd.f32 0.0, %v1571
    %v1573 = vpop.f32.mrb[0].mxu0
    %1574 = vmatprep.mubr.f32.mxu0 0.0
    %1575 = vmatmul.mubr.f32.gmra.mrb[0].mxu0 %v1495
    %v1576 = vpop.f32.mrb[0].mxu0
    %v1577 = vadd.f32 0.0, %v1576
    %v1578 = vpop.f32.mrb[0].mxu0
    %1579 = vmatprep.mubr.f32.mxu0 0.0
    %1580 = vmatmul.mubr.f32.gmra.mrb[0].mxu0 %v1498
    %v1581 = vpop.f32.mrb[0].mxu0
    %v1582 = vadd.f32 0.0, %v1581
    %v1583 = vpop.f32.mrb[0].mxu0
    %1584 = vdwg.mxu0
    %v1585 = vadd.f32 %v1335, %v1567
    %v1586 = vadd.f32 %v1336, %v1572
    %v1587 = vadd.f32 %v1337, %v1577
    %v1588 = vadd.f32 %v1338, %v1582
    %v1589 = vld [vmem:[%s11] sm:$0xff]
    %v1590 = vld [vmem:[%s11 + $0x8] sm:$0xff]
    %v1591 = vld [vmem:[%s11 + $0x10] sm:$0xff]
    %v1592 = vld [vmem:[%s11 + $0x18] sm:$0xff]
    %v1593 = vld [vmem:[%s12] sm:$0x1]
    %v1595 = vlaneseq
    %v1596 = vshrl.u32 %v1595, 7
    %v1597 = vsub.s32 0, %v1596
    %v1598 = vrot.slane %v1593, %v1597
    %v1601 = vsel %vm291, %v1585, 0
    %v1604 = vsel %vm291, %v1586, 0
    %v1607 = vsel %vm291, %v1587, 0
    %v1610 = vsel %vm291, %v1588, 0
    %1612 = vmatprep.subr.mxu0 0.0
    %1613 = vmatpush1.msra.mxu0 %v1589
    %1614 = vmatprep.subr.mxu0 0.0
    %1615 = vmatpush1.msra.mxu0 %v1590
    %1616 = vmatprep.subr.mxu0 0.0
    %1617 = vmatpush1.msra.mxu0 %v1591
    %1618 = vmatprep.subr.mxu0 0.0
    %1619 = vmatpush1.msra.mxu0 %v1592
    %1620 = vmatprep.subr.mxu0 0.0
    %1621 = vmatpush1.msra.mxu0 0.0
    %1622 = vmatprep.subr.mxu0 0.0
    %1623 = vmatpush1.msra.mxu0 0.0
    %1624 = vmatprep.subr.mxu0 0.0
    %1625 = vmatpush1.msra.mxu0 0.0
    %1626 = vmatprep.subr.mxu0 0.0
    %1627 = vmatpush1.msra.mxu0 0.0
    %1628 = vmatprep.subr.mxu0 0.0
    %1629 = vmatpush1.msra.mxu0 0.0
    %1630 = vmatprep.subr.mxu0 0.0
    %1631 = vmatpush1.msra.mxu0 0.0
    %1632 = vmatprep.subr.mxu0 0.0
    %1633 = vmatpush1.msra.mxu0 0.0
    %1634 = vmatprep.subr.mxu0 0.0
    %1635 = vmatpush1.msra.mxu0 0.0
    %1636 = vmatprep.subr.mxu0 0.0
    %1637 = vmatpush1.msra.mxu0 0.0
    %1638 = vmatprep.subr.mxu0 0.0
    %1639 = vmatpush1.msra.mxu0 0.0
    %1640 = vmatprep.subr.mxu0 0.0
    %1641 = vmatpush1.msra.mxu0 0.0
    %1642 = vmatprep.subr.mxu0 0.0
    %1643 = vmatpush1.msra.mxu0 0.0
    %1644 = vmatprep.subr.mxu0 0.0
    %1645 = vmatpush1.msra.mxu0 0.0
    %1646 = vmatprep.subr.mxu0 0.0
    %1647 = vmatpush1.msra.mxu0 0.0
    %1648 = vmatprep.subr.mxu0 0.0
    %1649 = vmatpush1.msra.mxu0 0.0
    %1650 = vmatprep.subr.mxu0 0.0
    %1651 = vmatpush1.msra.mxu0 0.0
    %1652 = vmatprep.subr.mxu0 0.0
    %1653 = vmatpush1.msra.mxu0 0.0
    %1654 = vmatprep.subr.mxu0 0.0
    %1655 = vmatpush1.msra.mxu0 0.0
    %1656 = vmatprep.subr.mxu0 0.0
    %1657 = vmatpush1.msra.mxu0 0.0
    %1658 = vmatprep.subr.mxu0 0.0
    %1659 = vmatpush1.msra.mxu0 0.0
    %1660 = vmatprep.subr.mxu0 0.0
    %1661 = vmatpush1.msra.mxu0 0.0
    %1662 = vmatprep.subr.mxu0 0.0
    %1663 = vmatpush1.msra.mxu0 0.0
    %1664 = vmatprep.subr.mxu0 0.0
    %1665 = vmatpush1.msra.mxu0 0.0
    %1666 = vmatprep.subr.mxu0 0.0
    %1667 = vmatpush1.msra.mxu0 0.0
    %1668 = vmatprep.subr.mxu0 0.0
    %1669 = vmatpush1.msra.mxu0 0.0
    %1670 = vmatprep.subr.mxu0 0.0
    %1671 = vmatpush1.msra.mxu0 0.0
    %1672 = vmatprep.subr.mxu0 0.0
    %1673 = vmatpush1.msra.mxu0 0.0
    %1674 = vmatprep.subr.mxu0 0.0
    %1675 = vmatpush1.msra.mxu0 0.0
    %1676 = vmatprep.mubr.f32.mxu0 0.0
    %1677 = vmatmul.mubr.f32.gmra.mrb[0].mxu0 %v1601
    %v1678 = vpop.f32.mrb[0].mxu0
    %v1679 = vadd.f32 %v1598, %v1678
    %v1680 = vpop.f32.mrb[0].mxu0
    %1681 = vmatprep.mubr.f32.mxu0 0.0
    %1682 = vmatmul.mubr.f32.gmra.mrb[0].mxu0 %v1604
    %v1683 = vpop.f32.mrb[0].mxu0
    %v1684 = vadd.f32 %v1598, %v1683
    %v1685 = vpop.f32.mrb[0].mxu0
    %1686 = vmatprep.mubr.f32.mxu0 0.0
    %1687 = vmatmul.mubr.f32.gmra.mrb[0].mxu0 %v1607
    %v1688 = vpop.f32.mrb[0].mxu0
    %v1689 = vadd.f32 %v1598, %v1688
    %v1690 = vpop.f32.mrb[0].mxu0
    %1691 = vmatprep.mubr.f32.mxu0 0.0
    %1692 = vmatmul.mubr.f32.gmra.mrb[0].mxu0 %v1610
    %v1693 = vpop.f32.mrb[0].mxu0
    %v1694 = vadd.f32 %v1598, %v1693
    %v1695 = vpop.f32.mrb[0].mxu0
    %1696 = vdwg.mxu0
    %v1697 = vadd.f32 %v250, %v1679
    %v1698 = vadd.f32 %v251, %v1684
    %v1699 = vadd.f32 %v252, %v1689
    %v1700 = vadd.f32 %v253, %v1694
    %v1701 = vld [vmem:[%s13] sm:$0x1]
    %v1702 = vld [vmem:[%s14] sm:$0x1]
    %v1703 = vsel %vm291, %v1697, 0.0
    %1704 = vadd.xlane.f32.xlu0 %v1703
    %v1705 = vpop.xlane.xlu0 %1704
    %v1706 = vsel %vm291, %v1698, 0.0
    %1707 = vadd.xlane.f32.xlu0 %v1706
    %v1708 = vpop.xlane.xlu0 %1707
    %v1709 = vsel %vm291, %v1699, 0.0
    %1710 = vadd.xlane.f32.xlu0 %v1709
    %v1711 = vpop.xlane.xlu0 %1710
    %v1712 = vsel %vm291, %v1700, 0.0
    %1713 = vadd.xlane.f32.xlu0 %v1712
    %v1714 = vpop.xlane.xlu0 %1713
    %v1715 = vrcp.pop 32.0
    %v1716 = vmul.f32 %v1705, %v1715
    %v1717 = vmul.f32 %v1708, %v1715
    %v1718 = vmul.f32 %v1711, %v1715
    %v1719 = vmul.f32 %v1714, %v1715
    %v1720 = vsub.f32 %v1697, %v1716
    %v1721 = vsub.f32 %v1698, %v1717
    %v1722 = vsub.f32 %v1699, %v1718
    %v1723 = vsub.f32 %v1700, %v1719
    %v1724 = vmul.f32 %v1720, %v1720
    %v1725 = vmul.f32 %v1721, %v1721
    %v1726 = vmul.f32 %v1722, %v1722
    %v1727 = vmul.f32 %v1723, %v1723
    %v1728 = vsel %vm291, %v1724, 0.0
    %1729 = vadd.xlane.f32.xlu0 %v1728
    %v1730 = vpop.xlane.xlu0 %1729
    %v1731 = vsel %vm291, %v1725, 0.0
    %1732 = vadd.xlane.f32.xlu0 %v1731
    %v1733 = vpop.xlane.xlu0 %1732
    %v1734 = vsel %vm291, %v1726, 0.0
    %1735 = vadd.xlane.f32.xlu0 %v1734
    %v1736 = vpop.xlane.xlu0 %1735
    %v1737 = vsel %vm291, %v1727, 0.0
    %1738 = vadd.xlane.f32.xlu0 %v1737
    %v1739 = vpop.xlane.xlu0 %1738
    %v1740 = vmul.f32 %v1730, %v1715
    %v1741 = vmul.f32 %v1733, %v1715
    %v1742 = vmul.f32 %v1736, %v1715
    %v1743 = vmul.f32 %v1739, %v1715
    %v1744 = vadd.f32 %v1740, 1e-05
    %v1745 = vadd.f32 %v1741, 1e-05
    %v1746 = vadd.f32 %v1742, 1e-05
    %v1747 = vadd.f32 %v1743, 1e-05
    %v1748 = vrsqrt.pop %v1744
    %v1749 = vrsqrt.pop %v1745
    %v1750 = vrsqrt.pop %v1746
    %v1751 = vrsqrt.pop %v1747
    %v1752 = vmul.f32 %v1720, %v1748
    %v1753 = vmul.f32 %v1721, %v1749
    %v1754 = vmul.f32 %v1722, %v1750
    %v1755 = vmul.f32 %v1723, %v1751
    %v1757 = vlaneseq
    %v1758 = vshrl.u32 %v1757, 7
    %v1759 = vsub.s32 0, %v1758
    %v1760 = vrot.slane %v1701, %v1759
    %v1762 = vmul.f32 %v1752, %v1760
    %v1763 = vmul.f32 %v1753, %v1760
    %v1764 = vmul.f32 %v1754, %v1760
    %v1765 = vmul.f32 %v1755, %v1760
    %v1767 = vlaneseq
    %v1768 = vshrl.u32 %v1767, 7
    %v1769 = vsub.s32 0, %v1768
    %v1770 = vrot.slane %v1702, %v1769
    %v1772 = vadd.f32 %v1762, %v1770
    %v1773 = vadd.f32 %v1763, %v1770
    %v1774 = vadd.f32 %v1764, %v1770
    %v1775 = vadd.f32 %v1765, %v1770
    %v1776 = vld [vmem:[%s15] sm:$0xff]
    %v1777 = vld [vmem:[%s15 + $0x8] sm:$0xff]
    %v1778 = vld [vmem:[%s15 + $0x10] sm:$0xff]
    %v1779 = vld [vmem:[%s15 + $0x18] sm:$0xff]
    %v1780 = vld [vmem:[%s16] sm:$0x1]
    %v1782 = vlaneseq
    %v1783 = vshrl.u32 %v1782, 7
    %v1784 = vsub.s32 0, %v1783
    %v1785 = vrot.slane %v1780, %v1784
    %v1788 = vsel %vm291, %v1772, 0
    %v1791 = vsel %vm291, %v1773, 0
    %v1794 = vsel %vm291, %v1774, 0
    %v1797 = vsel %vm291, %v1775, 0
    %1799 = vmatprep.subr.mxu0 0.0
    %1800 = vmatpush1.msra.mxu0 %v1776
    %1801 = vmatprep.subr.mxu0 0.0
    %1802 = vmatpush1.msra.mxu0 %v1777
    %1803 = vmatprep.subr.mxu0 0.0
    %1804 = vmatpush1.msra.mxu0 %v1778
    %1805 = vmatprep.subr.mxu0 0.0
    %1806 = vmatpush1.msra.mxu0 %v1779
    %1807 = vmatprep.subr.mxu0 0.0
    %1808 = vmatpush1.msra.mxu0 0.0
    %1809 = vmatprep.subr.mxu0 0.0
    %1810 = vmatpush1.msra.mxu0 0.0
    %1811 = vmatprep.subr.mxu0 0.0
    %1812 = vmatpush1.msra.mxu0 0.0
    %1813 = vmatprep.subr.mxu0 0.0
    %1814 = vmatpush1.msra.mxu0 0.0
    %1815 = vmatprep.subr.mxu0 0.0
    %1816 = vmatpush1.msra.mxu0 0.0
    %1817 = vmatprep.subr.mxu0 0.0
    %1818 = vmatpush1.msra.mxu0 0.0
    %1819 = vmatprep.subr.mxu0 0.0
    %1820 = vmatpush1.msra.mxu0 0.0
    %1821 = vmatprep.subr.mxu0 0.0
    %1822 = vmatpush1.msra.mxu0 0.0
    %1823 = vmatprep.subr.mxu0 0.0
    %1824 = vmatpush1.msra.mxu0 0.0
    %1825 = vmatprep.subr.mxu0 0.0
    %1826 = vmatpush1.msra.mxu0 0.0
    %1827 = vmatprep.subr.mxu0 0.0
    %1828 = vmatpush1.msra.mxu0 0.0
    %1829 = vmatprep.subr.mxu0 0.0
    %1830 = vmatpush1.msra.mxu0 0.0
    %1831 = vmatprep.subr.mxu0 0.0
    %1832 = vmatpush1.msra.mxu0 0.0
    %1833 = vmatprep.subr.mxu0 0.0
    %1834 = vmatpush1.msra.mxu0 0.0
    %1835 = vmatprep.subr.mxu0 0.0
    %1836 = vmatpush1.msra.mxu0 0.0
    %1837 = vmatprep.subr.mxu0 0.0
    %1838 = vmatpush1.msra.mxu0 0.0
    %1839 = vmatprep.subr.mxu0 0.0
    %1840 = vmatpush1.msra.mxu0 0.0
    %1841 = vmatprep.subr.mxu0 0.0
    %1842 = vmatpush1.msra.mxu0 0.0
    %1843 = vmatprep.subr.mxu0 0.0
    %1844 = vmatpush1.msra.mxu0 0.0
    %1845 = vmatprep.subr.mxu0 0.0
    %1846 = vmatpush1.msra.mxu0 0.0
    %1847 = vmatprep.subr.mxu0 0.0
    %1848 = vmatpush1.msra.mxu0 0.0
    %1849 = vmatprep.subr.mxu0 0.0
    %1850 = vmatpush1.msra.mxu0 0.0
    %1851 = vmatprep.subr.mxu0 0.0
    %1852 = vmatpush1.msra.mxu0 0.0
    %1853 = vmatprep.subr.mxu0 0.0
    %1854 = vmatpush1.msra.mxu0 0.0
    %1855 = vmatprep.subr.mxu0 0.0
    %1856 = vmatpush1.msra.mxu0 0.0
    %1857 = vmatprep.subr.mxu0 0.0
    %1858 = vmatpush1.msra.mxu0 0.0
    %1859 = vmatprep.subr.mxu0 0.0
    %1860 = vmatpush1.msra.mxu0 0.0
    %1861 = vmatprep.subr.mxu0 0.0
    %1862 = vmatpush1.msra.mxu0 0.0
    %1863 = vmatprep.mubr.f32.mxu0 0.0
    %1864 = vmatmul.mubr.f32.gmra.mrb[0].mxu0 %v1788
    %v1865 = vpop.f32.mrb[0].mxu0
    %v1866 = vadd.f32 %v1785, %v1865
    %v1867 = vpop.f32.mrb[0].mxu0
    %1868 = vmatprep.mubr.f32.mxu0 0.0
    %1869 = vmatmul.mubr.f32.gmra.mrb[0].mxu0 %v1791
    %v1870 = vpop.f32.mrb[0].mxu0
    %v1871 = vadd.f32 %v1785, %v1870
    %v1872 = vpop.f32.mrb[0].mxu0
    %1873 = vmatprep.mubr.f32.mxu0 0.0
    %1874 = vmatmul.mubr.f32.gmra.mrb[0].mxu0 %v1794
    %v1875 = vpop.f32.mrb[0].mxu0
    %v1876 = vadd.f32 %v1785, %v1875
    %v1877 = vpop.f32.mrb[0].mxu0
    %1878 = vmatprep.mubr.f32.mxu0 0.0
    %1879 = vmatmul.mubr.f32.gmra.mrb[0].mxu0 %v1797
    %v1880 = vpop.f32.mrb[0].mxu0
    %v1881 = vadd.f32 %v1785, %v1880
    %v1882 = vpop.f32.mrb[0].mxu0
    %1883 = vdwg.mxu0
    %v1884 = vmax.f32 %v1866, 0.0
    %v1885 = vmax.f32 %v1871, 0.0
    %v1886 = vmax.f32 %v1876, 0.0
    %v1887 = vmax.f32 %v1881, 0.0
    %v1888 = vld [vmem:[%s17] sm:$0xff]
    %v1889 = vld [vmem:[%s17 + $0x8] sm:$0xff]
    %v1890 = vld [vmem:[%s17 + $0x10] sm:$0xff]
    %v1891 = vld [vmem:[%s17 + $0x18] sm:$0xff]
    %v1892 = vld [vmem:[%s17 + $0x20] sm:$0xff]
    %v1893 = vld [vmem:[%s17 + $0x28] sm:$0xff]
    %v1894 = vld [vmem:[%s17 + $0x30] sm:$0xff]
    %v1895 = vld [vmem:[%s17 + $0x38] sm:$0xff]
    %v1896 = vld [vmem:[%s18] sm:$0x1]
    %v1898 = vlaneseq
    %v1899 = vshrl.u32 %v1898, 7
    %v1900 = vsub.s32 0, %v1899
    %v1901 = vrot.slane %v1896, %v1900
    %vm1903 = vcmask 523264
    %v1905 = vsel %vm1903, %v1884, 0
    %v1908 = vsel %vm1903, %v1885, 0
    %v1911 = vsel %vm1903, %v1886, 0
    %v1914 = vsel %vm1903, %v1887, 0
    %1916 = vmatprep.subr.mxu0 0.0
    %1917 = vmatpush1.msra.mxu0 %v1888
    %1918 = vmatprep.subr.mxu0 0.0
    %1919 = vmatpush1.msra.mxu0 %v1889
    %1920 = vmatprep.subr.mxu0 0.0
    %1921 = vmatpush1.msra.mxu0 %v1890
    %1922 = vmatprep.subr.mxu0 0.0
    %1923 = vmatpush1.msra.mxu0 %v1891
    %1924 = vmatprep.subr.mxu0 0.0
    %1925 = vmatpush1.msra.mxu0 %v1892
    %1926 = vmatprep.subr.mxu0 0.0
    %1927 = vmatpush1.msra.mxu0 %v1893
    %1928 = vmatprep.subr.mxu0 0.0
    %1929 = vmatpush1.msra.mxu0 %v1894
    %1930 = vmatprep.subr.mxu0 0.0
    %1931 = vmatpush1.msra.mxu0 %v1895
    %1932 = vmatprep.subr.mxu0 0.0
    %1933 = vmatpush1.msra.mxu0 0.0
    %1934 = vmatprep.subr.mxu0 0.0
    %1935 = vmatpush1.msra.mxu0 0.0
    %1936 = vmatprep.subr.mxu0 0.0
    %1937 = vmatpush1.msra.mxu0 0.0
    %1938 = vmatprep.subr.mxu0 0.0
    %1939 = vmatpush1.msra.mxu0 0.0
    %1940 = vmatprep.subr.mxu0 0.0
    %1941 = vmatpush1.msra.mxu0 0.0
    %1942 = vmatprep.subr.mxu0 0.0
    %1943 = vmatpush1.msra.mxu0 0.0
    %1944 = vmatprep.subr.mxu0 0.0
    %1945 = vmatpush1.msra.mxu0 0.0
    %1946 = vmatprep.subr.mxu0 0.0
    %1947 = vmatpush1.msra.mxu0 0.0
    %1948 = vmatprep.subr.mxu0 0.0
    %1949 = vmatpush1.msra.mxu0 0.0
    %1950 = vmatprep.subr.mxu0 0.0
    %1951 = vmatpush1.msra.mxu0 0.0
    %1952 = vmatprep.subr.mxu0 0.0
    %1953 = vmatpush1.msra.mxu0 0.0
    %1954 = vmatprep.subr.mxu0 0.0
    %1955 = vmatpush1.msra.mxu0 0.0
    %1956 = vmatprep.subr.mxu0 0.0
    %1957 = vmatpush1.msra.mxu0 0.0
    %1958 = vmatprep.subr.mxu0 0.0
    %1959 = vmatpush1.msra.mxu0 0.0
    %1960 = vmatprep.subr.mxu0 0.0
    %1961 = vmatpush1.msra.mxu0 0.0
    %1962 = vmatprep.subr.mxu0 0.0
    %1963 = vmatpush1.msra.mxu0 0.0
    %1964 = vmatprep.subr.mxu0 0.0
    %1965 = vmatpush1.msra.mxu0 0.0
    %1966 = vmatprep.subr.mxu0 0.0
    %1967 = vmatpush1.msra.mxu0 0.0
    %1968 = vmatprep.subr.mxu0 0.0
    %1969 = vmatpush1.msra.mxu0 0.0
    %1970 = vmatprep.subr.mxu0 0.0
    %1971 = vmatpush1.msra.mxu0 0.0
    %1972 = vmatprep.subr.mxu0 0.0
    %1973 = vmatpush1.msra.mxu0 0.0
    %1974 = vmatprep.subr.mxu0 0.0
    %1975 = vmatpush1.msra.mxu0 0.0
    %1976 = vmatprep.subr.mxu0 0.0
    %1977 = vmatpush1.msra.mxu0 0.0
    %1978 = vmatprep.subr.mxu0 0.0
    %1979 = vmatpush1.msra.mxu0 0.0
    %1980 = vmatprep.mubr.f32.mxu0 0.0
    %1981 = vmatmul.mubr.f32.gmra.mrb[0].mxu0 %v1905
    %v1982 = vpop.f32.mrb[0].mxu0
    %v1983 = vadd.f32 %v1901, %v1982
    %v1984 = vpop.f32.mrb[0].mxu0
    %1985 = vmatprep.mubr.f32.mxu0 0.0
    %1986 = vmatmul.mubr.f32.gmra.mrb[0].mxu0 %v1908
    %v1987 = vpop.f32.mrb[0].mxu0
    %v1988 = vadd.f32 %v1901, %v1987
    %v1989 = vpop.f32.mrb[0].mxu0
    %1990 = vmatprep.mubr.f32.mxu0 0.0
    %1991 = vmatmul.mubr.f32.gmra.mrb[0].mxu0 %v1911
    %v1992 = vpop.f32.mrb[0].mxu0
    %v1993 = vadd.f32 %v1901, %v1992
    %v1994 = vpop.f32.mrb[0].mxu0
    %1995 = vmatprep.mubr.f32.mxu0 0.0
    %1996 = vmatmul.mubr.f32.gmra.mrb[0].mxu0 %v1914
    %v1997 = vpop.f32.mrb[0].mxu0
    %v1998 = vadd.f32 %v1901, %v1997
    %v1999 = vpop.f32.mrb[0].mxu0
    %2000 = vdwg.mxu0
    %v2001 = vadd.f32 %v1772, %v1983
    %v2002 = vadd.f32 %v1773, %v1988
    %v2003 = vadd.f32 %v1774, %v1993
    %v2004 = vadd.f32 %v1775, %v1998
    %v2005 = vld [vmem:[%s19] sm:$0x1]
    %v2006 = vld [vmem:[%s20] sm:$0x1]
    %v2007 = vsel %vm291, %v2001, 0.0
    %2008 = vadd.xlane.f32.xlu0 %v2007
    %v2009 = vpop.xlane.xlu0 %2008
    %v2010 = vsel %vm291, %v2002, 0.0
    %2011 = vadd.xlane.f32.xlu0 %v2010
    %v2012 = vpop.xlane.xlu0 %2011
    %v2013 = vsel %vm291, %v2003, 0.0
    %2014 = vadd.xlane.f32.xlu0 %v2013
    %v2015 = vpop.xlane.xlu0 %2014
    %v2016 = vsel %vm291, %v2004, 0.0
    %2017 = vadd.xlane.f32.xlu0 %v2016
    %v2018 = vpop.xlane.xlu0 %2017
    %v2019 = vmul.f32 %v2009, %v1715
    %v2020 = vmul.f32 %v2012, %v1715
    %v2021 = vmul.f32 %v2015, %v1715
    %v2022 = vmul.f32 %v2018, %v1715
    %v2023 = vsub.f32 %v2001, %v2019
    %v2024 = vsub.f32 %v2002, %v2020
    %v2025 = vsub.f32 %v2003, %v2021
    %v2026 = vsub.f32 %v2004, %v2022
    %v2027 = vmul.f32 %v2023, %v2023
    %v2028 = vmul.f32 %v2024, %v2024
    %v2029 = vmul.f32 %v2025, %v2025
    %v2030 = vmul.f32 %v2026, %v2026
    %v2031 = vsel %vm291, %v2027, 0.0
    %2032 = vadd.xlane.f32.xlu0 %v2031
    %v2033 = vpop.xlane.xlu0 %2032
    %v2034 = vsel %vm291, %v2028, 0.0
    %2035 = vadd.xlane.f32.xlu0 %v2034
    %v2036 = vpop.xlane.xlu0 %2035
    %v2037 = vsel %vm291, %v2029, 0.0
    %2038 = vadd.xlane.f32.xlu0 %v2037
    %v2039 = vpop.xlane.xlu0 %2038
    %v2040 = vsel %vm291, %v2030, 0.0
    %2041 = vadd.xlane.f32.xlu0 %v2040
    %v2042 = vpop.xlane.xlu0 %2041
    %v2043 = vmul.f32 %v2033, %v1715
    %v2044 = vmul.f32 %v2036, %v1715
    %v2045 = vmul.f32 %v2039, %v1715
    %v2046 = vmul.f32 %v2042, %v1715
    %v2047 = vadd.f32 %v2043, 1e-05
    %v2048 = vadd.f32 %v2044, 1e-05
    %v2049 = vadd.f32 %v2045, 1e-05
    %v2050 = vadd.f32 %v2046, 1e-05
    %v2051 = vrsqrt.pop %v2047
    %v2052 = vrsqrt.pop %v2048
    %v2053 = vrsqrt.pop %v2049
    %v2054 = vrsqrt.pop %v2050
    %v2055 = vmul.f32 %v2023, %v2051
    %v2056 = vmul.f32 %v2024, %v2052
    %v2057 = vmul.f32 %v2025, %v2053
    %v2058 = vmul.f32 %v2026, %v2054
    %v2060 = vlaneseq
    %v2061 = vshrl.u32 %v2060, 7
    %v2062 = vsub.s32 0, %v2061
    %v2063 = vrot.slane %v2005, %v2062
    %v2065 = vmul.f32 %v2055, %v2063
    %v2066 = vmul.f32 %v2056, %v2063
    %v2067 = vmul.f32 %v2057, %v2063
    %v2068 = vmul.f32 %v2058, %v2063
    %v2070 = vlaneseq
    %v2071 = vshrl.u32 %v2070, 7
    %v2072 = vsub.s32 0, %v2071
    %v2073 = vrot.slane %v2006, %v2072
    %v2075 = vadd.f32 %v2065, %v2073
    %v2076 = vadd.f32 %v2066, %v2073
    %v2077 = vadd.f32 %v2067, %v2073
    %v2078 = vadd.f32 %v2068, %v2073
    %s2079 = scalar_lea.vmem %s5, 32
    %v2080 = vld [vmem:[%s2079] sm:$0xff]
    %v2081 = vld [vmem:[%s2079 + $0x8] sm:$0xff]
    %v2082 = vld [vmem:[%s2079 + $0x10] sm:$0xff]
    %v2083 = vld [vmem:[%s2079 + $0x18] sm:$0xff]
    %s2084 = scalar_lea.vmem %s8, 1
    %v2085 = vld [vmem:[%s2084] sm:$0x1]
    %v2087 = vlaneseq
    %v2088 = vshrl.u32 %v2087, 7
    %v2089 = vsub.s32 0, %v2088
    %v2090 = vrot.slane %v2085, %v2089
    %v2093 = vsel %vm291, %v2075, 0
    %v2096 = vsel %vm291, %v2076, 0
    %v2099 = vsel %vm291, %v2077, 0
    %v2102 = vsel %vm291, %v2078, 0
    %2104 = vmatprep.subr.mxu0 0.0
    %2105 = vmatpush1.msra.mxu0 %v2080
    %2106 = vmatprep.subr.mxu0 0.0
    %2107 = vmatpush1.msra.mxu0 %v2081
    %2108 = vmatprep.subr.mxu0 0.0
    %2109 = vmatpush1.msra.mxu0 %v2082
    %2110 = vmatprep.subr.mxu0 0.0
    %2111 = vmatpush1.msra.mxu0 %v2083
    %2112 = vmatprep.subr.mxu0 0.0
    %2113 = vmatpush1.msra.mxu0 0.0
    %2114 = vmatprep.subr.mxu0 0.0
    %2115 = vmatpush1.msra.mxu0 0.0
    %2116 = vmatprep.subr.mxu0 0.0
    %2117 = vmatpush1.msra.mxu0 0.0
    %2118 = vmatprep.subr.mxu0 0.0
    %2119 = vmatpush1.msra.mxu0 0.0
    %2120 = vmatprep.subr.mxu0 0.0
    %2121 = vmatpush1.msra.mxu0 0.0
    %2122 = vmatprep.subr.mxu0 0.0
    %2123 = vmatpush1.msra.mxu0 0.0
    %2124 = vmatprep.subr.mxu0 0.0
    %2125 = vmatpush1.msra.mxu0 0.0
    %2126 = vmatprep.subr.mxu0 0.0
    %2127 = vmatpush1.msra.mxu0 0.0
    %2128 = vmatprep.subr.mxu0 0.0
    %2129 = vmatpush1.msra.mxu0 0.0
    %2130 = vmatprep.subr.mxu0 0.0
    %2131 = vmatpush1.msra.mxu0 0.0
    %2132 = vmatprep.subr.mxu0 0.0
    %2133 = vmatpush1.msra.mxu0 0.0
    %2134 = vmatprep.subr.mxu0 0.0
    %2135 = vmatpush1.msra.mxu0 0.0
    %2136 = vmatprep.subr.mxu0 0.0
    %2137 = vmatpush1.msra.mxu0 0.0
    %2138 = vmatprep.subr.mxu0 0.0
    %2139 = vmatpush1.msra.mxu0 0.0
    %2140 = vmatprep.subr.mxu0 0.0
    %2141 = vmatpush1.msra.mxu0 0.0
    %2142 = vmatprep.subr.mxu0 0.0
    %2143 = vmatpush1.msra.mxu0 0.0
    %2144 = vmatprep.subr.mxu0 0.0
    %2145 = vmatpush1.msra.mxu0 0.0
    %2146 = vmatprep.subr.mxu0 0.0
    %2147 = vmatpush1.msra.mxu0 0.0
    %2148 = vmatprep.subr.mxu0 0.0
    %2149 = vmatpush1.msra.mxu0 0.0
    %2150 = vmatprep.subr.mxu0 0.0
    %2151 = vmatpush1.msra.mxu0 0.0
    %2152 = vmatprep.subr.mxu0 0.0
    %2153 = vmatpush1.msra.mxu0 0.0
    %2154 = vmatprep.subr.mxu0 0.0
    %2155 = vmatpush1.msra.mxu0 0.0
    %2156 = vmatprep.subr.mxu0 0.0
    %2157 = vmatpush1.msra.mxu0 0.0
    %2158 = vmatprep.subr.mxu0 0.0
    %2159 = vmatpush1.msra.mxu0 0.0
    %2160 = vmatprep.subr.mxu0 0.0
    %2161 = vmatpush1.msra.mxu0 0.0
    %2162 = vmatprep.subr.mxu0 0.0
    %2163 = vmatpush1.msra.mxu0 0.0
    %2164 = vmatprep.subr.mxu0 0.0
    %2165 = vmatpush1.msra.mxu0 0.0
    %2166 = vmatprep.subr.mxu0 0.0
    %2167 = vmatpush1.msra.mxu0 0.0
    %2168 = vmatprep.mubr.f32.mxu0 0.0
    %2169 = vmatmul.mubr.f32.gmra.mrb[0].mxu0 %v2093
    %v2170 = vpop.f32.mrb[0].mxu0
    %v2171 = vadd.f32 %v2090, %v2170
    %v2172 = vpop.f32.mrb[0].mxu0
    %2173 = vmatprep.mubr.f32.mxu0 0.0
    %2174 = vmatmul.mubr.f32.gmra.mrb[0].mxu0 %v2096
    %v2175 = vpop.f32.mrb[0].mxu0
    %v2176 = vadd.f32 %v2090, %v2175
    %v2177 = vpop.f32.mrb[0].mxu0
    %2178 = vmatprep.mubr.f32.mxu0 0.0
    %2179 = vmatmul.mubr.f32.gmra.mrb[0].mxu0 %v2099
    %v2180 = vpop.f32.mrb[0].mxu0
    %v2181 = vadd.f32 %v2090, %v2180
    %v2182 = vpop.f32.mrb[0].mxu0
    %2183 = vmatprep.mubr.f32.mxu0 0.0
    %2184 = vmatmul.mubr.f32.gmra.mrb[0].mxu0 %v2102
    %v2185 = vpop.f32.mrb[0].mxu0
    %v2186 = vadd.f32 %v2090, %v2185
    %v2187 = vpop.f32.mrb[0].mxu0
    %2188 = vdwg.mxu0
    %s2189 = scalar_lea.vmem %s6, 32
    %v2190 = vld [vmem:[%s2189] sm:$0xff]
    %v2191 = vld [vmem:[%s2189 + $0x8] sm:$0xff]
    %v2192 = vld [vmem:[%s2189 + $0x10] sm:$0xff]
    %v2193 = vld [vmem:[%s2189 + $0x18] sm:$0xff]
    %s2194 = scalar_lea.vmem %s9, 1
    %v2195 = vld [vmem:[%s2194] sm:$0x1]
    %v2197 = vlaneseq
    %v2198 = vshrl.u32 %v2197, 7
    %v2199 = vsub.s32 0, %v2198
    %v2200 = vrot.slane %v2195, %v2199
    %2202 = vmatprep.subr.mxu0 0.0
    %2203 = vmatpush1.msra.mxu0 %v2190
    %2204 = vmatprep.subr.mxu0 0.0
    %2205 = vmatpush1.msra.mxu0 %v2191
    %2206 = vmatprep.subr.mxu0 0.0
    %2207 = vmatpush1.msra.mxu0 %v2192
    %2208 = vmatprep.subr.mxu0 0.0
    %2209 = vmatpush1.msra.mxu0 %v2193
    %2210 = vmatprep.subr.mxu0 0.0
    %2211 = vmatpush1.msra.mxu0 0.0
    %2212 = vmatprep.subr.mxu0 0.0
    %2213 = vmatpush1.msra.mxu0 0.0
    %2214 = vmatprep.subr.mxu0 0.0
    %2215 = vmatpush1.msra.mxu0 0.0
    %2216 = vmatprep.subr.mxu0 0.0
    %2217 = vmatpush1.msra.mxu0 0.0
    %2218 = vmatprep.subr.mxu0 0.0
    %2219 = vmatpush1.msra.mxu0 0.0
    %2220 = vmatprep.subr.mxu0 0.0
    %2221 = vmatpush1.msra.mxu0 0.0
    %2222 = vmatprep.subr.mxu0 0.0
    %2223 = vmatpush1.msra.mxu0 0.0
    %2224 = vmatprep.subr.mxu0 0.0
    %2225 = vmatpush1.msra.mxu0 0.0
    %2226 = vmatprep.subr.mxu0 0.0
    %2227 = vmatpush1.msra.mxu0 0.0
    %2228 = vmatprep.subr.mxu0 0.0
    %2229 = vmatpush1.msra.mxu0 0.0
    %2230 = vmatprep.subr.mxu0 0.0
    %2231 = vmatpush1.msra.mxu0 0.0
    %2232 = vmatprep.subr.mxu0 0.0
    %2233 = vmatpush1.msra.mxu0 0.0
    %2234 = vmatprep.subr.mxu0 0.0
    %2235 = vmatpush1.msra.mxu0 0.0
    %2236 = vmatprep.subr.mxu0 0.0
    %2237 = vmatpush1.msra.mxu0 0.0
    %2238 = vmatprep.subr.mxu0 0.0
    %2239 = vmatpush1.msra.mxu0 0.0
    %2240 = vmatprep.subr.mxu0 0.0
    %2241 = vmatpush1.msra.mxu0 0.0
    %2242 = vmatprep.subr.mxu0 0.0
    %2243 = vmatpush1.msra.mxu0 0.0
    %2244 = vmatprep.subr.mxu0 0.0
    %2245 = vmatpush1.msra.mxu0 0.0
    %2246 = vmatprep.subr.mxu0 0.0
    %2247 = vmatpush1.msra.mxu0 0.0
    %2248 = vmatprep.subr.mxu0 0.0
    %2249 = vmatpush1.msra.mxu0 0.0
    %2250 = vmatprep.subr.mxu0 0.0
    %2251 = vmatpush1.msra.mxu0 0.0
    %2252 = vmatprep.subr.mxu0 0.0
    %2253 = vmatpush1.msra.mxu0 0.0
    %2254 = vmatprep.subr.mxu0 0.0
    %2255 = vmatpush1.msra.mxu0 0.0
    %2256 = vmatprep.subr.mxu0 0.0
    %2257 = vmatpush1.msra.mxu0 0.0
    %2258 = vmatprep.subr.mxu0 0.0
    %2259 = vmatpush1.msra.mxu0 0.0
    %2260 = vmatprep.subr.mxu0 0.0
    %2261 = vmatpush1.msra.mxu0 0.0
    %2262 = vmatprep.subr.mxu0 0.0
    %2263 = vmatpush1.msra.mxu0 0.0
    %2264 = vmatprep.subr.mxu0 0.0
    %2265 = vmatpush1.msra.mxu0 0.0
    %2266 = vmatprep.mubr.f32.mxu0 0.0
    %2267 = vmatmul.mubr.f32.gmra.mrb[0].mxu0 %v2093
    %v2268 = vpop.f32.mrb[0].mxu0
    %v2269 = vadd.f32 %v2200, %v2268
    %v2270 = vpop.f32.mrb[0].mxu0
    %2271 = vmatprep.mubr.f32.mxu0 0.0
    %2272 = vmatmul.mubr.f32.gmra.mrb[0].mxu0 %v2096
    %v2273 = vpop.f32.mrb[0].mxu0
    %v2274 = vadd.f32 %v2200, %v2273
    %v2275 = vpop.f32.mrb[0].mxu0
    %2276 = vmatprep.mubr.f32.mxu0 0.0
    %2277 = vmatmul.mubr.f32.gmra.mrb[0].mxu0 %v2099
    %v2278 = vpop.f32.mrb[0].mxu0
    %v2279 = vadd.f32 %v2200, %v2278
    %v2280 = vpop.f32.mrb[0].mxu0
    %2281 = vmatprep.mubr.f32.mxu0 0.0
    %2282 = vmatmul.mubr.f32.gmra.mrb[0].mxu0 %v2102
    %v2283 = vpop.f32.mrb[0].mxu0
    %v2284 = vadd.f32 %v2200, %v2283
    %v2285 = vpop.f32.mrb[0].mxu0
    %2286 = vdwg.mxu0
    %s2287 = scalar_lea.vmem %s7, 32
    %v2288 = vld [vmem:[%s2287] sm:$0xff]
    %v2289 = vld [vmem:[%s2287 + $0x8] sm:$0xff]
    %v2290 = vld [vmem:[%s2287 + $0x10] sm:$0xff]
    %v2291 = vld [vmem:[%s2287 + $0x18] sm:$0xff]
    %s2292 = scalar_lea.vmem %s10, 1
    %v2293 = vld [vmem:[%s2292] sm:$0x1]
    %v2295 = vlaneseq
    %v2296 = vshrl.u32 %v2295, 7
    %v2297 = vsub.s32 0, %v2296
    %v2298 = vrot.slane %v2293, %v2297
    %2300 = vmatprep.subr.mxu0 0.0
    %2301 = vmatpush1.msra.mxu0 %v2288
    %2302 = vmatprep.subr.mxu0 0.0
    %2303 = vmatpush1.msra.mxu0 %v2289
    %2304 = vmatprep.subr.mxu0 0.0
    %2305 = vmatpush1.msra.mxu0 %v2290
    %2306 = vmatprep.subr.mxu0 0.0
    %2307 = vmatpush1.msra.mxu0 %v2291
    %2308 = vmatprep.subr.mxu0 0.0
    %2309 = vmatpush1.msra.mxu0 0.0
    %2310 = vmatprep.subr.mxu0 0.0
    %2311 = vmatpush1.msra.mxu0 0.0
    %2312 = vmatprep.subr.mxu0 0.0
    %2313 = vmatpush1.msra.mxu0 0.0
    %2314 = vmatprep.subr.mxu0 0.0
    %2315 = vmatpush1.msra.mxu0 0.0
    %2316 = vmatprep.subr.mxu0 0.0
    %2317 = vmatpush1.msra.mxu0 0.0
    %2318 = vmatprep.subr.mxu0 0.0
    %2319 = vmatpush1.msra.mxu0 0.0
    %2320 = vmatprep.subr.mxu0 0.0
    %2321 = vmatpush1.msra.mxu0 0.0
    %2322 = vmatprep.subr.mxu0 0.0
    %2323 = vmatpush1.msra.mxu0 0.0
    %2324 = vmatprep.subr.mxu0 0.0
    %2325 = vmatpush1.msra.mxu0 0.0
    %2326 = vmatprep.subr.mxu0 0.0
    %2327 = vmatpush1.msra.mxu0 0.0
    %2328 = vmatprep.subr.mxu0 0.0
    %2329 = vmatpush1.msra.mxu0 0.0
    %2330 = vmatprep.subr.mxu0 0.0
    %2331 = vmatpush1.msra.mxu0 0.0
    %2332 = vmatprep.subr.mxu0 0.0
    %2333 = vmatpush1.msra.mxu0 0.0
    %2334 = vmatprep.subr.mxu0 0.0
    %2335 = vmatpush1.msra.mxu0 0.0
    %2336 = vmatprep.subr.mxu0 0.0
    %2337 = vmatpush1.msra.mxu0 0.0
    %2338 = vmatprep.subr.mxu0 0.0
    %2339 = vmatpush1.msra.mxu0 0.0
    %2340 = vmatprep.subr.mxu0 0.0
    %2341 = vmatpush1.msra.mxu0 0.0
    %2342 = vmatprep.subr.mxu0 0.0
    %2343 = vmatpush1.msra.mxu0 0.0
    %2344 = vmatprep.subr.mxu0 0.0
    %2345 = vmatpush1.msra.mxu0 0.0
    %2346 = vmatprep.subr.mxu0 0.0
    %2347 = vmatpush1.msra.mxu0 0.0
    %2348 = vmatprep.subr.mxu0 0.0
    %2349 = vmatpush1.msra.mxu0 0.0
    %2350 = vmatprep.subr.mxu0 0.0
    %2351 = vmatpush1.msra.mxu0 0.0
    %2352 = vmatprep.subr.mxu0 0.0
    %2353 = vmatpush1.msra.mxu0 0.0
    %2354 = vmatprep.subr.mxu0 0.0
    %2355 = vmatpush1.msra.mxu0 0.0
    %2356 = vmatprep.subr.mxu0 0.0
    %2357 = vmatpush1.msra.mxu0 0.0
    %2358 = vmatprep.subr.mxu0 0.0
    %2359 = vmatpush1.msra.mxu0 0.0
    %2360 = vmatprep.subr.mxu0 0.0
    %2361 = vmatpush1.msra.mxu0 0.0
    %2362 = vmatprep.subr.mxu0 0.0
    %2363 = vmatpush1.msra.mxu0 0.0
    %2364 = vmatprep.mubr.f32.mxu0 0.0
    %2365 = vmatmul.mubr.f32.gmra.mrb[0].mxu0 %v2093
    %v2366 = vpop.f32.mrb[0].mxu0
    %v2367 = vadd.f32 %v2298, %v2366
    %v2368 = vpop.f32.mrb[0].mxu0
    %2369 = vmatprep.mubr.f32.mxu0 0.0
    %2370 = vmatmul.mubr.f32.gmra.mrb[0].mxu0 %v2096
    %v2371 = vpop.f32.mrb[0].mxu0
    %v2372 = vadd.f32 %v2298, %v2371
    %v2373 = vpop.f32.mrb[0].mxu0
    %2374 = vmatprep.mubr.f32.mxu0 0.0
    %2375 = vmatmul.mubr.f32.gmra.mrb[0].mxu0 %v2099
    %v2376 = vpop.f32.mrb[0].mxu0
    %v2377 = vadd.f32 %v2298, %v2376
    %v2378 = vpop.f32.mrb[0].mxu0
    %2379 = vmatprep.mubr.f32.mxu0 0.0
    %2380 = vmatmul.mubr.f32.gmra.mrb[0].mxu0 %v2102
    %v2381 = vpop.f32.mrb[0].mxu0
    %v2382 = vadd.f32 %v2298, %v2381
    %v2383 = vpop.f32.mrb[0].mxu0
    %2384 = vdwg.mxu0
    %v2385 = vmul.f32 %v2171, 0.35355338
    %v2386 = vmul.f32 %v2176, 0.35355338
    %v2387 = vmul.f32 %v2181, 0.35355338
    %v2388 = vmul.f32 %v2186, 0.35355338
    %v2389 = vmul.f32 %v2269, %v260
    %v2390 = vmul.f32 %v2274, %v260
    %v2391 = vmul.f32 %v2279, %v260
    %v2392 = vmul.f32 %v2284, %v260
    %v2394 = vsel %vm291, %v2385, 0
    %v2397 = vsel %vm291, %v2386, 0
    %v2400 = vsel %vm291, %v2387, 0
    %v2403 = vsel %vm291, %v2388, 0
    %v2406 = vsel %vm291, %v2389, 0
    %v2409 = vsel %vm291, %v2390, 0
    %v2412 = vsel %vm291, %v2391, 0
    %v2415 = vsel %vm291, %v2392, 0
    %2417 = vmatprep.subr.mxu0 0.0
    %2418 = vmatpush1.xpose.msra.mxu0 %v2406
    %2419 = vmatprep.subr.mxu0 0.0
    %2420 = vmatpush1.xpose.msra.mxu0 %v2409
    %2421 = vmatprep.subr.mxu0 0.0
    %2422 = vmatpush1.xpose.msra.mxu0 %v2412
    %2423 = vmatprep.subr.mxu0 0.0
    %2424 = vmatpush1.xpose.msra.mxu0 %v2415
    %2425 = vmatprep.subr.mxu0 0.0
    %2426 = vmatpush1.xpose.msra.mxu0 0.0
    %2427 = vmatprep.subr.mxu0 0.0
    %2428 = vmatpush1.xpose.msra.mxu0 0.0
    %2429 = vmatprep.subr.mxu0 0.0
    %2430 = vmatpush1.xpose.msra.mxu0 0.0
    %2431 = vmatprep.subr.mxu0 0.0
    %2432 = vmatpush1.xpose.msra.mxu0 0.0
    %2433 = vmatprep.subr.mxu0 0.0
    %2434 = vmatpush1.xpose.msra.mxu0 0.0
    %2435 = vmatprep.subr.mxu0 0.0
    %2436 = vmatpush1.xpose.msra.mxu0 0.0
    %2437 = vmatprep.subr.mxu0 0.0
    %2438 = vmatpush1.xpose.msra.mxu0 0.0
    %2439 = vmatprep.subr.mxu0 0.0
    %2440 = vmatpush1.xpose.msra.mxu0 0.0
    %2441 = vmatprep.subr.mxu0 0.0
    %2442 = vmatpush1.xpose.msra.mxu0 0.0
    %2443 = vmatprep.subr.mxu0 0.0
    %2444 = vmatpush1.xpose.msra.mxu0 0.0
    %2445 = vmatprep.subr.mxu0 0.0
    %2446 = vmatpush1.xpose.msra.mxu0 0.0
    %2447 = vmatprep.subr.mxu0 0.0
    %2448 = vmatpush1.xpose.msra.mxu0 0.0
    %2449 = vmatprep.subr.mxu0 0.0
    %2450 = vmatpush1.xpose.msra.mxu0 0.0
    %2451 = vmatprep.subr.mxu0 0.0
    %2452 = vmatpush1.xpose.msra.mxu0 0.0
    %2453 = vmatprep.subr.mxu0 0.0
    %2454 = vmatpush1.xpose.msra.mxu0 0.0
    %2455 = vmatprep.subr.mxu0 0.0
    %2456 = vmatpush1.xpose.msra.mxu0 0.0
    %2457 = vmatprep.subr.mxu0 0.0
    %2458 = vmatpush1.xpose.msra.mxu0 0.0
    %2459 = vmatprep.subr.mxu0 0.0
    %2460 = vmatpush1.xpose.msra.mxu0 0.0
    %2461 = vmatprep.subr.mxu0 0.0
    %2462 = vmatpush1.xpose.msra.mxu0 0.0
    %2463 = vmatprep.subr.mxu0 0.0
    %2464 = vmatpush1.xpose.msra.mxu0 0.0
    %2465 = vmatprep.subr.mxu0 0.0
    %2466 = vmatpush1.xpose.msra.mxu0 0.0
    %2467 = vmatprep.subr.mxu0 0.0
    %2468 = vmatpush1.xpose.msra.mxu0 0.0
    %2469 = vmatprep.subr.mxu0 0.0
    %2470 = vmatpush1.xpose.msra.mxu0 0.0
    %2471 = vmatprep.subr.mxu0 0.0
    %2472 = vmatpush1.xpose.msra.mxu0 0.0
    %2473 = vmatprep.subr.mxu0 0.0
    %2474 = vmatpush1.xpose.msra.mxu0 0.0
    %2475 = vmatprep.subr.mxu0 0.0
    %2476 = vmatpush1.xpose.msra.mxu0 0.0
    %2477 = vmatprep.subr.mxu0 0.0
    %2478 = vmatpush1.xpose.msra.mxu0 0.0
    %2479 = vmatprep.subr.mxu0 0.0
    %2480 = vmatpush1.xpose.msra.mxu0 0.0
    %2481 = vmatprep.mubr.f32.mxu0 0.0
    %2482 = vmatmul.mubr.f32.gmra.mrb[0].mxu0 %v2394
    %v2483 = vpop.f32.mrb[0].mxu0
    %v2484 = vadd.f32 %v276, %v2483
    %v2485 = vpop.f32.mrb[0].mxu0
    %2486 = vmatprep.mubr.f32.mxu0 0.0
    %2487 = vmatmul.mubr.f32.gmra.mrb[0].mxu0 %v2397
    %v2488 = vpop.f32.mrb[0].mxu0
    %v2489 = vadd.f32 %v277, %v2488
    %v2490 = vpop.f32.mrb[0].mxu0
    %2491 = vmatprep.mubr.f32.mxu0 0.0
    %2492 = vmatmul.mubr.f32.gmra.mrb[0].mxu0 %v2400
    %v2493 = vpop.f32.mrb[0].mxu0
    %v2494 = vadd.f32 %v278, %v2493
    %v2495 = vpop.f32.mrb[0].mxu0
    %2496 = vmatprep.mubr.f32.mxu0 0.0
    %2497 = vmatmul.mubr.f32.gmra.mrb[0].mxu0 %v2403
    %v2498 = vpop.f32.mrb[0].mxu0
    %v2499 = vadd.f32 %v279, %v2498
    %v2500 = vpop.f32.mrb[0].mxu0
    %2501 = vdwg.mxu0
    %v2502 = vsel %vm291, %v2484, -inf
    %2503 = vmax.xlane.f32.xlu0 %v2502
    %v2504 = vpop.xlane.xlu0 %2503
    %v2505 = vsel %vm291, %v2489, -inf
    %2506 = vmax.xlane.f32.xlu0 %v2505
    %v2507 = vpop.xlane.xlu0 %2506
    %v2508 = vsel %vm291, %v2494, -inf
    %2509 = vmax.xlane.f32.xlu0 %v2508
    %v2510 = vpop.xlane.xlu0 %2509
    %v2511 = vsel %vm291, %v2499, -inf
    %2512 = vmax.xlane.f32.xlu0 %v2511
    %v2513 = vpop.xlane.xlu0 %2512
    %v2514 = vsub.f32 %v2484, %v2504
    %v2515 = vsub.f32 %v2489, %v2507
    %v2516 = vsub.f32 %v2494, %v2510
    %v2517 = vsub.f32 %v2499, %v2513
    %v2518 = vmul.f32 %v2514, 1.442695
    %v2519 = vpow.pop %v2518
    %v2520 = vmul.f32 %v2515, 1.442695
    %v2521 = vpow.pop %v2520
    %v2522 = vmul.f32 %v2516, 1.442695
    %v2523 = vpow.pop %v2522
    %v2524 = vmul.f32 %v2517, 1.442695
    %v2525 = vpow.pop %v2524
    %v2526 = vsel %vm291, %v2519, 0.0
    %2527 = vadd.xlane.f32.xlu0 %v2526
    %v2528 = vpop.xlane.xlu0 %2527
    %v2529 = vsel %vm291, %v2521, 0.0
    %2530 = vadd.xlane.f32.xlu0 %v2529
    %v2531 = vpop.xlane.xlu0 %2530
    %v2532 = vsel %vm291, %v2523, 0.0
    %2533 = vadd.xlane.f32.xlu0 %v2532
    %v2534 = vpop.xlane.xlu0 %2533
    %v2535 = vsel %vm291, %v2525, 0.0
    %2536 = vadd.xlane.f32.xlu0 %v2535
    %v2537 = vpop.xlane.xlu0 %2536
    %v2538 = vrcp.pop %v2528
    %v2539 = vrcp.pop %v2531
    %v2540 = vrcp.pop %v2534
    %v2541 = vrcp.pop %v2537
    %v2542 = vmul.f32 %v2519, %v2538
    %v2543 = vmul.f32 %v2521, %v2539
    %v2544 = vmul.f32 %v2523, %v2540
    %v2545 = vmul.f32 %v2525, %v2541
    %v2546 = vmul.f32 %v2367, %v260
    %v2547 = vmul.f32 %v2372, %v260
    %v2548 = vmul.f32 %v2377, %v260
    %v2549 = vmul.f32 %v2382, %v260
    %v2550 = vmul.f32 %v2269, %v265
    %v2551 = vmul.f32 %v2274, %v265
    %v2552 = vmul.f32 %v2279, %v265
    %v2553 = vmul.f32 %v2284, %v265
    %v2555 = vsel %vm291, %v2550, 0
    %v2558 = vsel %vm291, %v2551, 0
    %v2561 = vsel %vm291, %v2552, 0
    %v2564 = vsel %vm291, %v2553, 0
    %2566 = vmatprep.subr.mxu0 0.0
    %2567 = vmatpush1.xpose.msra.mxu0 %v2555
    %2568 = vmatprep.subr.mxu0 0.0
    %2569 = vmatpush1.xpose.msra.mxu0 %v2558
    %2570 = vmatprep.subr.mxu0 0.0
    %2571 = vmatpush1.xpose.msra.mxu0 %v2561
    %2572 = vmatprep.subr.mxu0 0.0
    %2573 = vmatpush1.xpose.msra.mxu0 %v2564
    %2574 = vmatprep.subr.mxu0 0.0
    %2575 = vmatpush1.xpose.msra.mxu0 0.0
    %2576 = vmatprep.subr.mxu0 0.0
    %2577 = vmatpush1.xpose.msra.mxu0 0.0
    %2578 = vmatprep.subr.mxu0 0.0
    %2579 = vmatpush1.xpose.msra.mxu0 0.0
    %2580 = vmatprep.subr.mxu0 0.0
    %2581 = vmatpush1.xpose.msra.mxu0 0.0
    %2582 = vmatprep.subr.mxu0 0.0
    %2583 = vmatpush1.xpose.msra.mxu0 0.0
    %2584 = vmatprep.subr.mxu0 0.0
    %2585 = vmatpush1.xpose.msra.mxu0 0.0
    %2586 = vmatprep.subr.mxu0 0.0
    %2587 = vmatpush1.xpose.msra.mxu0 0.0
    %2588 = vmatprep.subr.mxu0 0.0
    %2589 = vmatpush1.xpose.msra.mxu0 0.0
    %2590 = vmatprep.subr.mxu0 0.0
    %2591 = vmatpush1.xpose.msra.mxu0 0.0
    %2592 = vmatprep.subr.mxu0 0.0
    %2593 = vmatpush1.xpose.msra.mxu0 0.0
    %2594 = vmatprep.subr.mxu0 0.0
    %2595 = vmatpush1.xpose.msra.mxu0 0.0
    %2596 = vmatprep.subr.mxu0 0.0
    %2597 = vmatpush1.xpose.msra.mxu0 0.0
    %2598 = vmatprep.subr.mxu0 0.0
    %2599 = vmatpush1.xpose.msra.mxu0 0.0
    %2600 = vmatprep.subr.mxu0 0.0
    %2601 = vmatpush1.xpose.msra.mxu0 0.0
    %2602 = vmatprep.subr.mxu0 0.0
    %2603 = vmatpush1.xpose.msra.mxu0 0.0
    %2604 = vmatprep.subr.mxu0 0.0
    %2605 = vmatpush1.xpose.msra.mxu0 0.0
    %2606 = vmatprep.subr.mxu0 0.0
    %2607 = vmatpush1.xpose.msra.mxu0 0.0
    %2608 = vmatprep.subr.mxu0 0.0
    %2609 = vmatpush1.xpose.msra.mxu0 0.0
    %2610 = vmatprep.subr.mxu0 0.0
    %2611 = vmatpush1.xpose.msra.mxu0 0.0
    %2612 = vmatprep.subr.mxu0 0.0
    %2613 = vmatpush1.xpose.msra.mxu0 0.0
    %2614 = vmatprep.subr.mxu0 0.0
    %2615 = vmatpush1.xpose.msra.mxu0 0.0
    %2616 = vmatprep.subr.mxu0 0.0
    %2617 = vmatpush1.xpose.msra.mxu0 0.0
    %2618 = vmatprep.subr.mxu0 0.0
    %2619 = vmatpush1.xpose.msra.mxu0 0.0
    %2620 = vmatprep.subr.mxu0 0.0
    %2621 = vmatpush1.xpose.msra.mxu0 0.0
    %2622 = vmatprep.subr.mxu0 0.0
    %2623 = vmatpush1.xpose.msra.mxu0 0.0
    %2624 = vmatprep.subr.mxu0 0.0
    %2625 = vmatpush1.xpose.msra.mxu0 0.0
    %2626 = vmatprep.subr.mxu0 0.0
    %2627 = vmatpush1.xpose.msra.mxu0 0.0
    %2628 = vmatprep.subr.mxu0 0.0
    %2629 = vmatpush1.xpose.msra.mxu0 0.0
    %2630 = vmatprep.mubr.f32.mxu0 0.0
    %2631 = vmatmul.mubr.f32.gmra.mrb[0].mxu0 %v2394
    %v2632 = vpop.f32.mrb[0].mxu0
    %v2633 = vadd.f32 %v276, %v2632
    %v2634 = vpop.f32.mrb[0].mxu0
    %2635 = vmatprep.mubr.f32.mxu0 0.0
    %2636 = vmatmul.mubr.f32.gmra.mrb[0].mxu0 %v2397
    %v2637 = vpop.f32.mrb[0].mxu0
    %v2638 = vadd.f32 %v277, %v2637
    %v2639 = vpop.f32.mrb[0].mxu0
    %2640 = vmatprep.mubr.f32.mxu0 0.0
    %2641 = vmatmul.mubr.f32.gmra.mrb[0].mxu0 %v2400
    %v2642 = vpop.f32.mrb[0].mxu0
    %v2643 = vadd.f32 %v278, %v2642
    %v2644 = vpop.f32.mrb[0].mxu0
    %2645 = vmatprep.mubr.f32.mxu0 0.0
    %2646 = vmatmul.mubr.f32.gmra.mrb[0].mxu0 %v2403
    %v2647 = vpop.f32.mrb[0].mxu0
    %v2648 = vadd.f32 %v279, %v2647
    %v2649 = vpop.f32.mrb[0].mxu0
    %2650 = vdwg.mxu0
    %v2651 = vsel %vm291, %v2633, -inf
    %2652 = vmax.xlane.f32.xlu0 %v2651
    %v2653 = vpop.xlane.xlu0 %2652
    %v2654 = vsel %vm291, %v2638, -inf
    %2655 = vmax.xlane.f32.xlu0 %v2654
    %v2656 = vpop.xlane.xlu0 %2655
    %v2657 = vsel %vm291, %v2643, -inf
    %2658 = vmax.xlane.f32.xlu0 %v2657
    %v2659 = vpop.xlane.xlu0 %2658
    %v2660 = vsel %vm291, %v2648, -inf
    %2661 = vmax.xlane.f32.xlu0 %v2660
    %v2662 = vpop.xlane.xlu0 %2661
    %v2663 = vsub.f32 %v2633, %v2653
    %v2664 = vsub.f32 %v2638, %v2656
    %v2665 = vsub.f32 %v2643, %v2659
    %v2666 = vsub.f32 %v2648, %v2662
    %v2667 = vmul.f32 %v2663, 1.442695
    %v2668 = vpow.pop %v2667
    %v2669 = vmul.f32 %v2664, 1.442695
    %v2670 = vpow.pop %v2669
    %v2671 = vmul.f32 %v2665, 1.442695
    %v2672 = vpow.pop %v2671
    %v2673 = vmul.f32 %v2666, 1.442695
    %v2674 = vpow.pop %v2673
    %v2675 = vsel %vm291, %v2668, 0.0
    %2676 = vadd.xlane.f32.xlu0 %v2675
    %v2677 = vpop.xlane.xlu0 %2676
    %v2678 = vsel %vm291, %v2670, 0.0
    %2679 = vadd.xlane.f32.xlu0 %v2678
    %v2680 = vpop.xlane.xlu0 %2679
    %v2681 = vsel %vm291, %v2672, 0.0
    %2682 = vadd.xlane.f32.xlu0 %v2681
    %v2683 = vpop.xlane.xlu0 %2682
    %v2684 = vsel %vm291, %v2674, 0.0
    %2685 = vadd.xlane.f32.xlu0 %v2684
    %v2686 = vpop.xlane.xlu0 %2685
    %v2687 = vrcp.pop %v2677
    %v2688 = vrcp.pop %v2680
    %v2689 = vrcp.pop %v2683
    %v2690 = vrcp.pop %v2686
    %v2691 = vmul.f32 %v2668, %v2687
    %v2692 = vmul.f32 %v2670, %v2688
    %v2693 = vmul.f32 %v2672, %v2689
    %v2694 = vmul.f32 %v2674, %v2690
    %v2695 = vmul.f32 %v2367, %v265
    %v2696 = vmul.f32 %v2372, %v265
    %v2697 = vmul.f32 %v2377, %v265
    %v2698 = vmul.f32 %v2382, %v265
    %v2700 = vsel %vm291, %v2691, 0
    %v2703 = vsel %vm291, %v2692, 0
    %v2706 = vsel %vm291, %v2693, 0
    %v2709 = vsel %vm291, %v2694, 0
    %2711 = vmatprep.subr.mxu0 0.0
    %2712 = vmatpush1.msra.mxu0 %v2695
    %2713 = vmatprep.subr.mxu0 0.0
    %2714 = vmatpush1.msra.mxu0 %v2696
    %2715 = vmatprep.subr.mxu0 0.0
    %2716 = vmatpush1.msra.mxu0 %v2697
    %2717 = vmatprep.subr.mxu0 0.0
    %2718 = vmatpush1.msra.mxu0 %v2698
    %2719 = vmatprep.subr.mxu0 0.0
    %2720 = vmatpush1.msra.mxu0 0.0
    %2721 = vmatprep.subr.mxu0 0.0
    %2722 = vmatpush1.msra.mxu0 0.0
    %2723 = vmatprep.subr.mxu0 0.0
    %2724 = vmatpush1.msra.mxu0 0.0
    %2725 = vmatprep.subr.mxu0 0.0
    %2726 = vmatpush1.msra.mxu0 0.0
    %2727 = vmatprep.subr.mxu0 0.0
    %2728 = vmatpush1.msra.mxu0 0.0
    %2729 = vmatprep.subr.mxu0 0.0
    %2730 = vmatpush1.msra.mxu0 0.0
    %2731 = vmatprep.subr.mxu0 0.0
    %2732 = vmatpush1.msra.mxu0 0.0
    %2733 = vmatprep.subr.mxu0 0.0
    %2734 = vmatpush1.msra.mxu0 0.0
    %2735 = vmatprep.subr.mxu0 0.0
    %2736 = vmatpush1.msra.mxu0 0.0
    %2737 = vmatprep.subr.mxu0 0.0
    %2738 = vmatpush1.msra.mxu0 0.0
    %2739 = vmatprep.subr.mxu0 0.0
    %2740 = vmatpush1.msra.mxu0 0.0
    %2741 = vmatprep.subr.mxu0 0.0
    %2742 = vmatpush1.msra.mxu0 0.0
    %2743 = vmatprep.subr.mxu0 0.0
    %2744 = vmatpush1.msra.mxu0 0.0
    %2745 = vmatprep.subr.mxu0 0.0
    %2746 = vmatpush1.msra.mxu0 0.0
    %2747 = vmatprep.subr.mxu0 0.0
    %2748 = vmatpush1.msra.mxu0 0.0
    %2749 = vmatprep.subr.mxu0 0.0
    %2750 = vmatpush1.msra.mxu0 0.0
    %2751 = vmatprep.subr.mxu0 0.0
    %2752 = vmatpush1.msra.mxu0 0.0
    %2753 = vmatprep.subr.mxu0 0.0
    %2754 = vmatpush1.msra.mxu0 0.0
    %2755 = vmatprep.subr.mxu0 0.0
    %2756 = vmatpush1.msra.mxu0 0.0
    %2757 = vmatprep.subr.mxu0 0.0
    %2758 = vmatpush1.msra.mxu0 0.0
    %2759 = vmatprep.subr.mxu0 0.0
    %2760 = vmatpush1.msra.mxu0 0.0
    %2761 = vmatprep.subr.mxu0 0.0
    %2762 = vmatpush1.msra.mxu0 0.0
    %2763 = vmatprep.subr.mxu0 0.0
    %2764 = vmatpush1.msra.mxu0 0.0
    %2765 = vmatprep.subr.mxu0 0.0
    %2766 = vmatpush1.msra.mxu0 0.0
    %2767 = vmatprep.subr.mxu0 0.0
    %2768 = vmatpush1.msra.mxu0 0.0
    %2769 = vmatprep.subr.mxu0 0.0
    %2770 = vmatpush1.msra.mxu0 0.0
    %2771 = vmatprep.subr.mxu0 0.0
    %2772 = vmatpush1.msra.mxu0 0.0
    %2773 = vmatprep.subr.mxu0 0.0
    %2774 = vmatpush1.msra.mxu0 0.0
    %2775 = vmatprep.mubr.f32.mxu0 0.0
    %2776 = vmatmul.mubr.f32.gmra.mrb[0].mxu0 %v2700
    %v2777 = vpop.f32.mrb[0].mxu0
    %v2778 = vadd.f32 0.0, %v2777
    %v2779 = vpop.f32.mrb[0].mxu0
    %2780 = vmatprep.mubr.f32.mxu0 0.0
    %2781 = vmatmul.mubr.f32.gmra.mrb[0].mxu0 %v2703
    %v2782 = vpop.f32.mrb[0].mxu0
    %v2783 = vadd.f32 0.0, %v2782
    %v2784 = vpop.f32.mrb[0].mxu0
    %2785 = vmatprep.mubr.f32.mxu0 0.0
    %2786 = vmatmul.mubr.f32.gmra.mrb[0].mxu0 %v2706
    %v2787 = vpop.f32.mrb[0].mxu0
    %v2788 = vadd.f32 0.0, %v2787
    %v2789 = vpop.f32.mrb[0].mxu0
    %2790 = vmatprep.mubr.f32.mxu0 0.0
    %2791 = vmatmul.mubr.f32.gmra.mrb[0].mxu0 %v2709
    %v2792 = vpop.f32.mrb[0].mxu0
    %v2793 = vadd.f32 0.0, %v2792
    %v2794 = vpop.f32.mrb[0].mxu0
    %2795 = vdwg.mxu0
    %v2797 = vsel %vm291, %v2542, 0
    %v2800 = vsel %vm291, %v2543, 0
    %v2803 = vsel %vm291, %v2544, 0
    %v2806 = vsel %vm291, %v2545, 0
    %2808 = vmatprep.subr.mxu0 0.0
    %2809 = vmatpush1.msra.mxu0 %v2546
    %2810 = vmatprep.subr.mxu0 0.0
    %2811 = vmatpush1.msra.mxu0 %v2547
    %2812 = vmatprep.subr.mxu0 0.0
    %2813 = vmatpush1.msra.mxu0 %v2548
    %2814 = vmatprep.subr.mxu0 0.0
    %2815 = vmatpush1.msra.mxu0 %v2549
    %2816 = vmatprep.subr.mxu0 0.0
    %2817 = vmatpush1.msra.mxu0 0.0
    %2818 = vmatprep.subr.mxu0 0.0
    %2819 = vmatpush1.msra.mxu0 0.0
    %2820 = vmatprep.subr.mxu0 0.0
    %2821 = vmatpush1.msra.mxu0 0.0
    %2822 = vmatprep.subr.mxu0 0.0
    %2823 = vmatpush1.msra.mxu0 0.0
    %2824 = vmatprep.subr.mxu0 0.0
    %2825 = vmatpush1.msra.mxu0 0.0
    %2826 = vmatprep.subr.mxu0 0.0
    %2827 = vmatpush1.msra.mxu0 0.0
    %2828 = vmatprep.subr.mxu0 0.0
    %2829 = vmatpush1.msra.mxu0 0.0
    %2830 = vmatprep.subr.mxu0 0.0
    %2831 = vmatpush1.msra.mxu0 0.0
    %2832 = vmatprep.subr.mxu0 0.0
    %2833 = vmatpush1.msra.mxu0 0.0
    %2834 = vmatprep.subr.mxu0 0.0
    %2835 = vmatpush1.msra.mxu0 0.0
    %2836 = vmatprep.subr.mxu0 0.0
    %2837 = vmatpush1.msra.mxu0 0.0
    %2838 = vmatprep.subr.mxu0 0.0
    %2839 = vmatpush1.msra.mxu0 0.0
    %2840 = vmatprep.subr.mxu0 0.0
    %2841 = vmatpush1.msra.mxu0 0.0
    %2842 = vmatprep.subr.mxu0 0.0
    %2843 = vmatpush1.msra.mxu0 0.0
    %2844 = vmatprep.subr.mxu0 0.0
    %2845 = vmatpush1.msra.mxu0 0.0
    %2846 = vmatprep.subr.mxu0 0.0
    %2847 = vmatpush1.msra.mxu0 0.0
    %2848 = vmatprep.subr.mxu0 0.0
    %2849 = vmatpush1.msra.mxu0 0.0
    %2850 = vmatprep.subr.mxu0 0.0
    %2851 = vmatpush1.msra.mxu0 0.0
    %2852 = vmatprep.subr.mxu0 0.0
    %2853 = vmatpush1.msra.mxu0 0.0
    %2854 = vmatprep.subr.mxu0 0.0
    %2855 = vmatpush1.msra.mxu0 0.0
    %2856 = vmatprep.subr.mxu0 0.0
    %2857 = vmatpush1.msra.mxu0 0.0
    %2858 = vmatprep.subr.mxu0 0.0
    %2859 = vmatpush1.msra.mxu0 0.0
    %2860 = vmatprep.subr.mxu0 0.0
    %2861 = vmatpush1.msra.mxu0 0.0
    %2862 = vmatprep.subr.mxu0 0.0
    %2863 = vmatpush1.msra.mxu0 0.0
    %2864 = vmatprep.subr.mxu0 0.0
    %2865 = vmatpush1.msra.mxu0 0.0
    %2866 = vmatprep.subr.mxu0 0.0
    %2867 = vmatpush1.msra.mxu0 0.0
    %2868 = vmatprep.subr.mxu0 0.0
    %2869 = vmatpush1.msra.mxu0 0.0
    %2870 = vmatprep.subr.mxu0 0.0
    %2871 = vmatpush1.msra.mxu0 0.0
    %2872 = vmatprep.mubr.f32.mxu0 0.0
    %2873 = vmatmul.mubr.f32.gmra.mrb[0].mxu0 %v2797
    %v2874 = vpop.f32.mrb[0].mxu0
    %v2875 = vadd.f32 %v2778, %v2874
    %v2876 = vpop.f32.mrb[0].mxu0
    %2877 = vmatprep.mubr.f32.mxu0 0.0
    %2878 = vmatmul.mubr.f32.gmra.mrb[0].mxu0 %v2800
    %v2879 = vpop.f32.mrb[0].mxu0
    %v2880 = vadd.f32 %v2783, %v2879
    %v2881 = vpop.f32.mrb[0].mxu0
    %2882 = vmatprep.mubr.f32.mxu0 0.0
    %2883 = vmatmul.mubr.f32.gmra.mrb[0].mxu0 %v2803
    %v2884 = vpop.f32.mrb[0].mxu0
    %v2885 = vadd.f32 %v2788, %v2884
    %v2886 = vpop.f32.mrb[0].mxu0
    %2887 = vmatprep.mubr.f32.mxu0 0.0
    %2888 = vmatmul.mubr.f32.gmra.mrb[0].mxu0 %v2806
    %v2889 = vpop.f32.mrb[0].mxu0
    %v2890 = vadd.f32 %v2793, %v2889
    %v2891 = vpop.f32.mrb[0].mxu0
    %2892 = vdwg.mxu0
    %v2893 = vmul.f32 %v2269, %v270
    %v2894 = vmul.f32 %v2274, %v270
    %v2895 = vmul.f32 %v2279, %v270
    %v2896 = vmul.f32 %v2284, %v270
    %v2898 = vsel %vm291, %v2893, 0
    %v2901 = vsel %vm291, %v2894, 0
    %v2904 = vsel %vm291, %v2895, 0
    %v2907 = vsel %vm291, %v2896, 0
    %2909 = vmatprep.subr.mxu0 0.0
    %2910 = vmatpush1.xpose.msra.mxu0 %v2898
    %2911 = vmatprep.subr.mxu0 0.0
    %2912 = vmatpush1.xpose.msra.mxu0 %v2901
    %2913 = vmatprep.subr.mxu0 0.0
    %2914 = vmatpush1.xpose.msra.mxu0 %v2904
    %2915 = vmatprep.subr.mxu0 0.0
    %2916 = vmatpush1.xpose.msra.mxu0 %v2907
    %2917 = vmatprep.subr.mxu0 0.0
    %2918 = vmatpush1.xpose.msra.mxu0 0.0
    %2919 = vmatprep.subr.mxu0 0.0
    %2920 = vmatpush1.xpose.msra.mxu0 0.0
    %2921 = vmatprep.subr.mxu0 0.0
    %2922 = vmatpush1.xpose.msra.mxu0 0.0
    %2923 = vmatprep.subr.mxu0 0.0
    %2924 = vmatpush1.xpose.msra.mxu0 0.0
    %2925 = vmatprep.subr.mxu0 0.0
    %2926 = vmatpush1.xpose.msra.mxu0 0.0
    %2927 = vmatprep.subr.mxu0 0.0
    %2928 = vmatpush1.xpose.msra.mxu0 0.0
    %2929 = vmatprep.subr.mxu0 0.0
    %2930 = vmatpush1.xpose.msra.mxu0 0.0
    %2931 = vmatprep.subr.mxu0 0.0
    %2932 = vmatpush1.xpose.msra.mxu0 0.0
    %2933 = vmatprep.subr.mxu0 0.0
    %2934 = vmatpush1.xpose.msra.mxu0 0.0
    %2935 = vmatprep.subr.mxu0 0.0
    %2936 = vmatpush1.xpose.msra.mxu0 0.0
    %2937 = vmatprep.subr.mxu0 0.0
    %2938 = vmatpush1.xpose.msra.mxu0 0.0
    %2939 = vmatprep.subr.mxu0 0.0
    %2940 = vmatpush1.xpose.msra.mxu0 0.0
    %2941 = vmatprep.subr.mxu0 0.0
    %2942 = vmatpush1.xpose.msra.mxu0 0.0
    %2943 = vmatprep.subr.mxu0 0.0
    %2944 = vmatpush1.xpose.msra.mxu0 0.0
    %2945 = vmatprep.subr.mxu0 0.0
    %2946 = vmatpush1.xpose.msra.mxu0 0.0
    %2947 = vmatprep.subr.mxu0 0.0
    %2948 = vmatpush1.xpose.msra.mxu0 0.0
    %2949 = vmatprep.subr.mxu0 0.0
    %2950 = vmatpush1.xpose.msra.mxu0 0.0
    %2951 = vmatprep.subr.mxu0 0.0
    %2952 = vmatpush1.xpose.msra.mxu0 0.0
    %2953 = vmatprep.subr.mxu0 0.0
    %2954 = vmatpush1.xpose.msra.mxu0 0.0
    %2955 = vmatprep.subr.mxu0 0.0
    %2956 = vmatpush1.xpose.msra.mxu0 0.0
    %2957 = vmatprep.subr.mxu0 0.0
    %2958 = vmatpush1.xpose.msra.mxu0 0.0
    %2959 = vmatprep.subr.mxu0 0.0
    %2960 = vmatpush1.xpose.msra.mxu0 0.0
    %2961 = vmatprep.subr.mxu0 0.0
    %2962 = vmatpush1.xpose.msra.mxu0 0.0
    %2963 = vmatprep.subr.mxu0 0.0
    %2964 = vmatpush1.xpose.msra.mxu0 0.0
    %2965 = vmatprep.subr.mxu0 0.0
    %2966 = vmatpush1.xpose.msra.mxu0 0.0
    %2967 = vmatprep.subr.mxu0 0.0
    %2968 = vmatpush1.xpose.msra.mxu0 0.0
    %2969 = vmatprep.subr.mxu0 0.0
    %2970 = vmatpush1.xpose.msra.mxu0 0.0
    %2971 = vmatprep.subr.mxu0 0.0
    %2972 = vmatpush1.xpose.msra.mxu0 0.0
    %2973 = vmatprep.mubr.f32.mxu0 0.0
    %2974 = vmatmul.mubr.f32.gmra.mrb[0].mxu0 %v2394
    %v2975 = vpop.f32.mrb[0].mxu0
    %v2976 = vadd.f32 %v276, %v2975
    %v2977 = vpop.f32.mrb[0].mxu0
    %2978 = vmatprep.mubr.f32.mxu0 0.0
    %2979 = vmatmul.mubr.f32.gmra.mrb[0].mxu0 %v2397
    %v2980 = vpop.f32.mrb[0].mxu0
    %v2981 = vadd.f32 %v277, %v2980
    %v2982 = vpop.f32.mrb[0].mxu0
    %2983 = vmatprep.mubr.f32.mxu0 0.0
    %2984 = vmatmul.mubr.f32.gmra.mrb[0].mxu0 %v2400
    %v2985 = vpop.f32.mrb[0].mxu0
    %v2986 = vadd.f32 %v278, %v2985
    %v2987 = vpop.f32.mrb[0].mxu0
    %2988 = vmatprep.mubr.f32.mxu0 0.0
    %2989 = vmatmul.mubr.f32.gmra.mrb[0].mxu0 %v2403
    %v2990 = vpop.f32.mrb[0].mxu0
    %v2991 = vadd.f32 %v279, %v2990
    %v2992 = vpop.f32.mrb[0].mxu0
    %2993 = vdwg.mxu0
    %v2994 = vsel %vm291, %v2976, -inf
    %2995 = vmax.xlane.f32.xlu0 %v2994
    %v2996 = vpop.xlane.xlu0 %2995
    %v2997 = vsel %vm291, %v2981, -inf
    %2998 = vmax.xlane.f32.xlu0 %v2997
    %v2999 = vpop.xlane.xlu0 %2998
    %v3000 = vsel %vm291, %v2986, -inf
    %3001 = vmax.xlane.f32.xlu0 %v3000
    %v3002 = vpop.xlane.xlu0 %3001
    %v3003 = vsel %vm291, %v2991, -inf
    %3004 = vmax.xlane.f32.xlu0 %v3003
    %v3005 = vpop.xlane.xlu0 %3004
    %v3006 = vsub.f32 %v2976, %v2996
    %v3007 = vsub.f32 %v2981, %v2999
    %v3008 = vsub.f32 %v2986, %v3002
    %v3009 = vsub.f32 %v2991, %v3005
    %v3010 = vmul.f32 %v3006, 1.442695
    %v3011 = vpow.pop %v3010
    %v3012 = vmul.f32 %v3007, 1.442695
    %v3013 = vpow.pop %v3012
    %v3014 = vmul.f32 %v3008, 1.442695
    %v3015 = vpow.pop %v3014
    %v3016 = vmul.f32 %v3009, 1.442695
    %v3017 = vpow.pop %v3016
    %v3018 = vsel %vm291, %v3011, 0.0
    %3019 = vadd.xlane.f32.xlu0 %v3018
    %v3020 = vpop.xlane.xlu0 %3019
    %v3021 = vsel %vm291, %v3013, 0.0
    %3022 = vadd.xlane.f32.xlu0 %v3021
    %v3023 = vpop.xlane.xlu0 %3022
    %v3024 = vsel %vm291, %v3015, 0.0
    %3025 = vadd.xlane.f32.xlu0 %v3024
    %v3026 = vpop.xlane.xlu0 %3025
    %v3027 = vsel %vm291, %v3017, 0.0
    %3028 = vadd.xlane.f32.xlu0 %v3027
    %v3029 = vpop.xlane.xlu0 %3028
    %v3030 = vrcp.pop %v3020
    %v3031 = vrcp.pop %v3023
    %v3032 = vrcp.pop %v3026
    %v3033 = vrcp.pop %v3029
    %v3034 = vmul.f32 %v3011, %v3030
    %v3035 = vmul.f32 %v3013, %v3031
    %v3036 = vmul.f32 %v3015, %v3032
    %v3037 = vmul.f32 %v3017, %v3033
    %v3038 = vmul.f32 %v2367, %v270
    %v3039 = vmul.f32 %v2372, %v270
    %v3040 = vmul.f32 %v2377, %v270
    %v3041 = vmul.f32 %v2382, %v270
    %v3043 = vsel %vm291, %v3034, 0
    %v3046 = vsel %vm291, %v3035, 0
    %v3049 = vsel %vm291, %v3036, 0
    %v3052 = vsel %vm291, %v3037, 0
    %3054 = vmatprep.subr.mxu0 0.0
    %3055 = vmatpush1.msra.mxu0 %v3038
    %3056 = vmatprep.subr.mxu0 0.0
    %3057 = vmatpush1.msra.mxu0 %v3039
    %3058 = vmatprep.subr.mxu0 0.0
    %3059 = vmatpush1.msra.mxu0 %v3040
    %3060 = vmatprep.subr.mxu0 0.0
    %3061 = vmatpush1.msra.mxu0 %v3041
    %3062 = vmatprep.subr.mxu0 0.0
    %3063 = vmatpush1.msra.mxu0 0.0
    %3064 = vmatprep.subr.mxu0 0.0
    %3065 = vmatpush1.msra.mxu0 0.0
    %3066 = vmatprep.subr.mxu0 0.0
    %3067 = vmatpush1.msra.mxu0 0.0
    %3068 = vmatprep.subr.mxu0 0.0
    %3069 = vmatpush1.msra.mxu0 0.0
    %3070 = vmatprep.subr.mxu0 0.0
    %3071 = vmatpush1.msra.mxu0 0.0
    %3072 = vmatprep.subr.mxu0 0.0
    %3073 = vmatpush1.msra.mxu0 0.0
    %3074 = vmatprep.subr.mxu0 0.0
    %3075 = vmatpush1.msra.mxu0 0.0
    %3076 = vmatprep.subr.mxu0 0.0
    %3077 = vmatpush1.msra.mxu0 0.0
    %3078 = vmatprep.subr.mxu0 0.0
    %3079 = vmatpush1.msra.mxu0 0.0
    %3080 = vmatprep.subr.mxu0 0.0
    %3081 = vmatpush1.msra.mxu0 0.0
    %3082 = vmatprep.subr.mxu0 0.0
    %3083 = vmatpush1.msra.mxu0 0.0
    %3084 = vmatprep.subr.mxu0 0.0
    %3085 = vmatpush1.msra.mxu0 0.0
    %3086 = vmatprep.subr.mxu0 0.0
    %3087 = vmatpush1.msra.mxu0 0.0
    %3088 = vmatprep.subr.mxu0 0.0
    %3089 = vmatpush1.msra.mxu0 0.0
    %3090 = vmatprep.subr.mxu0 0.0
    %3091 = vmatpush1.msra.mxu0 0.0
    %3092 = vmatprep.subr.mxu0 0.0
    %3093 = vmatpush1.msra.mxu0 0.0
    %3094 = vmatprep.subr.mxu0 0.0
    %3095 = vmatpush1.msra.mxu0 0.0
    %3096 = vmatprep.subr.mxu0 0.0
    %3097 = vmatpush1.msra.mxu0 0.0
    %3098 = vmatprep.subr.mxu0 0.0
    %3099 = vmatpush1.msra.mxu0 0.0
    %3100 = vmatprep.subr.mxu0 0.0
    %3101 = vmatpush1.msra.mxu0 0.0
    %3102 = vmatprep.subr.mxu0 0.0
    %3103 = vmatpush1.msra.mxu0 0.0
    %3104 = vmatprep.subr.mxu0 0.0
    %3105 = vmatpush1.msra.mxu0 0.0
    %3106 = vmatprep.subr.mxu0 0.0
    %3107 = vmatpush1.msra.mxu0 0.0
    %3108 = vmatprep.subr.mxu0 0.0
    %3109 = vmatpush1.msra.mxu0 0.0
    %3110 = vmatprep.subr.mxu0 0.0
    %3111 = vmatpush1.msra.mxu0 0.0
    %3112 = vmatprep.subr.mxu0 0.0
    %3113 = vmatpush1.msra.mxu0 0.0
    %3114 = vmatprep.subr.mxu0 0.0
    %3115 = vmatpush1.msra.mxu0 0.0
    %3116 = vmatprep.subr.mxu0 0.0
    %3117 = vmatpush1.msra.mxu0 0.0
    %3118 = vmatprep.mubr.f32.mxu0 0.0
    %3119 = vmatmul.mubr.f32.gmra.mrb[0].mxu0 %v3043
    %v3120 = vpop.f32.mrb[0].mxu0
    %v3121 = vadd.f32 0.0, %v3120
    %v3122 = vpop.f32.mrb[0].mxu0
    %3123 = vmatprep.mubr.f32.mxu0 0.0
    %3124 = vmatmul.mubr.f32.gmra.mrb[0].mxu0 %v3046
    %v3125 = vpop.f32.mrb[0].mxu0
    %v3126 = vadd.f32 0.0, %v3125
    %v3127 = vpop.f32.mrb[0].mxu0
    %3128 = vmatprep.mubr.f32.mxu0 0.0
    %3129 = vmatmul.mubr.f32.gmra.mrb[0].mxu0 %v3049
    %v3130 = vpop.f32.mrb[0].mxu0
    %v3131 = vadd.f32 0.0, %v3130
    %v3132 = vpop.f32.mrb[0].mxu0
    %3133 = vmatprep.mubr.f32.mxu0 0.0
    %3134 = vmatmul.mubr.f32.gmra.mrb[0].mxu0 %v3052
    %v3135 = vpop.f32.mrb[0].mxu0
    %v3136 = vadd.f32 0.0, %v3135
    %v3137 = vpop.f32.mrb[0].mxu0
    %3138 = vdwg.mxu0
    %v3139 = vadd.f32 %v2875, %v3121
    %v3140 = vadd.f32 %v2880, %v3126
    %v3141 = vadd.f32 %v2885, %v3131
    %v3142 = vadd.f32 %v2890, %v3136
    %v3143 = vmul.f32 %v2269, %v275
    %v3144 = vmul.f32 %v2274, %v275
    %v3145 = vmul.f32 %v2279, %v275
    %v3146 = vmul.f32 %v2284, %v275
    %v3148 = vsel %vm291, %v3143, 0
    %v3151 = vsel %vm291, %v3144, 0
    %v3154 = vsel %vm291, %v3145, 0
    %v3157 = vsel %vm291, %v3146, 0
    %3159 = vmatprep.subr.mxu0 0.0
    %3160 = vmatpush1.xpose.msra.mxu0 %v3148
    %3161 = vmatprep.subr.mxu0 0.0
    %3162 = vmatpush1.xpose.msra.mxu0 %v3151
    %3163 = vmatprep.subr.mxu0 0.0
    %3164 = vmatpush1.xpose.msra.mxu0 %v3154
    %3165 = vmatprep.subr.mxu0 0.0
    %3166 = vmatpush1.xpose.msra.mxu0 %v3157
    %3167 = vmatprep.subr.mxu0 0.0
    %3168 = vmatpush1.xpose.msra.mxu0 0.0
    %3169 = vmatprep.subr.mxu0 0.0
    %3170 = vmatpush1.xpose.msra.mxu0 0.0
    %3171 = vmatprep.subr.mxu0 0.0
    %3172 = vmatpush1.xpose.msra.mxu0 0.0
    %3173 = vmatprep.subr.mxu0 0.0
    %3174 = vmatpush1.xpose.msra.mxu0 0.0
    %3175 = vmatprep.subr.mxu0 0.0
    %3176 = vmatpush1.xpose.msra.mxu0 0.0
    %3177 = vmatprep.subr.mxu0 0.0
    %3178 = vmatpush1.xpose.msra.mxu0 0.0
    %3179 = vmatprep.subr.mxu0 0.0
    %3180 = vmatpush1.xpose.msra.mxu0 0.0
    %3181 = vmatprep.subr.mxu0 0.0
    %3182 = vmatpush1.xpose.msra.mxu0 0.0
    %3183 = vmatprep.subr.mxu0 0.0
    %3184 = vmatpush1.xpose.msra.mxu0 0.0
    %3185 = vmatprep.subr.mxu0 0.0
    %3186 = vmatpush1.xpose.msra.mxu0 0.0
    %3187 = vmatprep.subr.mxu0 0.0
    %3188 = vmatpush1.xpose.msra.mxu0 0.0
    %3189 = vmatprep.subr.mxu0 0.0
    %3190 = vmatpush1.xpose.msra.mxu0 0.0
    %3191 = vmatprep.subr.mxu0 0.0
    %3192 = vmatpush1.xpose.msra.mxu0 0.0
    %3193 = vmatprep.subr.mxu0 0.0
    %3194 = vmatpush1.xpose.msra.mxu0 0.0
    %3195 = vmatprep.subr.mxu0 0.0
    %3196 = vmatpush1.xpose.msra.mxu0 0.0
    %3197 = vmatprep.subr.mxu0 0.0
    %3198 = vmatpush1.xpose.msra.mxu0 0.0
    %3199 = vmatprep.subr.mxu0 0.0
    %3200 = vmatpush1.xpose.msra.mxu0 0.0
    %3201 = vmatprep.subr.mxu0 0.0
    %3202 = vmatpush1.xpose.msra.mxu0 0.0
    %3203 = vmatprep.subr.mxu0 0.0
    %3204 = vmatpush1.xpose.msra.mxu0 0.0
    %3205 = vmatprep.subr.mxu0 0.0
    %3206 = vmatpush1.xpose.msra.mxu0 0.0
    %3207 = vmatprep.subr.mxu0 0.0
    %3208 = vmatpush1.xpose.msra.mxu0 0.0
    %3209 = vmatprep.subr.mxu0 0.0
    %3210 = vmatpush1.xpose.msra.mxu0 0.0
    %3211 = vmatprep.subr.mxu0 0.0
    %3212 = vmatpush1.xpose.msra.mxu0 0.0
    %3213 = vmatprep.subr.mxu0 0.0
    %3214 = vmatpush1.xpose.msra.mxu0 0.0
    %3215 = vmatprep.subr.mxu0 0.0
    %3216 = vmatpush1.xpose.msra.mxu0 0.0
    %3217 = vmatprep.subr.mxu0 0.0
    %3218 = vmatpush1.xpose.msra.mxu0 0.0
    %3219 = vmatprep.subr.mxu0 0.0
    %3220 = vmatpush1.xpose.msra.mxu0 0.0
    %3221 = vmatprep.subr.mxu0 0.0
    %3222 = vmatpush1.xpose.msra.mxu0 0.0
    %3223 = vmatprep.mubr.f32.mxu0 0.0
    %3224 = vmatmul.mubr.f32.gmra.mrb[0].mxu0 %v2394
    %v3225 = vpop.f32.mrb[0].mxu0
    %v3226 = vadd.f32 %v276, %v3225
    %v3227 = vpop.f32.mrb[0].mxu0
    %3228 = vmatprep.mubr.f32.mxu0 0.0
    %3229 = vmatmul.mubr.f32.gmra.mrb[0].mxu0 %v2397
    %v3230 = vpop.f32.mrb[0].mxu0
    %v3231 = vadd.f32 %v277, %v3230
    %v3232 = vpop.f32.mrb[0].mxu0
    %3233 = vmatprep.mubr.f32.mxu0 0.0
    %3234 = vmatmul.mubr.f32.gmra.mrb[0].mxu0 %v2400
    %v3235 = vpop.f32.mrb[0].mxu0
    %v3236 = vadd.f32 %v278, %v3235
    %v3237 = vpop.f32.mrb[0].mxu0
    %3238 = vmatprep.mubr.f32.mxu0 0.0
    %3239 = vmatmul.mubr.f32.gmra.mrb[0].mxu0 %v2403
    %v3240 = vpop.f32.mrb[0].mxu0
    %v3241 = vadd.f32 %v279, %v3240
    %v3242 = vpop.f32.mrb[0].mxu0
    %3243 = vdwg.mxu0
    %v3244 = vsel %vm291, %v3226, -inf
    %3245 = vmax.xlane.f32.xlu0 %v3244
    %v3246 = vpop.xlane.xlu0 %3245
    %v3247 = vsel %vm291, %v3231, -inf
    %3248 = vmax.xlane.f32.xlu0 %v3247
    %v3249 = vpop.xlane.xlu0 %3248
    %v3250 = vsel %vm291, %v3236, -inf
    %3251 = vmax.xlane.f32.xlu0 %v3250
    %v3252 = vpop.xlane.xlu0 %3251
    %v3253 = vsel %vm291, %v3241, -inf
    %3254 = vmax.xlane.f32.xlu0 %v3253
    %v3255 = vpop.xlane.xlu0 %3254
    %v3256 = vsub.f32 %v3226, %v3246
    %v3257 = vsub.f32 %v3231, %v3249
    %v3258 = vsub.f32 %v3236, %v3252
    %v3259 = vsub.f32 %v3241, %v3255
    %v3260 = vmul.f32 %v3256, 1.442695
    %v3261 = vpow.pop %v3260
    %v3262 = vmul.f32 %v3257, 1.442695
    %v3263 = vpow.pop %v3262
    %v3264 = vmul.f32 %v3258, 1.442695
    %v3265 = vpow.pop %v3264
    %v3266 = vmul.f32 %v3259, 1.442695
    %v3267 = vpow.pop %v3266
    %v3268 = vsel %vm291, %v3261, 0.0
    %3269 = vadd.xlane.f32.xlu0 %v3268
    %v3270 = vpop.xlane.xlu0 %3269
    %v3271 = vsel %vm291, %v3263, 0.0
    %3272 = vadd.xlane.f32.xlu0 %v3271
    %v3273 = vpop.xlane.xlu0 %3272
    %v3274 = vsel %vm291, %v3265, 0.0
    %3275 = vadd.xlane.f32.xlu0 %v3274
    %v3276 = vpop.xlane.xlu0 %3275
    %v3277 = vsel %vm291, %v3267, 0.0
    %3278 = vadd.xlane.f32.xlu0 %v3277
    %v3279 = vpop.xlane.xlu0 %3278
    %v3280 = vrcp.pop %v3270
    %v3281 = vrcp.pop %v3273
    %v3282 = vrcp.pop %v3276
    %v3283 = vrcp.pop %v3279
    %v3284 = vmul.f32 %v3261, %v3280
    %v3285 = vmul.f32 %v3263, %v3281
    %v3286 = vmul.f32 %v3265, %v3282
    %v3287 = vmul.f32 %v3267, %v3283
    %v3288 = vmul.f32 %v2367, %v275
    %v3289 = vmul.f32 %v2372, %v275
    %v3290 = vmul.f32 %v2377, %v275
    %v3291 = vmul.f32 %v2382, %v275
    %v3293 = vsel %vm291, %v3284, 0
    %v3296 = vsel %vm291, %v3285, 0
    %v3299 = vsel %vm291, %v3286, 0
    %v3302 = vsel %vm291, %v3287, 0
    %3304 = vmatprep.subr.mxu0 0.0
    %3305 = vmatpush1.msra.mxu0 %v3288
    %3306 = vmatprep.subr.mxu0 0.0
    %3307 = vmatpush1.msra.mxu0 %v3289
    %3308 = vmatprep.subr.mxu0 0.0
    %3309 = vmatpush1.msra.mxu0 %v3290
    %3310 = vmatprep.subr.mxu0 0.0
    %3311 = vmatpush1.msra.mxu0 %v3291
    %3312 = vmatprep.subr.mxu0 0.0
    %3313 = vmatpush1.msra.mxu0 0.0
    %3314 = vmatprep.subr.mxu0 0.0
    %3315 = vmatpush1.msra.mxu0 0.0
    %3316 = vmatprep.subr.mxu0 0.0
    %3317 = vmatpush1.msra.mxu0 0.0
    %3318 = vmatprep.subr.mxu0 0.0
    %3319 = vmatpush1.msra.mxu0 0.0
    %3320 = vmatprep.subr.mxu0 0.0
    %3321 = vmatpush1.msra.mxu0 0.0
    %3322 = vmatprep.subr.mxu0 0.0
    %3323 = vmatpush1.msra.mxu0 0.0
    %3324 = vmatprep.subr.mxu0 0.0
    %3325 = vmatpush1.msra.mxu0 0.0
    %3326 = vmatprep.subr.mxu0 0.0
    %3327 = vmatpush1.msra.mxu0 0.0
    %3328 = vmatprep.subr.mxu0 0.0
    %3329 = vmatpush1.msra.mxu0 0.0
    %3330 = vmatprep.subr.mxu0 0.0
    %3331 = vmatpush1.msra.mxu0 0.0
    %3332 = vmatprep.subr.mxu0 0.0
    %3333 = vmatpush1.msra.mxu0 0.0
    %3334 = vmatprep.subr.mxu0 0.0
    %3335 = vmatpush1.msra.mxu0 0.0
    %3336 = vmatprep.subr.mxu0 0.0
    %3337 = vmatpush1.msra.mxu0 0.0
    %3338 = vmatprep.subr.mxu0 0.0
    %3339 = vmatpush1.msra.mxu0 0.0
    %3340 = vmatprep.subr.mxu0 0.0
    %3341 = vmatpush1.msra.mxu0 0.0
    %3342 = vmatprep.subr.mxu0 0.0
    %3343 = vmatpush1.msra.mxu0 0.0
    %3344 = vmatprep.subr.mxu0 0.0
    %3345 = vmatpush1.msra.mxu0 0.0
    %3346 = vmatprep.subr.mxu0 0.0
    %3347 = vmatpush1.msra.mxu0 0.0
    %3348 = vmatprep.subr.mxu0 0.0
    %3349 = vmatpush1.msra.mxu0 0.0
    %3350 = vmatprep.subr.mxu0 0.0
    %3351 = vmatpush1.msra.mxu0 0.0
    %3352 = vmatprep.subr.mxu0 0.0
    %3353 = vmatpush1.msra.mxu0 0.0
    %3354 = vmatprep.subr.mxu0 0.0
    %3355 = vmatpush1.msra.mxu0 0.0
    %3356 = vmatprep.subr.mxu0 0.0
    %3357 = vmatpush1.msra.mxu0 0.0
    %3358 = vmatprep.subr.mxu0 0.0
    %3359 = vmatpush1.msra.mxu0 0.0
    %3360 = vmatprep.subr.mxu0 0.0
    %3361 = vmatpush1.msra.mxu0 0.0
    %3362 = vmatprep.subr.mxu0 0.0
    %3363 = vmatpush1.msra.mxu0 0.0
    %3364 = vmatprep.subr.mxu0 0.0
    %3365 = vmatpush1.msra.mxu0 0.0
    %3366 = vmatprep.subr.mxu0 0.0
    %3367 = vmatpush1.msra.mxu0 0.0
    %3368 = vmatprep.mubr.f32.mxu0 0.0
    %3369 = vmatmul.mubr.f32.gmra.mrb[0].mxu0 %v3293
    %v3370 = vpop.f32.mrb[0].mxu0
    %v3371 = vadd.f32 0.0, %v3370
    %v3372 = vpop.f32.mrb[0].mxu0
    %3373 = vmatprep.mubr.f32.mxu0 0.0
    %3374 = vmatmul.mubr.f32.gmra.mrb[0].mxu0 %v3296
    %v3375 = vpop.f32.mrb[0].mxu0
    %v3376 = vadd.f32 0.0, %v3375
    %v3377 = vpop.f32.mrb[0].mxu0
    %3378 = vmatprep.mubr.f32.mxu0 0.0
    %3379 = vmatmul.mubr.f32.gmra.mrb[0].mxu0 %v3299
    %v3380 = vpop.f32.mrb[0].mxu0
    %v3381 = vadd.f32 0.0, %v3380
    %v3382 = vpop.f32.mrb[0].mxu0
    %3383 = vmatprep.mubr.f32.mxu0 0.0
    %3384 = vmatmul.mubr.f32.gmra.mrb[0].mxu0 %v3302
    %v3385 = vpop.f32.mrb[0].mxu0
    %v3386 = vadd.f32 0.0, %v3385
    %v3387 = vpop.f32.mrb[0].mxu0
    %3388 = vdwg.mxu0
    %v3389 = vadd.f32 %v3139, %v3371
    %v3390 = vadd.f32 %v3140, %v3376
    %v3391 = vadd.f32 %v3141, %v3381
    %v3392 = vadd.f32 %v3142, %v3386
    %s3393 = scalar_lea.vmem %s11, 32
    %v3394 = vld [vmem:[%s3393] sm:$0xff]
    %v3395 = vld [vmem:[%s3393 + $0x8] sm:$0xff]
    %v3396 = vld [vmem:[%s3393 + $0x10] sm:$0xff]
    %v3397 = vld [vmem:[%s3393 + $0x18] sm:$0xff]
    %s3398 = scalar_lea.vmem %s12, 1
    %v3399 = vld [vmem:[%s3398] sm:$0x1]
    %v3401 = vlaneseq
    %v3402 = vshrl.u32 %v3401, 7
    %v3403 = vsub.s32 0, %v3402
    %v3404 = vrot.slane %v3399, %v3403
    %v3407 = vsel %vm291, %v3389, 0
    %v3410 = vsel %vm291, %v3390, 0
    %v3413 = vsel %vm291, %v3391, 0
    %v3416 = vsel %vm291, %v3392, 0
    %3418 = vmatprep.subr.mxu0 0.0
    %3419 = vmatpush1.msra.mxu0 %v3394
    %3420 = vmatprep.subr.mxu0 0.0
    %3421 = vmatpush1.msra.mxu0 %v3395
    %3422 = vmatprep.subr.mxu0 0.0
    %3423 = vmatpush1.msra.mxu0 %v3396
    %3424 = vmatprep.subr.mxu0 0.0
    %3425 = vmatpush1.msra.mxu0 %v3397
    %3426 = vmatprep.subr.mxu0 0.0
    %3427 = vmatpush1.msra.mxu0 0.0
    %3428 = vmatprep.subr.mxu0 0.0
    %3429 = vmatpush1.msra.mxu0 0.0
    %3430 = vmatprep.subr.mxu0 0.0
    %3431 = vmatpush1.msra.mxu0 0.0
    %3432 = vmatprep.subr.mxu0 0.0
    %3433 = vmatpush1.msra.mxu0 0.0
    %3434 = vmatprep.subr.mxu0 0.0
    %3435 = vmatpush1.msra.mxu0 0.0
    %3436 = vmatprep.subr.mxu0 0.0
    %3437 = vmatpush1.msra.mxu0 0.0
    %3438 = vmatprep.subr.mxu0 0.0
    %3439 = vmatpush1.msra.mxu0 0.0
    %3440 = vmatprep.subr.mxu0 0.0
    %3441 = vmatpush1.msra.mxu0 0.0
    %3442 = vmatprep.subr.mxu0 0.0
    %3443 = vmatpush1.msra.mxu0 0.0
    %3444 = vmatprep.subr.mxu0 0.0
    %3445 = vmatpush1.msra.mxu0 0.0
    %3446 = vmatprep.subr.mxu0 0.0
    %3447 = vmatpush1.msra.mxu0 0.0
    %3448 = vmatprep.subr.mxu0 0.0
    %3449 = vmatpush1.msra.mxu0 0.0
    %3450 = vmatprep.subr.mxu0 0.0
    %3451 = vmatpush1.msra.mxu0 0.0
    %3452 = vmatprep.subr.mxu0 0.0
    %3453 = vmatpush1.msra.mxu0 0.0
    %3454 = vmatprep.subr.mxu0 0.0
    %3455 = vmatpush1.msra.mxu0 0.0
    %3456 = vmatprep.subr.mxu0 0.0
    %3457 = vmatpush1.msra.mxu0 0.0
    %3458 = vmatprep.subr.mxu0 0.0
    %3459 = vmatpush1.msra.mxu0 0.0
    %3460 = vmatprep.subr.mxu0 0.0
    %3461 = vmatpush1.msra.mxu0 0.0
    %3462 = vmatprep.subr.mxu0 0.0
    %3463 = vmatpush1.msra.mxu0 0.0
    %3464 = vmatprep.subr.mxu0 0.0
    %3465 = vmatpush1.msra.mxu0 0.0
    %3466 = vmatprep.subr.mxu0 0.0
    %3467 = vmatpush1.msra.mxu0 0.0
    %3468 = vmatprep.subr.mxu0 0.0
    %3469 = vmatpush1.msra.mxu0 0.0
    %3470 = vmatprep.subr.mxu0 0.0
    %3471 = vmatpush1.msra.mxu0 0.0
    %3472 = vmatprep.subr.mxu0 0.0
    %3473 = vmatpush1.msra.mxu0 0.0
    %3474 = vmatprep.subr.mxu0 0.0
    %3475 = vmatpush1.msra.mxu0 0.0
    %3476 = vmatprep.subr.mxu0 0.0
    %3477 = vmatpush1.msra.mxu0 0.0
    %3478 = vmatprep.subr.mxu0 0.0
    %3479 = vmatpush1.msra.mxu0 0.0
    %3480 = vmatprep.subr.mxu0 0.0
    %3481 = vmatpush1.msra.mxu0 0.0
    %3482 = vmatprep.mubr.f32.mxu0 0.0
    %3483 = vmatmul.mubr.f32.gmra.mrb[0].mxu0 %v3407
    %v3484 = vpop.f32.mrb[0].mxu0
    %v3485 = vadd.f32 %v3404, %v3484
    %v3486 = vpop.f32.mrb[0].mxu0
    %3487 = vmatprep.mubr.f32.mxu0 0.0
    %3488 = vmatmul.mubr.f32.gmra.mrb[0].mxu0 %v3410
    %v3489 = vpop.f32.mrb[0].mxu0
    %v3490 = vadd.f32 %v3404, %v3489
    %v3491 = vpop.f32.mrb[0].mxu0
    %3492 = vmatprep.mubr.f32.mxu0 0.0
    %3493 = vmatmul.mubr.f32.gmra.mrb[0].mxu0 %v3413
    %v3494 = vpop.f32.mrb[0].mxu0
    %v3495 = vadd.f32 %v3404, %v3494
    %v3496 = vpop.f32.mrb[0].mxu0
    %3497 = vmatprep.mubr.f32.mxu0 0.0
    %3498 = vmatmul.mubr.f32.gmra.mrb[0].mxu0 %v3416
    %v3499 = vpop.f32.mrb[0].mxu0
    %v3500 = vadd.f32 %v3404, %v3499
    %v3501 = vpop.f32.mrb[0].mxu0
    %3502 = vdwg.mxu0
    %v3503 = vadd.f32 %v2075, %v3485
    %v3504 = vadd.f32 %v2076, %v3490
    %v3505 = vadd.f32 %v2077, %v3495
    %v3506 = vadd.f32 %v2078, %v3500
    %s3507 = scalar_lea.vmem %s13, 1
    %v3508 = vld [vmem:[%s3507] sm:$0x1]
    %s3509 = scalar_lea.vmem %s14, 1
    %v3510 = vld [vmem:[%s3509] sm:$0x1]
    %v3511 = vsel %vm291, %v3503, 0.0
    %3512 = vadd.xlane.f32.xlu0 %v3511
    %v3513 = vpop.xlane.xlu0 %3512
    %v3514 = vsel %vm291, %v3504, 0.0
    %3515 = vadd.xlane.f32.xlu0 %v3514
    %v3516 = vpop.xlane.xlu0 %3515
    %v3517 = vsel %vm291, %v3505, 0.0
    %3518 = vadd.xlane.f32.xlu0 %v3517
    %v3519 = vpop.xlane.xlu0 %3518
    %v3520 = vsel %vm291, %v3506, 0.0
    %3521 = vadd.xlane.f32.xlu0 %v3520
    %v3522 = vpop.xlane.xlu0 %3521
    %v3523 = vmul.f32 %v3513, %v1715
    %v3524 = vmul.f32 %v3516, %v1715
    %v3525 = vmul.f32 %v3519, %v1715
    %v3526 = vmul.f32 %v3522, %v1715
    %v3527 = vsub.f32 %v3503, %v3523
    %v3528 = vsub.f32 %v3504, %v3524
    %v3529 = vsub.f32 %v3505, %v3525
    %v3530 = vsub.f32 %v3506, %v3526
    %v3531 = vmul.f32 %v3527, %v3527
    %v3532 = vmul.f32 %v3528, %v3528
    %v3533 = vmul.f32 %v3529, %v3529
    %v3534 = vmul.f32 %v3530, %v3530
    %v3535 = vsel %vm291, %v3531, 0.0
    %3536 = vadd.xlane.f32.xlu0 %v3535
    %v3537 = vpop.xlane.xlu0 %3536
    %v3538 = vsel %vm291, %v3532, 0.0
    %3539 = vadd.xlane.f32.xlu0 %v3538
    %v3540 = vpop.xlane.xlu0 %3539
    %v3541 = vsel %vm291, %v3533, 0.0
    %3542 = vadd.xlane.f32.xlu0 %v3541
    %v3543 = vpop.xlane.xlu0 %3542
    %v3544 = vsel %vm291, %v3534, 0.0
    %3545 = vadd.xlane.f32.xlu0 %v3544
    %v3546 = vpop.xlane.xlu0 %3545
    %v3547 = vmul.f32 %v3537, %v1715
    %v3548 = vmul.f32 %v3540, %v1715
    %v3549 = vmul.f32 %v3543, %v1715
    %v3550 = vmul.f32 %v3546, %v1715
    %v3551 = vadd.f32 %v3547, 1e-05
    %v3552 = vadd.f32 %v3548, 1e-05
    %v3553 = vadd.f32 %v3549, 1e-05
    %v3554 = vadd.f32 %v3550, 1e-05
    %v3555 = vrsqrt.pop %v3551
    %v3556 = vrsqrt.pop %v3552
    %v3557 = vrsqrt.pop %v3553
    %v3558 = vrsqrt.pop %v3554
    %v3559 = vmul.f32 %v3527, %v3555
    %v3560 = vmul.f32 %v3528, %v3556
    %v3561 = vmul.f32 %v3529, %v3557
    %v3562 = vmul.f32 %v3530, %v3558
    %v3564 = vlaneseq
    %v3565 = vshrl.u32 %v3564, 7
    %v3566 = vsub.s32 0, %v3565
    %v3567 = vrot.slane %v3508, %v3566
    %v3569 = vmul.f32 %v3559, %v3567
    %v3570 = vmul.f32 %v3560, %v3567
    %v3571 = vmul.f32 %v3561, %v3567
    %v3572 = vmul.f32 %v3562, %v3567
    %v3574 = vlaneseq
    %v3575 = vshrl.u32 %v3574, 7
    %v3576 = vsub.s32 0, %v3575
    %v3577 = vrot.slane %v3510, %v3576
    %v3579 = vadd.f32 %v3569, %v3577
    %v3580 = vadd.f32 %v3570, %v3577
    %v3581 = vadd.f32 %v3571, %v3577
    %v3582 = vadd.f32 %v3572, %v3577
    %s3583 = scalar_lea.vmem %s15, 32
    %v3584 = vld [vmem:[%s3583] sm:$0xff]
    %v3585 = vld [vmem:[%s3583 + $0x8] sm:$0xff]
    %v3586 = vld [vmem:[%s3583 + $0x10] sm:$0xff]
    %v3587 = vld [vmem:[%s3583 + $0x18] sm:$0xff]
    %s3588 = scalar_lea.vmem %s16, 1
    %v3589 = vld [vmem:[%s3588] sm:$0x1]
    %v3591 = vlaneseq
    %v3592 = vshrl.u32 %v3591, 7
    %v3593 = vsub.s32 0, %v3592
    %v3594 = vrot.slane %v3589, %v3593
    %v3597 = vsel %vm291, %v3579, 0
    %v3600 = vsel %vm291, %v3580, 0
    %v3603 = vsel %vm291, %v3581, 0
    %v3606 = vsel %vm291, %v3582, 0
    %3608 = vmatprep.subr.mxu0 0.0
    %3609 = vmatpush1.msra.mxu0 %v3584
    %3610 = vmatprep.subr.mxu0 0.0
    %3611 = vmatpush1.msra.mxu0 %v3585
    %3612 = vmatprep.subr.mxu0 0.0
    %3613 = vmatpush1.msra.mxu0 %v3586
    %3614 = vmatprep.subr.mxu0 0.0
    %3615 = vmatpush1.msra.mxu0 %v3587
    %3616 = vmatprep.subr.mxu0 0.0
    %3617 = vmatpush1.msra.mxu0 0.0
    %3618 = vmatprep.subr.mxu0 0.0
    %3619 = vmatpush1.msra.mxu0 0.0
    %3620 = vmatprep.subr.mxu0 0.0
    %3621 = vmatpush1.msra.mxu0 0.0
    %3622 = vmatprep.subr.mxu0 0.0
    %3623 = vmatpush1.msra.mxu0 0.0
    %3624 = vmatprep.subr.mxu0 0.0
    %3625 = vmatpush1.msra.mxu0 0.0
    %3626 = vmatprep.subr.mxu0 0.0
    %3627 = vmatpush1.msra.mxu0 0.0
    %3628 = vmatprep.subr.mxu0 0.0
    %3629 = vmatpush1.msra.mxu0 0.0
    %3630 = vmatprep.subr.mxu0 0.0
    %3631 = vmatpush1.msra.mxu0 0.0
    %3632 = vmatprep.subr.mxu0 0.0
    %3633 = vmatpush1.msra.mxu0 0.0
    %3634 = vmatprep.subr.mxu0 0.0
    %3635 = vmatpush1.msra.mxu0 0.0
    %3636 = vmatprep.subr.mxu0 0.0
    %3637 = vmatpush1.msra.mxu0 0.0
    %3638 = vmatprep.subr.mxu0 0.0
    %3639 = vmatpush1.msra.mxu0 0.0
    %3640 = vmatprep.subr.mxu0 0.0
    %3641 = vmatpush1.msra.mxu0 0.0
    %3642 = vmatprep.subr.mxu0 0.0
    %3643 = vmatpush1.msra.mxu0 0.0
    %3644 = vmatprep.subr.mxu0 0.0
    %3645 = vmatpush1.msra.mxu0 0.0
    %3646 = vmatprep.subr.mxu0 0.0
    %3647 = vmatpush1.msra.mxu0 0.0
    %3648 = vmatprep.subr.mxu0 0.0
    %3649 = vmatpush1.msra.mxu0 0.0
    %3650 = vmatprep.subr.mxu0 0.0
    %3651 = vmatpush1.msra.mxu0 0.0
    %3652 = vmatprep.subr.mxu0 0.0
    %3653 = vmatpush1.msra.mxu0 0.0
    %3654 = vmatprep.subr.mxu0 0.0
    %3655 = vmatpush1.msra.mxu0 0.0
    %3656 = vmatprep.subr.mxu0 0.0
    %3657 = vmatpush1.msra.mxu0 0.0
    %3658 = vmatprep.subr.mxu0 0.0
    %3659 = vmatpush1.msra.mxu0 0.0
    %3660 = vmatprep.subr.mxu0 0.0
    %3661 = vmatpush1.msra.mxu0 0.0
    %3662 = vmatprep.subr.mxu0 0.0
    %3663 = vmatpush1.msra.mxu0 0.0
    %3664 = vmatprep.subr.mxu0 0.0
    %3665 = vmatpush1.msra.mxu0 0.0
    %3666 = vmatprep.subr.mxu0 0.0
    %3667 = vmatpush1.msra.mxu0 0.0
    %3668 = vmatprep.subr.mxu0 0.0
    %3669 = vmatpush1.msra.mxu0 0.0
    %3670 = vmatprep.subr.mxu0 0.0
    %3671 = vmatpush1.msra.mxu0 0.0
    %3672 = vmatprep.mubr.f32.mxu0 0.0
    %3673 = vmatmul.mubr.f32.gmra.mrb[0].mxu0 %v3597
    %v3674 = vpop.f32.mrb[0].mxu0
    %v3675 = vadd.f32 %v3594, %v3674
    %v3676 = vpop.f32.mrb[0].mxu0
    %3677 = vmatprep.mubr.f32.mxu0 0.0
    %3678 = vmatmul.mubr.f32.gmra.mrb[0].mxu0 %v3600
    %v3679 = vpop.f32.mrb[0].mxu0
    %v3680 = vadd.f32 %v3594, %v3679
    %v3681 = vpop.f32.mrb[0].mxu0
    %3682 = vmatprep.mubr.f32.mxu0 0.0
    %3683 = vmatmul.mubr.f32.gmra.mrb[0].mxu0 %v3603
    %v3684 = vpop.f32.mrb[0].mxu0
    %v3685 = vadd.f32 %v3594, %v3684
    %v3686 = vpop.f32.mrb[0].mxu0
    %3687 = vmatprep.mubr.f32.mxu0 0.0
    %3688 = vmatmul.mubr.f32.gmra.mrb[0].mxu0 %v3606
    %v3689 = vpop.f32.mrb[0].mxu0
    %v3690 = vadd.f32 %v3594, %v3689
    %v3691 = vpop.f32.mrb[0].mxu0
    %3692 = vdwg.mxu0
    %v3693 = vmax.f32 %v3675, 0.0
    %v3694 = vmax.f32 %v3680, 0.0
    %v3695 = vmax.f32 %v3685, 0.0
    %v3696 = vmax.f32 %v3690, 0.0
    %s3697 = scalar_lea.vmem %s17, 64
    %v3698 = vld [vmem:[%s3697] sm:$0xff]
    %v3699 = vld [vmem:[%s3697 + $0x8] sm:$0xff]
    %v3700 = vld [vmem:[%s3697 + $0x10] sm:$0xff]
    %v3701 = vld [vmem:[%s3697 + $0x18] sm:$0xff]
    %v3702 = vld [vmem:[%s3697 + $0x20] sm:$0xff]
    %v3703 = vld [vmem:[%s3697 + $0x28] sm:$0xff]
    %v3704 = vld [vmem:[%s3697 + $0x30] sm:$0xff]
    %v3705 = vld [vmem:[%s3697 + $0x38] sm:$0xff]
    %s3706 = scalar_lea.vmem %s18, 1
    %v3707 = vld [vmem:[%s3706] sm:$0x1]
    %v3709 = vlaneseq
    %v3710 = vshrl.u32 %v3709, 7
    %v3711 = vsub.s32 0, %v3710
    %v3712 = vrot.slane %v3707, %v3711
    %v3715 = vsel %vm1903, %v3693, 0
    %v3718 = vsel %vm1903, %v3694, 0
    %v3721 = vsel %vm1903, %v3695, 0
    %v3724 = vsel %vm1903, %v3696, 0
    %3726 = vmatprep.subr.mxu0 0.0
    %3727 = vmatpush1.msra.mxu0 %v3698
    %3728 = vmatprep.subr.mxu0 0.0
    %3729 = vmatpush1.msra.mxu0 %v3699
    %3730 = vmatprep.subr.mxu0 0.0
    %3731 = vmatpush1.msra.mxu0 %v3700
    %3732 = vmatprep.subr.mxu0 0.0
    %3733 = vmatpush1.msra.mxu0 %v3701
    %3734 = vmatprep.subr.mxu0 0.0
    %3735 = vmatpush1.msra.mxu0 %v3702
    %3736 = vmatprep.subr.mxu0 0.0
    %3737 = vmatpush1.msra.mxu0 %v3703
    %3738 = vmatprep.subr.mxu0 0.0
    %3739 = vmatpush1.msra.mxu0 %v3704
    %3740 = vmatprep.subr.mxu0 0.0
    %3741 = vmatpush1.msra.mxu0 %v3705
    %3742 = vmatprep.subr.mxu0 0.0
    %3743 = vmatpush1.msra.mxu0 0.0
    %3744 = vmatprep.subr.mxu0 0.0
    %3745 = vmatpush1.msra.mxu0 0.0
    %3746 = vmatprep.subr.mxu0 0.0
    %3747 = vmatpush1.msra.mxu0 0.0
    %3748 = vmatprep.subr.mxu0 0.0
    %3749 = vmatpush1.msra.mxu0 0.0
    %3750 = vmatprep.subr.mxu0 0.0
    %3751 = vmatpush1.msra.mxu0 0.0
    %3752 = vmatprep.subr.mxu0 0.0
    %3753 = vmatpush1.msra.mxu0 0.0
    %3754 = vmatprep.subr.mxu0 0.0
    %3755 = vmatpush1.msra.mxu0 0.0
    %3756 = vmatprep.subr.mxu0 0.0
    %3757 = vmatpush1.msra.mxu0 0.0
    %3758 = vmatprep.subr.mxu0 0.0
    %3759 = vmatpush1.msra.mxu0 0.0
    %3760 = vmatprep.subr.mxu0 0.0
    %3761 = vmatpush1.msra.mxu0 0.0
    %3762 = vmatprep.subr.mxu0 0.0
    %3763 = vmatpush1.msra.mxu0 0.0
    %3764 = vmatprep.subr.mxu0 0.0
    %3765 = vmatpush1.msra.mxu0 0.0
    %3766 = vmatprep.subr.mxu0 0.0
    %3767 = vmatpush1.msra.mxu0 0.0
    %3768 = vmatprep.subr.mxu0 0.0
    %3769 = vmatpush1.msra.mxu0 0.0
    %3770 = vmatprep.subr.mxu0 0.0
    %3771 = vmatpush1.msra.mxu0 0.0
    %3772 = vmatprep.subr.mxu0 0.0
    %3773 = vmatpush1.msra.mxu0 0.0
    %3774 = vmatprep.subr.mxu0 0.0
    %3775 = vmatpush1.msra.mxu0 0.0
    %3776 = vmatprep.subr.mxu0 0.0
    %3777 = vmatpush1.msra.mxu0 0.0
    %3778 = vmatprep.subr.mxu0 0.0
    %3779 = vmatpush1.msra.mxu0 0.0
    %3780 = vmatprep.subr.mxu0 0.0
    %3781 = vmatpush1.msra.mxu0 0.0
    %3782 = vmatprep.subr.mxu0 0.0
    %3783 = vmatpush1.msra.mxu0 0.0
    %3784 = vmatprep.subr.mxu0 0.0
    %3785 = vmatpush1.msra.mxu0 0.0
    %3786 = vmatprep.subr.mxu0 0.0
    %3787 = vmatpush1.msra.mxu0 0.0
    %3788 = vmatprep.subr.mxu0 0.0
    %3789 = vmatpush1.msra.mxu0 0.0
    %3790 = vmatprep.mubr.f32.mxu0 0.0
    %3791 = vmatmul.mubr.f32.gmra.mrb[0].mxu0 %v3715
    %v3792 = vpop.f32.mrb[0].mxu0
    %v3793 = vadd.f32 %v3712, %v3792
    %v3794 = vpop.f32.mrb[0].mxu0
    %3795 = vmatprep.mubr.f32.mxu0 0.0
    %3796 = vmatmul.mubr.f32.gmra.mrb[0].mxu0 %v3718
    %v3797 = vpop.f32.mrb[0].mxu0
    %v3798 = vpop.f32.mrb[0].mxu0
    %3799 = vmatprep.mubr.f32.mxu0 0.0
    %3800 = vmatmul.mubr.f32.gmra.mrb[0].mxu0 %v3721
    %v3801 = vpop.f32.mrb[0].mxu0
    %v3802 = vadd.f32 %v3712, %v3801
    %v3803 = vpop.f32.mrb[0].mxu0
    %3804 = vmatprep.mubr.f32.mxu0 0.0
    %3805 = vmatmul.mubr.f32.gmra.mrb[0].mxu0 %v3724
    %v3806 = vpop.f32.mrb[0].mxu0
    %v3807 = vpop.f32.mrb[0].mxu0
    %3808 = vdwg.mxu0
    %v3809 = vadd.f32 %v3579, %v3793
    %v3810 = vadd.f32 %v3581, %v3802
    %s3811 = scalar_lea.vmem %s19, 1
    %v3812 = vld [vmem:[%s3811] sm:$0x1]
    %s3813 = scalar_lea.vmem %s20, 1
    %v3814 = vld [vmem:[%s3813] sm:$0x1]
    %v3815 = vsel %vm291, %v3809, 0.0
    %3816 = vadd.xlane.f32.xlu0 %v3815
    %v3817 = vpop.xlane.xlu0 %3816
    %v3818 = vsel %vm291, %v3810, 0.0
    %3819 = vadd.xlane.f32.xlu0 %v3818
    %v3820 = vpop.xlane.xlu0 %3819
    %v3821 = vmul.f32 %v3817, %v1715
    %v3822 = vmul.f32 %v3820, %v1715
    %v3823 = vsub.f32 %v3809, %v3821
    %v3824 = vsub.f32 %v3810, %v3822
    %v3825 = vmul.f32 %v3823, %v3823
    %v3826 = vmul.f32 %v3824, %v3824
    %v3827 = vsel %vm291, %v3825, 0.0
    %3828 = vadd.xlane.f32.xlu0 %v3827
    %v3829 = vpop.xlane.xlu0 %3828
    %v3830 = vsel %vm291, %v3826, 0.0
    %3831 = vadd.xlane.f32.xlu0 %v3830
    %v3832 = vpop.xlane.xlu0 %3831
    %v3833 = vmul.f32 %v3829, %v1715
    %v3834 = vmul.f32 %v3832, %v1715
    %v3835 = vadd.f32 %v3833, 1e-05
    %v3836 = vadd.f32 %v3834, 1e-05
    %v3837 = vrsqrt.pop %v3835
    %v3838 = vrsqrt.pop %v3836
    %v3839 = vmul.f32 %v3823, %v3837
    %v3840 = vmul.f32 %v3824, %v3838
    %v3842 = vlaneseq
    %v3843 = vshrl.u32 %v3842, 7
    %v3844 = vsub.s32 0, %v3843
    %v3845 = vrot.slane %v3812, %v3844
    %v3847 = vmul.f32 %v3839, %v3845
    %v3848 = vmul.f32 %v3840, %v3845
    %v3850 = vlaneseq
    %v3851 = vshrl.u32 %v3850, 7
    %v3852 = vsub.s32 0, %v3851
    %v3853 = vrot.slane %v3814, %v3852
    %v3855 = vadd.f32 %v3847, %v3853
    %v3856 = vadd.f32 %v3848, %v3853
    %v3858 = vrot.slane %v3856, 7
    %vm3860 = vcmask 1040384
    %v3861 = vsel %vm3860, %v3855, %v3858
    %v3862 = vld [vmem:[%s21] sm:$0xff]
    %v3863 = vld [vmem:[%s21 + $0x8] sm:$0xff]
    %v3864 = vld [vmem:[%s21 + $0x10] sm:$0xff]
    %v3865 = vld [vmem:[%s21 + $0x18] sm:$0xff]
    %v3866 = vld [vmem:[%s22] sm:$0x1]
    %v3868 = vlaneseq
    %v3869 = vshrl.u32 %v3868, 7
    %v3870 = vsub.s32 0, %v3869
    %v3871 = vrot.slane %v3866, %v3870
    %v3874 = vsel %vm291, %v3861, 0
    %3876 = vmatprep.subr.mxu0 0.0
    %3877 = vmatpush1.msra.mxu0 %v3862
    %3878 = vmatprep.subr.mxu0 0.0
    %3879 = vmatpush1.msra.mxu0 %v3863
    %3880 = vmatprep.subr.mxu0 0.0
    %3881 = vmatpush1.msra.mxu0 %v3864
    %3882 = vmatprep.subr.mxu0 0.0
    %3883 = vmatpush1.msra.mxu0 %v3865
    %3884 = vmatprep.subr.mxu0 0.0
    %3885 = vmatpush1.msra.mxu0 0.0
    %3886 = vmatprep.subr.mxu0 0.0
    %3887 = vmatpush1.msra.mxu0 0.0
    %3888 = vmatprep.subr.mxu0 0.0
    %3889 = vmatpush1.msra.mxu0 0.0
    %3890 = vmatprep.subr.mxu0 0.0
    %3891 = vmatpush1.msra.mxu0 0.0
    %3892 = vmatprep.subr.mxu0 0.0
    %3893 = vmatpush1.msra.mxu0 0.0
    %3894 = vmatprep.subr.mxu0 0.0
    %3895 = vmatpush1.msra.mxu0 0.0
    %3896 = vmatprep.subr.mxu0 0.0
    %3897 = vmatpush1.msra.mxu0 0.0
    %3898 = vmatprep.subr.mxu0 0.0
    %3899 = vmatpush1.msra.mxu0 0.0
    %3900 = vmatprep.subr.mxu0 0.0
    %3901 = vmatpush1.msra.mxu0 0.0
    %3902 = vmatprep.subr.mxu0 0.0
    %3903 = vmatpush1.msra.mxu0 0.0
    %3904 = vmatprep.subr.mxu0 0.0
    %3905 = vmatpush1.msra.mxu0 0.0
    %3906 = vmatprep.subr.mxu0 0.0
    %3907 = vmatpush1.msra.mxu0 0.0
    %3908 = vmatprep.subr.mxu0 0.0
    %3909 = vmatpush1.msra.mxu0 0.0
    %3910 = vmatprep.subr.mxu0 0.0
    %3911 = vmatpush1.msra.mxu0 0.0
    %3912 = vmatprep.subr.mxu0 0.0
    %3913 = vmatpush1.msra.mxu0 0.0
    %3914 = vmatprep.subr.mxu0 0.0
    %3915 = vmatpush1.msra.mxu0 0.0
    %3916 = vmatprep.subr.mxu0 0.0
    %3917 = vmatpush1.msra.mxu0 0.0
    %3918 = vmatprep.subr.mxu0 0.0
    %3919 = vmatpush1.msra.mxu0 0.0
    %3920 = vmatprep.subr.mxu0 0.0
    %3921 = vmatpush1.msra.mxu0 0.0
    %3922 = vmatprep.subr.mxu0 0.0
    %3923 = vmatpush1.msra.mxu0 0.0
    %3924 = vmatprep.subr.mxu0 0.0
    %3925 = vmatpush1.msra.mxu0 0.0
    %3926 = vmatprep.subr.mxu0 0.0
    %3927 = vmatpush1.msra.mxu0 0.0
    %3928 = vmatprep.subr.mxu0 0.0
    %3929 = vmatpush1.msra.mxu0 0.0
    %3930 = vmatprep.subr.mxu0 0.0
    %3931 = vmatpush1.msra.mxu0 0.0
    %3932 = vmatprep.subr.mxu0 0.0
    %3933 = vmatpush1.msra.mxu0 0.0
    %3934 = vmatprep.subr.mxu0 0.0
    %3935 = vmatpush1.msra.mxu0 0.0
    %3936 = vmatprep.subr.mxu0 0.0
    %3937 = vmatpush1.msra.mxu0 0.0
    %3938 = vmatprep.subr.mxu0 0.0
    %3939 = vmatpush1.msra.mxu0 0.0
    %3940 = vmatprep.mubr.f32.mxu0 0.0
    %3941 = vmatmul.mubr.f32.gmra.mrb[0].mxu0 %v3874
    %v3942 = vpop.f32.mrb[0].mxu0
    %v3943 = vadd.f32 %v3871, %v3942
    %v3944 = vpop.f32.mrb[0].mxu0
    %3945 = vdwg.mxu0
    %vm3946 = vcmask 33792
    %3947 = vst.msk [vmem:[#allocation2] sm:$0x3] %vm3946, %v3943
    // Predicated region
    $region94: #{transformer_forward.1} parent=1 // pred_check
      _
    $region95: #{transformer_forward.1} parent=1 // pred_check_branch
      %3949 = sbr.rel (0) target = $region97
    $region96: #{transformer_forward.1} parent=1 // pred_region
      %s3951 = ssub.s32 32, 32
      %3952 = vsyncadd [#allocation3], %s3951
      %s3954 = sshll.u32 [#allocation2], 4
      %s3955 = int_to_ptr.vmem [resolvable:$true] %s3954
      %3957 = dma.vmem_to_hbm [thread:$0]  %s3955, 32, %s23, [#allocation3]
    $region97: #{transformer_forward.1} parent=1 // pred_fallthru
      _
    // Predicated region
    $region98: #{transformer_forward.1} parent=1 // pred_check
      _
    $region99: #{transformer_forward.1} parent=1 // pred_check_branch
      %3959 = sbr.rel (0) target = $region101
    $region100: #{transformer_forward.1} parent=1 // pred_region
      %3960 = dma.done [#allocation3], 32
    $region101: #{transformer_forward.1} parent=1 // pred_fallthru
      _
    %3961 = vsyncpa [#allocation3], 1

</llo_original>
